<compile_context>
chip_gen: v7x
topology: tpu7x:2x2x1
jax: 0.10.0
libtpu: 0.0.40
codegen_flags: <defaults>
</compile_context>

<pallas_src>
import math
from functools import partial

import jax
import jax.numpy as jnp
from jax.experimental import pallas as pl
from jax.experimental.pallas import tpu as pltpu


# --------------------------------------------------------------------------
# Pallas kernel: 3x3 same-padding conv (im2col, one K=9*Cin dot) + bias + ReLU
# --------------------------------------------------------------------------
def _conv3x3_relu_kernel(x_ref, w_ref, b_ref, o_ref, patch_ref):
    # x_ref    : (1, H+2, W+2, Cin)  bf16 spatially pre-padded input block
    #            (block index ignores `co` -> resident across Cout tiles).
    # w_ref    : (9*Cin, TCout)      bf16 im2col-folded weights for this tile.
    # b_ref    : (1, TCout)          f32 bias for this tile.
    # o_ref    : (1, H, W, TCout)    bf16 output tile (TCout % 128 == 0 -> lane-dense).
    # patch_ref: (CHUNK_H*W, 9*Cin)  bf16 VMEM scratch for the patch matrix.
    H = o_ref.shape[1]
    W = o_ref.shape[2]
    cin = x_ref.shape[3]
    tcout = o_ref.shape[3]
    chunk_h = patch_ref.shape[0] // W

    for h0 in range(0, H, chunk_h):
        ch = min(chunk_h, H - h0)
        rows = ch * W

        # im2col into VMEM scratch: patch[:, (ky*3+kx)*Cin + ci] = x[h+ky, w+kx, ci]
        for ky in range(3):
            for kx in range(3):
                xs = x_ref[0, h0 + ky:h0 + ky + ch, kx:kx + W, :]   # (ch, W, Cin)
                c0 = (ky * 3 + kx) * cin
                patch_ref[0:rows, c0:c0 + cin] = xs.reshape(rows, cin)

        # One MXU contraction with K = 9*Cin (instead of 9 dots with K = Cin).
        acc = jnp.dot(patch_ref[0:rows, :], w_ref[...],
                      preferred_element_type=jnp.float32)           # (rows, TCout) f32
        acc = jnp.maximum(acc + b_ref[...], 0.0)                     # bias + ReLU (f32)
        o_ref[:, h0:h0 + ch, :, :] = acc.reshape(1, ch, W, tcout).astype(o_ref.dtype)


def _conv3x3_relu(xp_bf16, w_mat_bf16, bias_f32_2d, out_hw):
    """xp_bf16: (B, H+2, W+2, Cin) bf16; w_mat_bf16: (9*Cin, Cout_pad) bf16;
    bias_f32_2d: (1, Cout_pad) f32.  Returns (B, H, W, Cout_pad) bf16."""
    B, Hp2, Wp2, Cin = xp_bf16.shape
    H, W = out_hw
    K = w_mat_bf16.shape[0]            # 9 * Cin
    Cout_pad = w_mat_bf16.shape[1]     # multiple of 128

    tcout = 128                        # lane-dense Cout tile
    n_co = Cout_pad // tcout

    # Row chunking inside the kernel keeps the live f32 result <= ~64 KiB of vregs.
    chunk_h = max(1, min(H, max(1, 128 // W)))
    chunk_rows = chunk_h * W

    # Cost estimate: x is read once per batch (block resident across co tiles),
    # weights are tiny and re-streamed per (b, co), output written once.
    flops = 2 * B * H * W * K * Cout_pad
    bytes_accessed = (B * Hp2 * Wp2 * Cin * 2            # x (bf16), once
                      + B * n_co * K * tcout * 2          # weights (bf16)
                      + B * n_co * tcout * 4              # bias (f32)
                      + B * H * W * Cout_pad * 2)         # output (bf16)

    # VMEM budget: double-buffered blocks + im2col scratch, clamped to 64 MiB so it
    # is valid on v7x (64 MiB physical) as well as v5e/v6e (128 MiB physical).
    x_blk = Hp2 * Wp2 * Cin * 2
    w_blk = K * tcout * 2
    b_blk = tcout * 4
    o_blk = H * W * tcout * 2
    per_step = 2 * (x_blk + w_blk + b_blk + o_blk) + chunk_rows * K * 2
    vmem_limit = int(min(max(3 * per_step, 32 * 1024 * 1024), 64 * 1024 * 1024))

    return pl.pallas_call(
        _conv3x3_relu_kernel,
        out_shape=jax.ShapeDtypeStruct((B, H, W, Cout_pad), jnp.bfloat16),
        grid=(B, n_co),                         # co innermost -> x block stays resident
        in_specs=[
            pl.BlockSpec((1, Hp2, Wp2, Cin), lambda bb, co: (bb, 0, 0, 0)),
            pl.BlockSpec((K, tcout), lambda bb, co: (0, co)),
            pl.BlockSpec((1, tcout), lambda bb, co: (0, co)),
        ],
        out_specs=pl.BlockSpec((1, H, W, tcout), lambda bb, co: (bb, 0, 0, co)),
        scratch_shapes=[pltpu.VMEM((chunk_rows, K), jnp.bfloat16)],
        compiler_params=pltpu.CompilerParams(
            dimension_semantics=("parallel", "parallel"),
            vmem_limit_bytes=vmem_limit,
        ),
        cost_estimate=pl.CostEstimate(
            flops=flops, transcendentals=0, bytes_accessed=bytes_accessed),
    )(xp_bf16, w_mat_bf16, bias_f32_2d)


# --------------------------------------------------------------------------
# One _UpsampleBlock stage, fully NHWC: Conv3x3 -> ReLU -> PixelShuffle(r)
# --------------------------------------------------------------------------
def _upsample_stage_nhwc(x_nhwc, w_oihw, bias, r):
    B, H, W, Cin = x_nhwc.shape
    Cout = w_oihw.shape[0]
    Cout_pad = ((Cout + 127) // 128) * 128      # lane-dense output tiles

    # bf16 inputs: 2x MXU rate, half the DMA bytes; accumulation stays f32.
    xp = jnp.pad(x_nhwc.astype(jnp.bfloat16), ((0, 0), (1, 1), (1, 1), (0, 0)))

    # Fold the 3x3 taps into the contraction: OIHW -> (ky, kx, ci, co) -> (9*Cin, Cout).
    w_mat = jnp.transpose(w_oihw, (2, 3, 1, 0)).reshape(9 * Cin, Cout)
    w_mat = jnp.pad(w_mat, ((0, 0), (0, Cout_pad - Cout))).astype(jnp.bfloat16)
    b2 = jnp.pad(bias, (0, Cout_pad - Cout)).reshape(1, Cout_pad).astype(jnp.float32)

    conv = _conv3x3_relu(xp, w_mat, b2, (H, W))          # (B, H, W, Cout_pad) bf16
    conv = conv[..., :Cout]                              # drop dead (zero) channels

    # PixelShuffle(r) in NHWC: channel c*r*r + i*r + j -> channel c at spatial (i, j).
    Cs = Cout // (r * r)
    y = conv.reshape(B, H, W, Cs, r, r)
    y = jnp.transpose(y, (0, 1, 4, 2, 5, 3)).reshape(B, H * r, W * r, Cs)
    return y


# --------------------------------------------------------------------------
# Parameter construction (mirrors Conv2d default init, bias=True)
# --------------------------------------------------------------------------
def _init_stage_params(key, cin, cout):
    k1, k2 = jax.random.split(key)
    bound = 1.0 / math.sqrt(cin * 9)
    w = jax.random.uniform(k1, (cout, cin, 3, 3), jnp.float32, -bound, bound)
    b = jax.random.uniform(k2, (cout,), jnp.float32, -bound, bound)
    return w, b


def _make_stage_list(key, n_channels, scale):
    stages = []
    if scale in (2, 4, 8):
        n_stage = int(round(math.log2(scale)))
        for k in jax.random.split(key, n_stage):
            stages.append(_init_stage_params(k, n_channels, 4 * n_channels))
    elif scale == 3:
        stages.append(_init_stage_params(key, n_channels, 9 * n_channels))
    else:
        raise ValueError(f"unsupported scale {scale}")
    return stages


def make_upsample_params(key, n_channels, scale=None, multi_scale=False):
    if multi_scale:
        k2, k3, k4 = jax.random.split(key, 3)
        return {2: _make_stage_list(k2, n_channels, 2),
                3: _make_stage_list(k3, n_channels, 3),
                4: _make_stage_list(k4, n_channels, 4)}
    return _make_stage_list(key, n_channels, scale)


# --------------------------------------------------------------------------
# UpsampleBlock.forward(x, scale)
# --------------------------------------------------------------------------
@partial(jax.jit, static_argnames=("scale", "multi_scale"))
def upsample_block_forward(x_nchw, params, scale, multi_scale):
    stages = params[scale] if multi_scale else params
    # Single NCHW->NHWC at entry, NHWC->NCHW at exit; all stages stay NHWC so the
    # per-stage pad / channel-slice / pixel-shuffle copies fuse under jit.
    out = jnp.transpose(x_nchw, (0, 2, 3, 1))
    for (w, b) in stages:
        r = int(round(math.sqrt(w.shape[0] // out.shape[-1])))   # 2 or 3, static
        out = _upsample_stage_nhwc(out, w, b, r)
    return jnp.transpose(out, (0, 3, 1, 2)).astype(jnp.float32)


# --------------------------------------------------------------------------
# Pure-JAX reference (matches the PyTorch module, f32 / HIGHEST precision)
# --------------------------------------------------------------------------
def _pixel_shuffle_nchw(x, r):
    B, Crr, H, W = x.shape
    C = Crr // (r * r)
    x = x.reshape(B, C, r, r, H, W)
    x = jnp.transpose(x, (0, 1, 4, 2, 5, 3))
    return x.reshape(B, C, H * r, W * r)


def _ref_stage(x, w_oihw, bias, r):
    y = jax.lax.conv_general_dilated(
        x, w_oihw, window_strides=(1, 1), padding=((1, 1), (1, 1)),
        dimension_numbers=("NCHW", "OIHW", "NCHW"),
        precision=jax.lax.Precision.HIGHEST)
    y = y + bias[None, :, None, None]
    y = jnp.maximum(y, 0.0)
    return _pixel_shuffle_nchw(y, r)


def _ref_forward(x_nchw, params, scale, multi_scale):
    stages = params[scale] if multi_scale else params
    out = x_nchw
    for (w, b) in stages:
        r = int(round(math.sqrt(w.shape[0] // out.shape[1])))
        out = _ref_stage(out, w, b, r)
    return out


# --------------------------------------------------------------------------
if __name__ == "__main__":
    B, C, H, W = 2, 4, 16, 16

    key = jax.random.PRNGKey(0)
    kx, kp = jax.random.split(key)
    x = jax.random.normal(kx, (B, C, H, W), dtype=jnp.float32)

    multi_scale = True
    params = make_upsample_params(kp, C, multi_scale=multi_scale)

    # bf16 MXU inputs vs f32/HIGHEST reference -> loosened tolerance.
    for scale in (2, 3, 4):
        out = jax.block_until_ready(
            upsample_block_forward(x, params, scale, multi_scale))
        ref = _ref_forward(x, params, scale, multi_scale)
        assert out.shape == (B, C, scale * H, scale * W), f"scale={scale} shape"
        assert jnp.allclose(out, ref, atol=4e-2, rtol=4e-2), f"scale={scale} mismatch"

    print("KERNEL_OK")
</pallas_src>

<mosaic_0001>
module attributes {stable_mosaic.version = 11 : i64} {
  func.func @_conv3x3_relu_kernel(%arg0: i32, %arg1: i32, %arg2: memref<1x18x18x4xbf16, #tpu.memory_space<vmem>>, %arg3: memref<36x128xbf16, #tpu.memory_space<vmem>>, %arg4: memref<1x128xf32, #tpu.memory_space<vmem>>, %arg5: memref<1x16x16x128xbf16, #tpu.memory_space<vmem>>, %arg6: memref<128x36xbf16, #tpu.memory_space<vmem>>) attributes {dimension_semantics = [#tpu.dimension_semantics<parallel>, #tpu.dimension_semantics<parallel>], iteration_bounds = array<i64: 2, 1>, scalar_prefetch = 0 : i64, scratch_operands = 1 : i64, tpu.core_type = #tpu.core_type<tc>, window_params = [{transform_indices = @transform_0, window_bounds = array<i64: 1, 18, 18, 4>}, {transform_indices = @transform_1, window_bounds = array<i64: 36, 128>}, {transform_indices = @transform_2, window_bounds = array<i64: 1, 128>}, {transform_indices = @transform_3, window_bounds = array<i64: 1, 16, 16, 128>}]} {
    %c0 = arith.constant 0 : index
    %c0_0 = arith.constant 0 : index
    %c0_1 = arith.constant 0 : index
    %c0_2 = arith.constant 0 : index
    %0 = vector.load %arg2[%c0, %c0_0, %c0_1, %c0_2] : memref<1x18x18x4xbf16, #tpu.memory_space<vmem>>, vector<1x8x16x4xbf16>
    %1 = vector.shape_cast %0 : vector<1x8x16x4xbf16> to vector<8x16x4xbf16>
    %2 = vector.shape_cast %1 : vector<8x16x4xbf16> to vector<128x4xbf16>
    %c0_3 = arith.constant 0 : index
    %c0_4 = arith.constant 0 : index
    %3 = vector.load %arg6[%c0_3, %c0_4] : memref<128x36xbf16, #tpu.memory_space<vmem>>, vector<128x4xbf16>
    tpu.vector_store %arg6[%c0_3, %c0_4], %2 {strides = array<i32>} : memref<128x36xbf16, #tpu.memory_space<vmem>>, vector<128x4xbf16>,
    %c0_5 = arith.constant 0 : index
    %c0_6 = arith.constant 0 : index
    %c1 = arith.constant 1 : index
    %c0_7 = arith.constant 0 : index
    %4 = vector.load %arg2[%c0_5, %c0_6, %c1, %c0_7] : memref<1x18x18x4xbf16, #tpu.memory_space<vmem>>, vector<1x8x16x4xbf16>
    %5 = vector.shape_cast %4 : vector<1x8x16x4xbf16> to vector<8x16x4xbf16>
    %6 = vector.shape_cast %5 : vector<8x16x4xbf16> to vector<128x4xbf16>
    %c0_8 = arith.constant 0 : index
    %c4 = arith.constant 4 : index
    %7 = vector.load %arg6[%c0_8, %c4] : memref<128x36xbf16, #tpu.memory_space<vmem>>, vector<128x4xbf16>
    tpu.vector_store %arg6[%c0_8, %c4], %6 {strides = array<i32>} : memref<128x36xbf16, #tpu.memory_space<vmem>>, vector<128x4xbf16>,
    %c0_9 = arith.constant 0 : index
    %c0_10 = arith.constant 0 : index
    %c2 = arith.constant 2 : index
    %c0_11 = arith.constant 0 : index
    %8 = vector.load %arg2[%c0_9, %c0_10, %c2, %c0_11] : memref<1x18x18x4xbf16, #tpu.memory_space<vmem>>, vector<1x8x16x4xbf16>
    %9 = vector.shape_cast %8 : vector<1x8x16x4xbf16> to vector<8x16x4xbf16>
    %10 = vector.shape_cast %9 : vector<8x16x4xbf16> to vector<128x4xbf16>
    %c0_12 = arith.constant 0 : index
    %c8 = arith.constant 8 : index
    %11 = vector.load %arg6[%c0_12, %c8] : memref<128x36xbf16, #tpu.memory_space<vmem>>, vector<128x4xbf16>
    tpu.vector_store %arg6[%c0_12, %c8], %10 {strides = array<i32>} : memref<128x36xbf16, #tpu.memory_space<vmem>>, vector<128x4xbf16>,
    %c0_13 = arith.constant 0 : index
    %c1_14 = arith.constant 1 : index
    %c0_15 = arith.constant 0 : index
    %c0_16 = arith.constant 0 : index
    %12 = vector.load %arg2[%c0_13, %c1_14, %c0_15, %c0_16] : memref<1x18x18x4xbf16, #tpu.memory_space<vmem>>, vector<1x8x16x4xbf16>
    %13 = vector.shape_cast %12 : vector<1x8x16x4xbf16> to vector<8x16x4xbf16>
    %14 = vector.shape_cast %13 : vector<8x16x4xbf16> to vector<128x4xbf16>
    %c0_17 = arith.constant 0 : index
    %c12 = arith.constant 12 : index
    %15 = vector.load %arg6[%c0_17, %c12] : memref<128x36xbf16, #tpu.memory_space<vmem>>, vector<128x4xbf16>
    tpu.vector_store %arg6[%c0_17, %c12], %14 {strides = array<i32>} : memref<128x36xbf16, #tpu.memory_space<vmem>>, vector<128x4xbf16>,
    %c0_18 = arith.constant 0 : index
    %c1_19 = arith.constant 1 : index
    %c1_20 = arith.constant 1 : index
    %c0_21 = arith.constant 0 : index
    %16 = vector.load %arg2[%c0_18, %c1_19, %c1_20, %c0_21] : memref<1x18x18x4xbf16, #tpu.memory_space<vmem>>, vector<1x8x16x4xbf16>
    %17 = vector.shape_cast %16 : vector<1x8x16x4xbf16> to vector<8x16x4xbf16>
    %18 = vector.shape_cast %17 : vector<8x16x4xbf16> to vector<128x4xbf16>
    %c0_22 = arith.constant 0 : index
    %c16 = arith.constant 16 : index
    %19 = vector.load %arg6[%c0_22, %c16] : memref<128x36xbf16, #tpu.memory_space<vmem>>, vector<128x4xbf16>
    tpu.vector_store %arg6[%c0_22, %c16], %18 {strides = array<i32>} : memref<128x36xbf16, #tpu.memory_space<vmem>>, vector<128x4xbf16>,
    %c0_23 = arith.constant 0 : index
    %c1_24 = arith.constant 1 : index
    %c2_25 = arith.constant 2 : index
    %c0_26 = arith.constant 0 : index
    %20 = vector.load %arg2[%c0_23, %c1_24, %c2_25, %c0_26] : memref<1x18x18x4xbf16, #tpu.memory_space<vmem>>, vector<1x8x16x4xbf16>
    %21 = vector.shape_cast %20 : vector<1x8x16x4xbf16> to vector<8x16x4xbf16>
    %22 = vector.shape_cast %21 : vector<8x16x4xbf16> to vector<128x4xbf16>
    %c0_27 = arith.constant 0 : index
    %c20 = arith.constant 20 : index
    %23 = vector.load %arg6[%c0_27, %c20] : memref<128x36xbf16, #tpu.memory_space<vmem>>, vector<128x4xbf16>
    tpu.vector_store %arg6[%c0_27, %c20], %22 {strides = array<i32>} : memref<128x36xbf16, #tpu.memory_space<vmem>>, vector<128x4xbf16>,
    %c0_28 = arith.constant 0 : index
    %c2_29 = arith.constant 2 : index
    %c0_30 = arith.constant 0 : index
    %c0_31 = arith.constant 0 : index
    %24 = vector.load %arg2[%c0_28, %c2_29, %c0_30, %c0_31] : memref<1x18x18x4xbf16, #tpu.memory_space<vmem>>, vector<1x8x16x4xbf16>
    %25 = vector.shape_cast %24 : vector<1x8x16x4xbf16> to vector<8x16x4xbf16>
    %26 = vector.shape_cast %25 : vector<8x16x4xbf16> to vector<128x4xbf16>
    %c0_32 = arith.constant 0 : index
    %c24 = arith.constant 24 : index
    %27 = vector.load %arg6[%c0_32, %c24] : memref<128x36xbf16, #tpu.memory_space<vmem>>, vector<128x4xbf16>
    tpu.vector_store %arg6[%c0_32, %c24], %26 {strides = array<i32>} : memref<128x36xbf16, #tpu.memory_space<vmem>>, vector<128x4xbf16>,
    %c0_33 = arith.constant 0 : index
    %c2_34 = arith.constant 2 : index
    %c1_35 = arith.constant 1 : index
    %c0_36 = arith.constant 0 : index
    %28 = vector.load %arg2[%c0_33, %c2_34, %c1_35, %c0_36] : memref<1x18x18x4xbf16, #tpu.memory_space<vmem>>, vector<1x8x16x4xbf16>
    %29 = vector.shape_cast %28 : vector<1x8x16x4xbf16> to vector<8x16x4xbf16>
    %30 = vector.shape_cast %29 : vector<8x16x4xbf16> to vector<128x4xbf16>
    %c0_37 = arith.constant 0 : index
    %c28 = arith.constant 28 : index
    %31 = vector.load %arg6[%c0_37, %c28] : memref<128x36xbf16, #tpu.memory_space<vmem>>, vector<128x4xbf16>
    tpu.vector_store %arg6[%c0_37, %c28], %30 {strides = array<i32>} : memref<128x36xbf16, #tpu.memory_space<vmem>>, vector<128x4xbf16>,
    %c0_38 = arith.constant 0 : index
    %c2_39 = arith.constant 2 : index
    %c2_40 = arith.constant 2 : index
    %c0_41 = arith.constant 0 : index
    %32 = vector.load %arg2[%c0_38, %c2_39, %c2_40, %c0_41] : memref<1x18x18x4xbf16, #tpu.memory_space<vmem>>, vector<1x8x16x4xbf16>
    %33 = vector.shape_cast %32 : vector<1x8x16x4xbf16> to vector<8x16x4xbf16>
    %34 = vector.shape_cast %33 : vector<8x16x4xbf16> to vector<128x4xbf16>
    %c0_42 = arith.constant 0 : index
    %c32 = arith.constant 32 : index
    %35 = vector.load %arg6[%c0_42, %c32] : memref<128x36xbf16, #tpu.memory_space<vmem>>, vector<128x4xbf16>
    tpu.vector_store %arg6[%c0_42, %c32], %34 {strides = array<i32>} : memref<128x36xbf16, #tpu.memory_space<vmem>>, vector<128x4xbf16>,
    %c0_43 = arith.constant 0 : index
    %c0_44 = arith.constant 0 : index
    %36 = vector.load %arg6[%c0_43, %c0_44] : memref<128x36xbf16, #tpu.memory_space<vmem>>, vector<128x36xbf16>
    %c0_45 = arith.constant 0 : index
    %c0_46 = arith.constant 0 : index
    %37 = vector.load %arg3[%c0_45, %c0_46] : memref<36x128xbf16, #tpu.memory_space<vmem>>, vector<36x128xbf16>
    %cst = arith.constant dense<0.000000e+00> : vector<128x128xf32>
    %38 = tpu.matmul %36, %37, %cst {dimension_numbers = #tpu.dot_dimension_numbers<[1], [0], [0], [1], [0, 0, 1, 1], [], []>} : vector<128x36xbf16>, vector<36x128xbf16>, vector<128x128xf32> -> vector<128x128xf32>
    %c0_47 = arith.constant 0 : index
    %c0_48 = arith.constant 0 : index
    %39 = vector.load %arg4[%c0_47, %c0_48] : memref<1x128xf32, #tpu.memory_space<vmem>>, vector<1x128xf32>
    %40 = vector.broadcast %39 : vector<1x128xf32> to vector<128x128xf32>
    %41 = arith.addf %38, %40 : vector<128x128xf32>
    %cst_49 = arith.constant 0.000000e+00 : f32
    %42 = vector.broadcast %cst_49 : f32 to vector<128x128xf32>
    %43 = arith.maximumf %41, %42 : vector<128x128xf32>
    %44 = vector.shape_cast %43 : vector<128x128xf32> to vector<1x8x16x128xf32>
    %45 = arith.truncf %44 : vector<1x8x16x128xf32> to vector<1x8x16x128xbf16>
    %c0_50 = arith.constant 0 : index
    %c0_51 = arith.constant 0 : index
    %c0_52 = arith.constant 0 : index
    %c0_53 = arith.constant 0 : index
    %46 = vector.load %arg5[%c0_50, %c0_51, %c0_52, %c0_53] : memref<1x16x16x128xbf16, #tpu.memory_space<vmem>>, vector<1x8x16x128xbf16>
    tpu.vector_store %arg5[%c0_50, %c0_51, %c0_52, %c0_53], %45 {strides = array<i32>} : memref<1x16x16x128xbf16, #tpu.memory_space<vmem>>, vector<1x8x16x128xbf16>,
    %c0_54 = arith.constant 0 : index
    %c8_55 = arith.constant 8 : index
    %c0_56 = arith.constant 0 : index
    %c0_57 = arith.constant 0 : index
    %47 = vector.load %arg2[%c0_54, %c8_55, %c0_56, %c0_57] : memref<1x18x18x4xbf16, #tpu.memory_space<vmem>>, vector<1x8x16x4xbf16>
    %48 = vector.shape_cast %47 : vector<1x8x16x4xbf16> to vector<8x16x4xbf16>
    %49 = vector.shape_cast %48 : vector<8x16x4xbf16> to vector<128x4xbf16>
    %c0_58 = arith.constant 0 : index
    %c0_59 = arith.constant 0 : index
    %50 = vector.load %arg6[%c0_58, %c0_59] : memref<128x36xbf16, #tpu.memory_space<vmem>>, vector<128x4xbf16>
    tpu.vector_store %arg6[%c0_58, %c0_59], %49 {strides = array<i32>} : memref<128x36xbf16, #tpu.memory_space<vmem>>, vector<128x4xbf16>,
    %c0_60 = arith.constant 0 : index
    %c8_61 = arith.constant 8 : index
    %c1_62 = arith.constant 1 : index
    %c0_63 = arith.constant 0 : index
    %51 = vector.load %arg2[%c0_60, %c8_61, %c1_62, %c0_63] : memref<1x18x18x4xbf16, #tpu.memory_space<vmem>>, vector<1x8x16x4xbf16>
    %52 = vector.shape_cast %51 : vector<1x8x16x4xbf16> to vector<8x16x4xbf16>
    %53 = vector.shape_cast %52 : vector<8x16x4xbf16> to vector<128x4xbf16>
    %c0_64 = arith.constant 0 : index
    %c4_65 = arith.constant 4 : index
    %54 = vector.load %arg6[%c0_64, %c4_65] : memref<128x36xbf16, #tpu.memory_space<vmem>>, vector<128x4xbf16>
    tpu.vector_store %arg6[%c0_64, %c4_65], %53 {strides = array<i32>} : memref<128x36xbf16, #tpu.memory_space<vmem>>, vector<128x4xbf16>,
    %c0_66 = arith.constant 0 : index
    %c8_67 = arith.constant 8 : index
    %c2_68 = arith.constant 2 : index
    %c0_69 = arith.constant 0 : index
    %55 = vector.load %arg2[%c0_66, %c8_67, %c2_68, %c0_69] : memref<1x18x18x4xbf16, #tpu.memory_space<vmem>>, vector<1x8x16x4xbf16>
    %56 = vector.shape_cast %55 : vector<1x8x16x4xbf16> to vector<8x16x4xbf16>
    %57 = vector.shape_cast %56 : vector<8x16x4xbf16> to vector<128x4xbf16>
    %c0_70 = arith.constant 0 : index
    %c8_71 = arith.constant 8 : index
    %58 = vector.load %arg6[%c0_70, %c8_71] : memref<128x36xbf16, #tpu.memory_space<vmem>>, vector<128x4xbf16>
    tpu.vector_store %arg6[%c0_70, %c8_71], %57 {strides = array<i32>} : memref<128x36xbf16, #tpu.memory_space<vmem>>, vector<128x4xbf16>,
    %c0_72 = arith.constant 0 : index
    %c9 = arith.constant 9 : index
    %c0_73 = arith.constant 0 : index
    %c0_74 = arith.constant 0 : index
    %59 = vector.load %arg2[%c0_72, %c9, %c0_73, %c0_74] : memref<1x18x18x4xbf16, #tpu.memory_space<vmem>>, vector<1x8x16x4xbf16>
    %60 = vector.shape_cast %59 : vector<1x8x16x4xbf16> to vector<8x16x4xbf16>
    %61 = vector.shape_cast %60 : vector<8x16x4xbf16> to vector<128x4xbf16>
    %c0_75 = arith.constant 0 : index
    %c12_76 = arith.constant 12 : index
    %62 = vector.load %arg6[%c0_75, %c12_76] : memref<128x36xbf16, #tpu.memory_space<vmem>>, vector<128x4xbf16>
    tpu.vector_store %arg6[%c0_75, %c12_76], %61 {strides = array<i32>} : memref<128x36xbf16, #tpu.memory_space<vmem>>, vector<128x4xbf16>,
    %c0_77 = arith.constant 0 : index
    %c9_78 = arith.constant 9 : index
    %c1_79 = arith.constant 1 : index
    %c0_80 = arith.constant 0 : index
    %63 = vector.load %arg2[%c0_77, %c9_78, %c1_79, %c0_80] : memref<1x18x18x4xbf16, #tpu.memory_space<vmem>>, vector<1x8x16x4xbf16>
    %64 = vector.shape_cast %63 : vector<1x8x16x4xbf16> to vector<8x16x4xbf16>
    %65 = vector.shape_cast %64 : vector<8x16x4xbf16> to vector<128x4xbf16>
    %c0_81 = arith.constant 0 : index
    %c16_82 = arith.constant 16 : index
    %66 = vector.load %arg6[%c0_81, %c16_82] : memref<128x36xbf16, #tpu.memory_space<vmem>>, vector<128x4xbf16>
    tpu.vector_store %arg6[%c0_81, %c16_82], %65 {strides = array<i32>} : memref<128x36xbf16, #tpu.memory_space<vmem>>, vector<128x4xbf16>,
    %c0_83 = arith.constant 0 : index
    %c9_84 = arith.constant 9 : index
    %c2_85 = arith.constant 2 : index
    %c0_86 = arith.constant 0 : index
    %67 = vector.load %arg2[%c0_83, %c9_84, %c2_85, %c0_86] : memref<1x18x18x4xbf16, #tpu.memory_space<vmem>>, vector<1x8x16x4xbf16>
    %68 = vector.shape_cast %67 : vector<1x8x16x4xbf16> to vector<8x16x4xbf16>
    %69 = vector.shape_cast %68 : vector<8x16x4xbf16> to vector<128x4xbf16>
    %c0_87 = arith.constant 0 : index
    %c20_88 = arith.constant 20 : index
    %70 = vector.load %arg6[%c0_87, %c20_88] : memref<128x36xbf16, #tpu.memory_space<vmem>>, vector<128x4xbf16>
    tpu.vector_store %arg6[%c0_87, %c20_88], %69 {strides = array<i32>} : memref<128x36xbf16, #tpu.memory_space<vmem>>, vector<128x4xbf16>,
    %c0_89 = arith.constant 0 : index
    %c10 = arith.constant 10 : index
    %c0_90 = arith.constant 0 : index
    %c0_91 = arith.constant 0 : index
    %71 = vector.load %arg2[%c0_89, %c10, %c0_90, %c0_91] : memref<1x18x18x4xbf16, #tpu.memory_space<vmem>>, vector<1x8x16x4xbf16>
    %72 = vector.shape_cast %71 : vector<1x8x16x4xbf16> to vector<8x16x4xbf16>
    %73 = vector.shape_cast %72 : vector<8x16x4xbf16> to vector<128x4xbf16>
    %c0_92 = arith.constant 0 : index
    %c24_93 = arith.constant 24 : index
    %74 = vector.load %arg6[%c0_92, %c24_93] : memref<128x36xbf16, #tpu.memory_space<vmem>>, vector<128x4xbf16>
    tpu.vector_store %arg6[%c0_92, %c24_93], %73 {strides = array<i32>} : memref<128x36xbf16, #tpu.memory_space<vmem>>, vector<128x4xbf16>,
    %c0_94 = arith.constant 0 : index
    %c10_95 = arith.constant 10 : index
    %c1_96 = arith.constant 1 : index
    %c0_97 = arith.constant 0 : index
    %75 = vector.load %arg2[%c0_94, %c10_95, %c1_96, %c0_97] : memref<1x18x18x4xbf16, #tpu.memory_space<vmem>>, vector<1x8x16x4xbf16>
    %76 = vector.shape_cast %75 : vector<1x8x16x4xbf16> to vector<8x16x4xbf16>
    %77 = vector.shape_cast %76 : vector<8x16x4xbf16> to vector<128x4xbf16>
    %c0_98 = arith.constant 0 : index
    %c28_99 = arith.constant 28 : index
    %78 = vector.load %arg6[%c0_98, %c28_99] : memref<128x36xbf16, #tpu.memory_space<vmem>>, vector<128x4xbf16>
    tpu.vector_store %arg6[%c0_98, %c28_99], %77 {strides = array<i32>} : memref<128x36xbf16, #tpu.memory_space<vmem>>, vector<128x4xbf16>,
    %c0_100 = arith.constant 0 : index
    %c10_101 = arith.constant 10 : index
    %c2_102 = arith.constant 2 : index
    %c0_103 = arith.constant 0 : index
    %79 = vector.load %arg2[%c0_100, %c10_101, %c2_102, %c0_103] : memref<1x18x18x4xbf16, #tpu.memory_space<vmem>>, vector<1x8x16x4xbf16>
    %80 = vector.shape_cast %79 : vector<1x8x16x4xbf16> to vector<8x16x4xbf16>
    %81 = vector.shape_cast %80 : vector<8x16x4xbf16> to vector<128x4xbf16>
    %c0_104 = arith.constant 0 : index
    %c32_105 = arith.constant 32 : index
    %82 = vector.load %arg6[%c0_104, %c32_105] : memref<128x36xbf16, #tpu.memory_space<vmem>>, vector<128x4xbf16>
    tpu.vector_store %arg6[%c0_104, %c32_105], %81 {strides = array<i32>} : memref<128x36xbf16, #tpu.memory_space<vmem>>, vector<128x4xbf16>,
    %c0_106 = arith.constant 0 : index
    %c0_107 = arith.constant 0 : index
    %83 = vector.load %arg6[%c0_106, %c0_107] : memref<128x36xbf16, #tpu.memory_space<vmem>>, vector<128x36xbf16>
    %c0_108 = arith.constant 0 : index
    %c0_109 = arith.constant 0 : index
    %84 = vector.load %arg3[%c0_108, %c0_109] : memref<36x128xbf16, #tpu.memory_space<vmem>>, vector<36x128xbf16>
    %cst_110 = arith.constant dense<0.000000e+00> : vector<128x128xf32>
    %85 = tpu.matmul %83, %84, %cst_110 {dimension_numbers = #tpu.dot_dimension_numbers<[1], [0], [0], [1], [0, 0, 1, 1], [], []>} : vector<128x36xbf16>, vector<36x128xbf16>, vector<128x128xf32> -> vector<128x128xf32>
    %c0_111 = arith.constant 0 : index
    %c0_112 = arith.constant 0 : index
    %86 = vector.load %arg4[%c0_111, %c0_112] : memref<1x128xf32, #tpu.memory_space<vmem>>, vector<1x128xf32>
    %87 = vector.broadcast %86 : vector<1x128xf32> to vector<128x128xf32>
    %88 = arith.addf %85, %87 : vector<128x128xf32>
    %cst_113 = arith.constant 0.000000e+00 : f32
    %89 = vector.broadcast %cst_113 : f32 to vector<128x128xf32>
    %90 = arith.maximumf %88, %89 : vector<128x128xf32>
    %91 = vector.shape_cast %90 : vector<128x128xf32> to vector<1x8x16x128xf32>
    %92 = arith.truncf %91 : vector<1x8x16x128xf32> to vector<1x8x16x128xbf16>
    %c0_114 = arith.constant 0 : index
    %c8_115 = arith.constant 8 : index
    %c0_116 = arith.constant 0 : index
    %c0_117 = arith.constant 0 : index
    %93 = vector.load %arg5[%c0_114, %c8_115, %c0_116, %c0_117] : memref<1x16x16x128xbf16, #tpu.memory_space<vmem>>, vector<1x8x16x128xbf16>
    tpu.vector_store %arg5[%c0_114, %c8_115, %c0_116, %c0_117], %92 {strides = array<i32>} : memref<1x16x16x128xbf16, #tpu.memory_space<vmem>>, vector<1x8x16x128xbf16>,
    return
  }
  func.func @transform_0(%arg0: i32, %arg1: i32) -> (i32, i32, i32, i32) {
    %c0_i32 = arith.constant 0 : i32
    %c0_i32_0 = arith.constant 0 : i32
    %c0_i32_1 = arith.constant 0 : i32
    %c0_i32_2 = arith.constant 0 : i32
    return %arg0, %c0_i32, %c0_i32_0, %c0_i32_1 : i32, i32, i32, i32
  }
  func.func @transform_1(%arg0: i32, %arg1: i32) -> (i32, i32) {
    %c0_i32 = arith.constant 0 : i32
    %c0_i32_0 = arith.constant 0 : i32
    return %c0_i32, %arg1 : i32, i32
  }
  func.func @transform_2(%arg0: i32, %arg1: i32) -> (i32, i32) {
    %c0_i32 = arith.constant 0 : i32
    %c0_i32_0 = arith.constant 0 : i32
    return %c0_i32, %arg1 : i32, i32
  }
  func.func @transform_3(%arg0: i32, %arg1: i32) -> (i32, i32, i32, i32) {
    %c0_i32 = arith.constant 0 : i32
    %c0_i32_0 = arith.constant 0 : i32
    %c0_i32_1 = arith.constant 0 : i32
    return %arg0, %c0_i32, %c0_i32_0, %arg1 : i32, i32, i32, i32
  }
}

</mosaic_0001>

<llo_original>
// kernel: upsample_block_forward.1
$region0: #{upsample_block_forward.1}
  #allocation0 [shape = 'u32[]', space=smem, size = 0x4, offset = 0x4, fixed_abs, tag = 'smem constant byte address 0x4 - core index']
  #allocation1 [shape = 'u32[144,128]{1,0:T(1,128)}', space=vmem, size = 0x12000, scoped, tag = 'internal scratch']
  #allocation2 [shape = 'bf16[128,36]{1,0:T(16,128)(2,1)}', space=vmem, size = 0x8000, scoped, tag = 'scratch operand']
  %s0 = inlined_call_operand.vmem [shape: bf16[2,18,18,4], index: 0, kind: input, shape index: {}]
  %s1 = inlined_call_operand.vmem [shape: bf16[36,128], index: 1, kind: input, shape index: {}]
  %s2 = inlined_call_operand.vmem [shape: f32[1,128], index: 2, kind: input, shape index: {}]
  %s3 = inlined_call_operand.vmem [shape: bf16[2,16,16,128], index: 3, kind: output, shape index: {}]
  %s4 = sld [smem:[#allocation0]]
  $region45: #{upsample_block_forward.1} parent=0
    _
  %s6 = ssub.s32 1, %s4
  %s7 = scalar_select 0, %s6, %s4
  loop: start=0, step=1, limit=4
  $region2: #{upsample_block_forward.1} parent=0 // loop_pre_header
    _
  $region3: #{upsample_block_forward.1} parent=0 // loop_header
    %s9 = sphi 0, %s13
    %p10 = scmp.ge.s32.totalorder %s9, 4
    %s16 = sphi 0, %s28
    %s17 = sphi 0, %s24
    %s18 = sphi 0, %s16
    %s19 = sphi 0, %s17
    %s20 = sphi 0, %s18
    %s21 = sphi 0, %s19
    %s31 = sphi 0, %s33
    %s34 = sphi 0, %s31
    %s35 = sphi 0, %s34
    %s51 = sphi 0, %s35
    %s57 = sphi 0, %s59
    %s60 = sphi 0, %s57
    %s61 = sphi 0, %s60
    %s77 = sphi 0, %s61
    %s83 = sphi 0, %s85
    %s86 = sphi 0, %s83
    %s87 = sphi 0, %s86
    %s103 = sphi 0, %s87
    %s111 = sphi 0, %s113
    %s114 = sphi 0, %s111
    %s115 = sphi 0, %s114
    %s131 = sphi 0, %s115
  $region4: #{upsample_block_forward.1} parent=0 // loop_header_branch
    %12 = sbr.rel (%p10) target = $region8
  $region5: #{upsample_block_forward.1} parent=0 // loop_body
    %s14 = ssub.s32 %s9, 1
    %s15 = ssub.s32 %s9, 2
    %s22 = sadd.s32 1, %s17
    %p23 = scmp.ge.s32.totalorder %s22, 1
    %s24 = scalar_select %p23, 0, %s22
    %s25 = sadd.s32 1, %s16
    %s26 = scalar_select %p23, %s25, %s16
    %p27 = scmp.ge.s32.totalorder %s26, 2
    %s28 = scalar_select %p27, 0, %s26
    %s29 = ssub.s32 %s16, %s28
    %p30 = scmp.eq.s32.totalorder %s29, 0
    %s32 = sadd.s32 %s31, 1
    %s33 = scalar_select %p30, %s31, %s32
    %p36 = pneg %p30
    %p37 = scmp.eq.s32.totalorder %s9, 1
    %p38 = por %p36, %p37
    %p39 = scmp.ne.s32.totalorder %s31, %s34
    %p40 = scmp.eq.s32.totalorder %s9, 0
    %p41 = por %p39, %p40
    %p42 = scmp.ne.s32.totalorder %s31, %s34
    %p43 = scmp.eq.s32.totalorder %s14, 1
    %p44 = por %p42, %p43
    %p45 = scmp.ne.s32.totalorder %s34, %s35
    %p46 = scmp.eq.s32.totalorder %s14, 0
    %p47 = por %p45, %p46
    %p48 = scmp.ne.s32.totalorder %s34, %s35
    %p49 = scmp.eq.s32.totalorder %s15, 1
    %p50 = por %p48, %p49
    %p52 = scmp.ne.s32.totalorder %s35, %s51
    %p53 = scmp.eq.s32.totalorder %s15, 0
    %p54 = por %p52, %p53
    %s55 = ssub.s32 %s17, %s24
    %p56 = scmp.eq.s32.totalorder %s55, 0
    %s58 = sadd.s32 %s57, 1
    %s59 = scalar_select %p56, %s57, %s58
    %p62 = pneg %p56
    %p63 = scmp.eq.s32.totalorder %s9, 1
    %p64 = por %p62, %p63
    %p65 = scmp.ne.s32.totalorder %s57, %s60
    %p66 = scmp.eq.s32.totalorder %s9, 0
    %p67 = por %p65, %p66
    %p68 = scmp.ne.s32.totalorder %s57, %s60
    %p69 = scmp.eq.s32.totalorder %s14, 1
    %p70 = por %p68, %p69
    %p71 = scmp.ne.s32.totalorder %s60, %s61
    %p72 = scmp.eq.s32.totalorder %s14, 0
    %p73 = por %p71, %p72
    %p74 = scmp.ne.s32.totalorder %s60, %s61
    %p75 = scmp.eq.s32.totalorder %s15, 1
    %p76 = por %p74, %p75
    %p78 = scmp.ne.s32.totalorder %s61, %s77
    %p79 = scmp.eq.s32.totalorder %s15, 0
    %p80 = por %p78, %p79
    %s81 = ssub.s32 %s17, %s24
    %p82 = scmp.eq.s32.totalorder %s81, 0
    %s84 = sadd.s32 %s83, 1
    %s85 = scalar_select %p82, %s83, %s84
    %p88 = pneg %p82
    %p89 = scmp.eq.s32.totalorder %s9, 1
    %p90 = por %p88, %p89
    %p91 = scmp.ne.s32.totalorder %s83, %s86
    %p92 = scmp.eq.s32.totalorder %s9, 0
    %p93 = por %p91, %p92
    %p94 = scmp.ne.s32.totalorder %s83, %s86
    %p95 = scmp.eq.s32.totalorder %s14, 1
    %p96 = por %p94, %p95
    %p97 = scmp.ne.s32.totalorder %s86, %s87
    %p98 = scmp.eq.s32.totalorder %s14, 0
    %p99 = por %p97, %p98
    %p100 = scmp.ne.s32.totalorder %s86, %s87
    %p101 = scmp.eq.s32.totalorder %s15, 1
    %p102 = por %p100, %p101
    %p104 = scmp.ne.s32.totalorder %s87, %s103
    %p105 = scmp.eq.s32.totalorder %s15, 0
    %p106 = por %p104, %p105
    %s107 = ssub.s32 %s16, %s28
    %s108 = ssub.s32 %s17, %s24
    %s109 = sor.u32 %s107, %s108
    %p110 = scmp.eq.s32.totalorder %s109, 0
    %s112 = sadd.s32 %s111, 1
    %s113 = scalar_select %p110, %s111, %s112
    %p116 = pneg %p110
    %p117 = scmp.eq.s32.totalorder %s9, 1
    %p118 = por %p116, %p117
    %p119 = scmp.ne.s32.totalorder %s111, %s114
    %p120 = scmp.eq.s32.totalorder %s9, 0
    %p121 = por %p119, %p120
    %p122 = scmp.ne.s32.totalorder %s111, %s114
    %p123 = scmp.eq.s32.totalorder %s14, 1
    %p124 = por %p122, %p123
    %p125 = scmp.ne.s32.totalorder %s114, %s115
    %p126 = scmp.eq.s32.totalorder %s14, 0
    %p127 = por %p125, %p126
    %p128 = scmp.ne.s32.totalorder %s114, %s115
    %p129 = scmp.eq.s32.totalorder %s15, 1
    %p130 = por %p128, %p129
    %p132 = scmp.ne.s32.totalorder %s115, %s131
    %p133 = scmp.eq.s32.totalorder %s15, 0
    %p134 = por %p132, %p133
    %p135 = scmp.le.s32.totalorder 1, %s9
    %p136 = scmp.lt.s32.totalorder %s9, 3
    %p137 = pnand %p135, %p136
    %p138 = pneg %p137
    // Predicated region
    $region9: #{upsample_block_forward.1} parent=5 // pred_check
      _
    $region10: #{upsample_block_forward.1} parent=5 // pred_check_branch
      %140 = sbr.rel (%p137) target = $region12
    $region11: #{upsample_block_forward.1} parent=5 // pred_region
      %s141 = ssub.s32 %s9, 1
      // Predicated region
      $region13: #{upsample_block_forward.1} parent=11 // pred_check
        %p142 = pneg %p73
      $region14: #{upsample_block_forward.1} parent=11 // pred_check_branch
        %144 = sbr.rel (%p142) target = $region16
      $region15: #{upsample_block_forward.1} parent=11 // pred_region
        %p145 = scmp.lt.s32.totalorder %s19, 0
        %s146 = scalar_select %p145, %s19, 0
        %s147 = smul.addr %s146, 4
        %s148 = scalar_lea.vmem %s1, %s147
      $region16: #{upsample_block_forward.1} parent=11 // pred_fallthru
        _
      // Predicated region
      $region17: #{upsample_block_forward.1} parent=11 // pred_check
        %p149 = pneg %p99
      $region18: #{upsample_block_forward.1} parent=11 // pred_check_branch
        %151 = sbr.rel (%p149) target = $region20
      $region19: #{upsample_block_forward.1} parent=11 // pred_region
        %p152 = scmp.lt.s32.totalorder %s19, 0
        %s153 = scalar_select %p152, %s19, 0
        %s154 = scalar_lea.vmem %s2, %s153
      $region20: #{upsample_block_forward.1} parent=11 // pred_fallthru
        _
    $region12: #{upsample_block_forward.1} parent=5 // pred_fallthru
      _
    %p155 = scmp.lt.s32.totalorder %s9, 2
    // Predicated region
    $region21: #{upsample_block_forward.1} parent=5 // pred_check
      %p156 = pneg %p155
    $region22: #{upsample_block_forward.1} parent=5 // pred_check_branch
      %158 = sbr.rel (%p156) target = $region24
    $region23: #{upsample_block_forward.1} parent=5 // pred_region
      // Predicated region
      $region25: #{upsample_block_forward.1} parent=23 // pred_check
        %p159 = pneg %p41
      $region26: #{upsample_block_forward.1} parent=23 // pred_check_branch
        %161 = sbr.rel (%p159) target = $region28
      $region27: #{upsample_block_forward.1} parent=23 // pred_region
        %p162 = scmp.lt.s32.totalorder %s16, 1
        %s163 = scalar_select %p162, %s16, 1
        %s164 = smul.addr %s163, 54
        %s165 = smul.addr %s164, 4
        %s166 = scalar_lea.vmem %s0, %s165
      $region28: #{upsample_block_forward.1} parent=23 // pred_fallthru
        _
    $region24: #{upsample_block_forward.1} parent=5 // pred_fallthru
      _
    %p167 = scmp.le.s32.totalorder 1, %s9
    %p168 = scmp.lt.s32.totalorder %s9, 3
    %p169 = pnand %p167, %p168
    %p170 = pneg %p169
    // Predicated region
    $region29: #{upsample_block_forward.1} parent=5 // pred_check
      _
    $region30: #{upsample_block_forward.1} parent=5 // pred_check_branch
      %172 = sbr.rel (%p169) target = $region32
    $region31: #{upsample_block_forward.1} parent=5 // pred_region
      %s173 = ssub.s32 %s9, 1
      %p174 = scmp.lt.s32.totalorder %s18, 1
      %s175 = scalar_select %p174, %s18, 1
      %s176 = smul.addr %s175, 54
      %s177 = smul.addr %s176, 4
      %s178 = scalar_lea.vmem %s0, %s177
      %p179 = pneg %p47
      %p180 = pneg %p44
      %p181 = scmp.lt.s32.totalorder %s19, 0
      %s182 = scalar_select %p181, %s19, 0
      %s183 = smul.addr %s182, 4
      %s184 = scalar_lea.vmem %s1, %s183
      %p185 = pneg %p73
      %p186 = pneg %p70
      %p187 = scmp.lt.s32.totalorder %s19, 0
      %s188 = scalar_select %p187, %s19, 0
      %s189 = scalar_lea.vmem %s2, %s188
      %p190 = pneg %p99
      %p191 = pneg %p96
      %p192 = pneg %p127
      %p193 = pneg %p124
      %p194 = scmp.lt.s32.totalorder %s18, 1
      %s195 = scalar_select %p194, %s18, 1
      %p196 = scmp.lt.s32.totalorder %s19, 0
      %s197 = scalar_select %p196, %s19, 0
      %s198 = smul.addr %s195, 32
      %s199 = sadd.s32 %s197, %s198
      %s200 = smul.addr %s199, 4
      %s201 = scalar_lea.vmem %s3, %s200
      %p202 = scmp.lt.s32.totalorder %s18, 1
      %s203 = scalar_select %p202, %s18, 1
      %s204 = smul.addr %s203, 54
      %s205 = smul.addr %s204, 4
      %s206 = scalar_lea.vmem %s0, %s205
      %p207 = scmp.lt.s32.totalorder %s19, 0
      %s208 = scalar_select %p207, %s19, 0
      %s209 = smul.addr %s208, 4
      %s210 = scalar_lea.vmem %s1, %s209
      %p211 = scmp.lt.s32.totalorder %s19, 0
      %s212 = scalar_select %p211, %s19, 0
      %s213 = scalar_lea.vmem %s2, %s212
      %p214 = scmp.lt.s32.totalorder %s18, 1
      %s215 = scalar_select %p214, %s18, 1
      %p216 = scmp.lt.s32.totalorder %s19, 0
      %s217 = scalar_select %p216, %s19, 0
      %s218 = smul.addr %s215, 32
      %s219 = sadd.s32 %s217, %s218
      %s220 = smul.addr %s219, 4
      %s221 = scalar_lea.vmem %s3, %s220
      %v223 = vld [vmem:[%s206] sm:$0xf]
      %v224 = vld [vmem:[%s206 + $0x4] sm:$0xf]
      %v225 = vld [vmem:[%s206 + $0xc] sm:$0xf]
      %v226 = vld [vmem:[%s206 + $0x10] sm:$0xf]
      %v227 = vld [vmem:[%s206 + $0x18] sm:$0xf]
      %v228 = vld [vmem:[%s206 + $0x1c] sm:$0xf]
      %v229 = vld [vmem:[%s206 + $0x24] sm:$0xf]
      %v230 = vld [vmem:[%s206 + $0x28] sm:$0xf]
      %v231 = vld [vmem:[%s206 + $0x30] sm:$0xf]
      %v232 = vld [vmem:[%s206 + $0x34] sm:$0xf]
      %v233 = vld [vmem:[%s206 + $0x3c] sm:$0xf]
      %v234 = vld [vmem:[%s206 + $0x40] sm:$0xf]
      %v235 = vld [vmem:[%s206 + $0x48] sm:$0xf]
      %v236 = vld [vmem:[%s206 + $0x4c] sm:$0xf]
      %v237 = vld [vmem:[%s206 + $0x54] sm:$0xf]
      %v238 = vld [vmem:[%s206 + $0x58] sm:$0xf]
      %v255 = vunpack.c.l.b16 %v223
      %v256 = vunpack.c.l.b16 %v224
      %v257 = vunpack.c.l.b16 %v225
      %v258 = vunpack.c.l.b16 %v226
      %v259 = vunpack.c.l.b16 %v227
      %v260 = vunpack.c.l.b16 %v228
      %v261 = vunpack.c.l.b16 %v229
      %v262 = vunpack.c.l.b16 %v230
      %v263 = vunpack.c.l.b16 %v231
      %v264 = vunpack.c.l.b16 %v232
      %v265 = vunpack.c.l.b16 %v233
      %v266 = vunpack.c.l.b16 %v234
      %v267 = vunpack.c.l.b16 %v235
      %v268 = vunpack.c.l.b16 %v236
      %v269 = vunpack.c.l.b16 %v237
      %v270 = vunpack.c.l.b16 %v238
      %v271 = vpack.c.b16 %v256, %v255
      %v272 = vpack.c.b16 %v258, %v257
      %v273 = vpack.c.b16 %v260, %v259
      %v274 = vpack.c.b16 %v262, %v261
      %v275 = vpack.c.b16 %v264, %v263
      %v276 = vpack.c.b16 %v266, %v265
      %v277 = vpack.c.b16 %v268, %v267
      %v278 = vpack.c.b16 %v270, %v269
      %vm287 = vcmask 31744
      %288 = vst.msk [vmem:[#allocation2] sm:$0xff] %vm287, %v271
      %289 = vst.msk [vmem:[#allocation2 + $0x8] sm:$0xff] %vm287, %v272
      %290 = vst.msk [vmem:[#allocation2 + $0x10] sm:$0xff] %vm287, %v273
      %291 = vst.msk [vmem:[#allocation2 + $0x18] sm:$0xff] %vm287, %v274
      %292 = vst.msk [vmem:[#allocation2 + $0x20] sm:$0xff] %vm287, %v275
      %293 = vst.msk [vmem:[#allocation2 + $0x28] sm:$0xff] %vm287, %v276
      %294 = vst.msk [vmem:[#allocation2 + $0x30] sm:$0xff] %vm287, %v277
      %295 = vst.msk [vmem:[#allocation2 + $0x38] sm:$0xff] %vm287, %v278
      %v296 = vld [vmem:[%s206] sm:$0xf]
      %v297 = vld [vmem:[%s206 + $0x4] sm:$0xf]
      %v298 = vld [vmem:[%s206 + $0x8] sm:$0x1]
      %v299 = vld [vmem:[%s206 + $0xc] sm:$0xf]
      %v300 = vld [vmem:[%s206 + $0x10] sm:$0xf]
      %v301 = vld [vmem:[%s206 + $0x14] sm:$0x1]
      %v302 = vld [vmem:[%s206 + $0x18] sm:$0xf]
      %v303 = vld [vmem:[%s206 + $0x1c] sm:$0xf]
      %v304 = vld [vmem:[%s206 + $0x20] sm:$0x1]
      %v305 = vld [vmem:[%s206 + $0x24] sm:$0xf]
      %v306 = vld [vmem:[%s206 + $0x28] sm:$0xf]
      %v307 = vld [vmem:[%s206 + $0x2c] sm:$0x1]
      %v308 = vld [vmem:[%s206 + $0x30] sm:$0xf]
      %v309 = vld [vmem:[%s206 + $0x34] sm:$0xf]
      %v310 = vld [vmem:[%s206 + $0x38] sm:$0x1]
      %v311 = vld [vmem:[%s206 + $0x3c] sm:$0xf]
      %v312 = vld [vmem:[%s206 + $0x40] sm:$0xf]
      %v313 = vld [vmem:[%s206 + $0x44] sm:$0x1]
      %v314 = vld [vmem:[%s206 + $0x48] sm:$0xf]
      %v315 = vld [vmem:[%s206 + $0x4c] sm:$0xf]
      %v316 = vld [vmem:[%s206 + $0x50] sm:$0x1]
      %v317 = vld [vmem:[%s206 + $0x54] sm:$0xf]
      %v318 = vld [vmem:[%s206 + $0x58] sm:$0xf]
      %v319 = vld [vmem:[%s206 + $0x5c] sm:$0x1]
      %vm320 = vsmask.f32 3328
      %vm321 = vsmask.f32 7440
      %vm322 = vmor %vm320, %vm321
      %v324 = vshrl.u32 %v296, 16
      %v326 = vrot.slane %v324, 4
      %v327 = vshll.u32 %v296, 16
      %v329 = vrot.slane %v327, 5
      %v330 = vor.u32 %v326, %v329
      %v331 = vrot.slane %v330, 4
      %v333 = vshll.u32 %v297, 16
      %v335 = vrot.slane %v333, 5
      %v336 = vsel %vm322, %v331, %v335
      %v337 = vshrl.u32 %v297, 16
      %v339 = vrot.slane %v337, 4
      %v340 = vor.u32 %v339, %v335
      %v341 = vrot.slane %v340, 4
      %v343 = vshll.u32 %v298, 16
      %v345 = vrot.slane %v343, 5
      %v346 = vsel %vm322, %v341, %v345
      %v348 = vshrl.u32 %v299, 16
      %v350 = vrot.slane %v348, 4
      %v351 = vshll.u32 %v299, 16
      %v353 = vrot.slane %v351, 5
      %v354 = vor.u32 %v350, %v353
      %v355 = vrot.slane %v354, 4
      %v357 = vshll.u32 %v300, 16
      %v359 = vrot.slane %v357, 5
      %v360 = vsel %vm322, %v355, %v359
      %v361 = vshrl.u32 %v300, 16
      %v363 = vrot.slane %v361, 4
      %v364 = vor.u32 %v363, %v359
      %v365 = vrot.slane %v364, 4
      %v367 = vshll.u32 %v301, 16
      %v369 = vrot.slane %v367, 5
      %v370 = vsel %vm322, %v365, %v369
      %v372 = vshrl.u32 %v302, 16
      %v374 = vrot.slane %v372, 4
      %v375 = vshll.u32 %v302, 16
      %v377 = vrot.slane %v375, 5
      %v378 = vor.u32 %v374, %v377
      %v379 = vrot.slane %v378, 4
      %v381 = vshll.u32 %v303, 16
      %v383 = vrot.slane %v381, 5
      %v384 = vsel %vm322, %v379, %v383
      %v385 = vshrl.u32 %v303, 16
      %v387 = vrot.slane %v385, 4
      %v388 = vor.u32 %v387, %v383
      %v389 = vrot.slane %v388, 4
      %v391 = vshll.u32 %v304, 16
      %v393 = vrot.slane %v391, 5
      %v394 = vsel %vm322, %v389, %v393
      %v396 = vshrl.u32 %v305, 16
      %v398 = vrot.slane %v396, 4
      %v399 = vshll.u32 %v305, 16
      %v401 = vrot.slane %v399, 5
      %v402 = vor.u32 %v398, %v401
      %v403 = vrot.slane %v402, 4
      %v405 = vshll.u32 %v306, 16
      %v407 = vrot.slane %v405, 5
      %v408 = vsel %vm322, %v403, %v407
      %v409 = vshrl.u32 %v306, 16
      %v411 = vrot.slane %v409, 4
      %v412 = vor.u32 %v411, %v407
      %v413 = vrot.slane %v412, 4
      %v415 = vshll.u32 %v307, 16
      %v417 = vrot.slane %v415, 5
      %v418 = vsel %vm322, %v413, %v417
      %v420 = vshrl.u32 %v308, 16
      %v422 = vrot.slane %v420, 4
      %v423 = vshll.u32 %v308, 16
      %v425 = vrot.slane %v423, 5
      %v426 = vor.u32 %v422, %v425
      %v427 = vrot.slane %v426, 4
      %v429 = vshll.u32 %v309, 16
      %v431 = vrot.slane %v429, 5
      %v432 = vsel %vm322, %v427, %v431
      %v433 = vshrl.u32 %v309, 16
      %v435 = vrot.slane %v433, 4
      %v436 = vor.u32 %v435, %v431
      %v437 = vrot.slane %v436, 4
      %v439 = vshll.u32 %v310, 16
      %v441 = vrot.slane %v439, 5
      %v442 = vsel %vm322, %v437, %v441
      %v444 = vshrl.u32 %v311, 16
      %v446 = vrot.slane %v444, 4
      %v447 = vshll.u32 %v311, 16
      %v449 = vrot.slane %v447, 5
      %v450 = vor.u32 %v446, %v449
      %v451 = vrot.slane %v450, 4
      %v453 = vshll.u32 %v312, 16
      %v455 = vrot.slane %v453, 5
      %v456 = vsel %vm322, %v451, %v455
      %v457 = vshrl.u32 %v312, 16
      %v459 = vrot.slane %v457, 4
      %v460 = vor.u32 %v459, %v455
      %v461 = vrot.slane %v460, 4
      %v463 = vshll.u32 %v313, 16
      %v465 = vrot.slane %v463, 5
      %v466 = vsel %vm322, %v461, %v465
      %v468 = vshrl.u32 %v314, 16
      %v470 = vrot.slane %v468, 4
      %v471 = vshll.u32 %v314, 16
      %v473 = vrot.slane %v471, 5
      %v474 = vor.u32 %v470, %v473
      %v475 = vrot.slane %v474, 4
      %v477 = vshll.u32 %v315, 16
      %v479 = vrot.slane %v477, 5
      %v480 = vsel %vm322, %v475, %v479
      %v481 = vshrl.u32 %v315, 16
      %v483 = vrot.slane %v481, 4
      %v484 = vor.u32 %v483, %v479
      %v485 = vrot.slane %v484, 4
      %v487 = vshll.u32 %v316, 16
      %v489 = vrot.slane %v487, 5
      %v490 = vsel %vm322, %v485, %v489
      %v492 = vshrl.u32 %v317, 16
      %v494 = vrot.slane %v492, 4
      %v495 = vshll.u32 %v317, 16
      %v497 = vrot.slane %v495, 5
      %v498 = vor.u32 %v494, %v497
      %v499 = vrot.slane %v498, 4
      %v501 = vshll.u32 %v318, 16
      %v503 = vrot.slane %v501, 5
      %v504 = vsel %vm322, %v499, %v503
      %v505 = vshrl.u32 %v318, 16
      %v507 = vrot.slane %v505, 4
      %v508 = vor.u32 %v507, %v503
      %v509 = vrot.slane %v508, 4
      %v511 = vshll.u32 %v319, 16
      %v513 = vrot.slane %v511, 5
      %v514 = vsel %vm322, %v509, %v513
      %v515 = vunpack.c.l.b16 %v336
      %v516 = vunpack.c.l.b16 %v346
      %v517 = vunpack.c.l.b16 %v360
      %v518 = vunpack.c.l.b16 %v370
      %v519 = vunpack.c.l.b16 %v384
      %v520 = vunpack.c.l.b16 %v394
      %v521 = vunpack.c.l.b16 %v408
      %v522 = vunpack.c.l.b16 %v418
      %v523 = vunpack.c.l.b16 %v432
      %v524 = vunpack.c.l.b16 %v442
      %v525 = vunpack.c.l.b16 %v456
      %v526 = vunpack.c.l.b16 %v466
      %v527 = vunpack.c.l.b16 %v480
      %v528 = vunpack.c.l.b16 %v490
      %v529 = vunpack.c.l.b16 %v504
      %v530 = vunpack.c.l.b16 %v514
      %v531 = vpack.c.b16 %v516, %v515
      %v532 = vpack.c.b16 %v518, %v517
      %v533 = vpack.c.b16 %v520, %v519
      %v534 = vpack.c.b16 %v522, %v521
      %v535 = vpack.c.b16 %v524, %v523
      %v536 = vpack.c.b16 %v526, %v525
      %v537 = vpack.c.b16 %v528, %v527
      %v538 = vpack.c.b16 %v530, %v529
      %539 = vrot.lane.b32.xlu0 %v531, 4
      %v540 = vpop.permute.xlu0 %539
      %541 = vrot.lane.b32.xlu0 %v532, 4
      %v542 = vpop.permute.xlu0 %541
      %543 = vrot.lane.b32.xlu0 %v533, 4
      %v544 = vpop.permute.xlu0 %543
      %545 = vrot.lane.b32.xlu0 %v534, 4
      %v546 = vpop.permute.xlu0 %545
      %547 = vrot.lane.b32.xlu0 %v535, 4
      %v548 = vpop.permute.xlu0 %547
      %549 = vrot.lane.b32.xlu0 %v536, 4
      %v550 = vpop.permute.xlu0 %549
      %551 = vrot.lane.b32.xlu0 %v537, 4
      %v552 = vpop.permute.xlu0 %551
      %553 = vrot.lane.b32.xlu0 %v538, 4
      %v554 = vpop.permute.xlu0 %553
      %vm563 = vcmask 64544
      %564 = vst.msk [vmem:[#allocation2] sm:$0xff] %vm563, %v540
      %565 = vst.msk [vmem:[#allocation2 + $0x8] sm:$0xff] %vm563, %v542
      %566 = vst.msk [vmem:[#allocation2 + $0x10] sm:$0xff] %vm563, %v544
      %567 = vst.msk [vmem:[#allocation2 + $0x18] sm:$0xff] %vm563, %v546
      %568 = vst.msk [vmem:[#allocation2 + $0x20] sm:$0xff] %vm563, %v548
      %569 = vst.msk [vmem:[#allocation2 + $0x28] sm:$0xff] %vm563, %v550
      %570 = vst.msk [vmem:[#allocation2 + $0x30] sm:$0xff] %vm563, %v552
      %571 = vst.msk [vmem:[#allocation2 + $0x38] sm:$0xff] %vm563, %v554
      %v572 = vld [vmem:[%s206] sm:$0xe]
      %v573 = vld [vmem:[%s206 + $0x4] sm:$0xf]
      %v574 = vld [vmem:[%s206 + $0x8] sm:$0x1]
      %v575 = vld [vmem:[%s206 + $0xc] sm:$0xe]
      %v576 = vld [vmem:[%s206 + $0x10] sm:$0xf]
      %v577 = vld [vmem:[%s206 + $0x14] sm:$0x1]
      %v578 = vld [vmem:[%s206 + $0x18] sm:$0xe]
      %v579 = vld [vmem:[%s206 + $0x1c] sm:$0xf]
      %v580 = vld [vmem:[%s206 + $0x20] sm:$0x1]
      %v581 = vld [vmem:[%s206 + $0x24] sm:$0xe]
      %v582 = vld [vmem:[%s206 + $0x28] sm:$0xf]
      %v583 = vld [vmem:[%s206 + $0x2c] sm:$0x1]
      %v584 = vld [vmem:[%s206 + $0x30] sm:$0xe]
      %v585 = vld [vmem:[%s206 + $0x34] sm:$0xf]
      %v586 = vld [vmem:[%s206 + $0x38] sm:$0x1]
      %v587 = vld [vmem:[%s206 + $0x3c] sm:$0xe]
      %v588 = vld [vmem:[%s206 + $0x40] sm:$0xf]
      %v589 = vld [vmem:[%s206 + $0x44] sm:$0x1]
      %v590 = vld [vmem:[%s206 + $0x48] sm:$0xe]
      %v591 = vld [vmem:[%s206 + $0x4c] sm:$0xf]
      %v592 = vld [vmem:[%s206 + $0x50] sm:$0x1]
      %v593 = vld [vmem:[%s206 + $0x54] sm:$0xe]
      %v594 = vld [vmem:[%s206 + $0x58] sm:$0xf]
      %v595 = vld [vmem:[%s206 + $0x5c] sm:$0x1]
      %vm620 = vcmask 1042432
      %vm621 = vcmask 1046532
      %vm622 = vmor %vm620, %vm621
      %v623 = vrot.slane %v572, 5
      %v624 = vrot.slane %v623, 4
      %v625 = vrot.slane %v573, 5
      %v626 = vsel %vm622, %v624, %v625
      %v627 = vrot.slane %v625, 4
      %v628 = vrot.slane %v574, 5
      %v629 = vsel %vm622, %v627, %v628
      %v630 = vrot.slane %v575, 5
      %v631 = vrot.slane %v630, 4
      %v632 = vrot.slane %v576, 5
      %v633 = vsel %vm622, %v631, %v632
      %v634 = vrot.slane %v632, 4
      %v635 = vrot.slane %v577, 5
      %v636 = vsel %vm622, %v634, %v635
      %v637 = vrot.slane %v578, 5
      %v638 = vrot.slane %v637, 4
      %v639 = vrot.slane %v579, 5
      %v640 = vsel %vm622, %v638, %v639
      %v641 = vrot.slane %v639, 4
      %v642 = vrot.slane %v580, 5
      %v643 = vsel %vm622, %v641, %v642
      %v644 = vrot.slane %v581, 5
      %v645 = vrot.slane %v644, 4
      %v646 = vrot.slane %v582, 5
      %v647 = vsel %vm622, %v645, %v646
      %v648 = vrot.slane %v646, 4
      %v649 = vrot.slane %v583, 5
      %v650 = vsel %vm622, %v648, %v649
      %v651 = vrot.slane %v584, 5
      %v652 = vrot.slane %v651, 4
      %v653 = vrot.slane %v585, 5
      %v654 = vsel %vm622, %v652, %v653
      %v655 = vrot.slane %v653, 4
      %v656 = vrot.slane %v586, 5
      %v657 = vsel %vm622, %v655, %v656
      %v658 = vrot.slane %v587, 5
      %v659 = vrot.slane %v658, 4
      %v660 = vrot.slane %v588, 5
      %v661 = vsel %vm622, %v659, %v660
      %v662 = vrot.slane %v660, 4
      %v663 = vrot.slane %v589, 5
      %v664 = vsel %vm622, %v662, %v663
      %v665 = vrot.slane %v590, 5
      %v666 = vrot.slane %v665, 4
      %v667 = vrot.slane %v591, 5
      %v668 = vsel %vm622, %v666, %v667
      %v669 = vrot.slane %v667, 4
      %v670 = vrot.slane %v592, 5
      %v671 = vsel %vm622, %v669, %v670
      %v672 = vrot.slane %v593, 5
      %v673 = vrot.slane %v672, 4
      %v674 = vrot.slane %v594, 5
      %v675 = vsel %vm622, %v673, %v674
      %v676 = vrot.slane %v674, 4
      %v677 = vrot.slane %v595, 5
      %v678 = vsel %vm622, %v676, %v677
      %v679 = vunpack.c.l.b16 %v626
      %v680 = vunpack.c.l.b16 %v629
      %v681 = vunpack.c.l.b16 %v633
      %v682 = vunpack.c.l.b16 %v636
      %v683 = vunpack.c.l.b16 %v640
      %v684 = vunpack.c.l.b16 %v643
      %v685 = vunpack.c.l.b16 %v647
      %v686 = vunpack.c.l.b16 %v650
      %v687 = vunpack.c.l.b16 %v654
      %v688 = vunpack.c.l.b16 %v657
      %v689 = vunpack.c.l.b16 %v661
      %v690 = vunpack.c.l.b16 %v664
      %v691 = vunpack.c.l.b16 %v668
      %v692 = vunpack.c.l.b16 %v671
      %v693 = vunpack.c.l.b16 %v675
      %v694 = vunpack.c.l.b16 %v678
      %v695 = vpack.c.b16 %v680, %v679
      %v696 = vpack.c.b16 %v682, %v681
      %v697 = vpack.c.b16 %v684, %v683
      %v698 = vpack.c.b16 %v686, %v685
      %v699 = vpack.c.b16 %v688, %v687
      %v700 = vpack.c.b16 %v690, %v689
      %v701 = vpack.c.b16 %v692, %v691
      %v702 = vpack.c.b16 %v694, %v693
      %703 = vrot.lane.b32.xlu0 %v695, 8
      %v704 = vpop.permute.xlu0 %703
      %705 = vrot.lane.b32.xlu0 %v696, 8
      %v706 = vpop.permute.xlu0 %705
      %707 = vrot.lane.b32.xlu0 %v697, 8
      %v708 = vpop.permute.xlu0 %707
      %709 = vrot.lane.b32.xlu0 %v698, 8
      %v710 = vpop.permute.xlu0 %709
      %711 = vrot.lane.b32.xlu0 %v699, 8
      %v712 = vpop.permute.xlu0 %711
      %713 = vrot.lane.b32.xlu0 %v700, 8
      %v714 = vpop.permute.xlu0 %713
      %715 = vrot.lane.b32.xlu0 %v701, 8
      %v716 = vpop.permute.xlu0 %715
      %717 = vrot.lane.b32.xlu0 %v702, 8
      %v718 = vpop.permute.xlu0 %717
      %vm727 = vcmask 97344
      %728 = vst.msk [vmem:[#allocation2] sm:$0xff] %vm727, %v704
      %729 = vst.msk [vmem:[#allocation2 + $0x8] sm:$0xff] %vm727, %v706
      %730 = vst.msk [vmem:[#allocation2 + $0x10] sm:$0xff] %vm727, %v708
      %731 = vst.msk [vmem:[#allocation2 + $0x18] sm:$0xff] %vm727, %v710
      %732 = vst.msk [vmem:[#allocation2 + $0x20] sm:$0xff] %vm727, %v712
      %733 = vst.msk [vmem:[#allocation2 + $0x28] sm:$0xff] %vm727, %v714
      %734 = vst.msk [vmem:[#allocation2 + $0x30] sm:$0xff] %vm727, %v716
      %735 = vst.msk [vmem:[#allocation2 + $0x38] sm:$0xff] %vm727, %v718
      %s736 = scalar_lea.vmem %s206, 12
      %v737 = vld [vmem:[%s736] sm:$0xf]
      %v738 = vld [vmem:[%s736 + $0x4] sm:$0xf]
      %v739 = vld [vmem:[%s736 + $0xc] sm:$0xf]
      %v740 = vld [vmem:[%s736 + $0x10] sm:$0xf]
      %v741 = vld [vmem:[%s736 + $0x18] sm:$0xf]
      %v742 = vld [vmem:[%s736 + $0x1c] sm:$0xf]
      %v743 = vld [vmem:[%s736 + $0x24] sm:$0xf]
      %v744 = vld [vmem:[%s736 + $0x28] sm:$0xf]
      %v745 = vld [vmem:[%s736 + $0x30] sm:$0xf]
      %v746 = vld [vmem:[%s736 + $0x34] sm:$0xf]
      %v747 = vld [vmem:[%s736 + $0x3c] sm:$0xf]
      %v748 = vld [vmem:[%s736 + $0x40] sm:$0xf]
      %v749 = vld [vmem:[%s736 + $0x48] sm:$0xf]
      %v750 = vld [vmem:[%s736 + $0x4c] sm:$0xf]
      %v751 = vld [vmem:[%s736 + $0x54] sm:$0xf]
      %v752 = vld [vmem:[%s736 + $0x58] sm:$0xf]
      %v769 = vunpack.c.l.b16 %v737
      %v770 = vunpack.c.l.b16 %v738
      %v771 = vunpack.c.l.b16 %v739
      %v772 = vunpack.c.l.b16 %v740
      %v773 = vunpack.c.l.b16 %v741
      %v774 = vunpack.c.l.b16 %v742
      %v775 = vunpack.c.l.b16 %v743
      %v776 = vunpack.c.l.b16 %v744
      %v777 = vunpack.c.l.b16 %v745
      %v778 = vunpack.c.l.b16 %v746
      %v779 = vunpack.c.l.b16 %v747
      %v780 = vunpack.c.l.b16 %v748
      %v781 = vunpack.c.l.b16 %v749
      %v782 = vunpack.c.l.b16 %v750
      %v783 = vunpack.c.l.b16 %v751
      %v784 = vunpack.c.l.b16 %v752
      %v785 = vpack.c.b16 %v770, %v769
      %v786 = vpack.c.b16 %v772, %v771
      %v787 = vpack.c.b16 %v774, %v773
      %v788 = vpack.c.b16 %v776, %v775
      %v789 = vpack.c.b16 %v778, %v777
      %v790 = vpack.c.b16 %v780, %v779
      %v791 = vpack.c.b16 %v782, %v781
      %v792 = vpack.c.b16 %v784, %v783
      %793 = vrot.lane.b32.xlu0 %v785, 12
      %v794 = vpop.permute.xlu0 %793
      %795 = vrot.lane.b32.xlu0 %v786, 12
      %v796 = vpop.permute.xlu0 %795
      %797 = vrot.lane.b32.xlu0 %v787, 12
      %v798 = vpop.permute.xlu0 %797
      %799 = vrot.lane.b32.xlu0 %v788, 12
      %v800 = vpop.permute.xlu0 %799
      %801 = vrot.lane.b32.xlu0 %v789, 12
      %v802 = vpop.permute.xlu0 %801
      %803 = vrot.lane.b32.xlu0 %v790, 12
      %v804 = vpop.permute.xlu0 %803
      %805 = vrot.lane.b32.xlu0 %v791, 12
      %v806 = vpop.permute.xlu0 %805
      %807 = vrot.lane.b32.xlu0 %v792, 12
      %v808 = vpop.permute.xlu0 %807
      %vm817 = vcmask 130144
      %818 = vst.msk [vmem:[#allocation2] sm:$0xff] %vm817, %v794
      %819 = vst.msk [vmem:[#allocation2 + $0x8] sm:$0xff] %vm817, %v796
      %820 = vst.msk [vmem:[#allocation2 + $0x10] sm:$0xff] %vm817, %v798
      %821 = vst.msk [vmem:[#allocation2 + $0x18] sm:$0xff] %vm817, %v800
      %822 = vst.msk [vmem:[#allocation2 + $0x20] sm:$0xff] %vm817, %v802
      %823 = vst.msk [vmem:[#allocation2 + $0x28] sm:$0xff] %vm817, %v804
      %824 = vst.msk [vmem:[#allocation2 + $0x30] sm:$0xff] %vm817, %v806
      %825 = vst.msk [vmem:[#allocation2 + $0x38] sm:$0xff] %vm817, %v808
      %v826 = vld [vmem:[%s736] sm:$0xf]
      %v827 = vld [vmem:[%s736 + $0x4] sm:$0xf]
      %v828 = vld [vmem:[%s736 + $0x8] sm:$0x1]
      %v829 = vld [vmem:[%s736 + $0xc] sm:$0xf]
      %v830 = vld [vmem:[%s736 + $0x10] sm:$0xf]
      %v831 = vld [vmem:[%s736 + $0x14] sm:$0x1]
      %v832 = vld [vmem:[%s736 + $0x18] sm:$0xf]
      %v833 = vld [vmem:[%s736 + $0x1c] sm:$0xf]
      %v834 = vld [vmem:[%s736 + $0x20] sm:$0x1]
      %v835 = vld [vmem:[%s736 + $0x24] sm:$0xf]
      %v836 = vld [vmem:[%s736 + $0x28] sm:$0xf]
      %v837 = vld [vmem:[%s736 + $0x2c] sm:$0x1]
      %v838 = vld [vmem:[%s736 + $0x30] sm:$0xf]
      %v839 = vld [vmem:[%s736 + $0x34] sm:$0xf]
      %v840 = vld [vmem:[%s736 + $0x38] sm:$0x1]
      %v841 = vld [vmem:[%s736 + $0x3c] sm:$0xf]
      %v842 = vld [vmem:[%s736 + $0x40] sm:$0xf]
      %v843 = vld [vmem:[%s736 + $0x44] sm:$0x1]
      %v844 = vld [vmem:[%s736 + $0x48] sm:$0xf]
      %v845 = vld [vmem:[%s736 + $0x4c] sm:$0xf]
      %v846 = vld [vmem:[%s736 + $0x50] sm:$0x1]
      %v847 = vld [vmem:[%s736 + $0x54] sm:$0xf]
      %v848 = vld [vmem:[%s736 + $0x58] sm:$0xf]
      %v849 = vld [vmem:[%s736 + $0x5c] sm:$0x1]
      %v851 = vshrl.u32 %v826, 16
      %v853 = vrot.slane %v851, 4
      %v854 = vshll.u32 %v826, 16
      %v856 = vrot.slane %v854, 5
      %v857 = vor.u32 %v853, %v856
      %v858 = vrot.slane %v857, 4
      %v860 = vshll.u32 %v827, 16
      %v862 = vrot.slane %v860, 5
      %v863 = vsel %vm322, %v858, %v862
      %v864 = vshrl.u32 %v827, 16
      %v866 = vrot.slane %v864, 4
      %v867 = vor.u32 %v866, %v862
      %v868 = vrot.slane %v867, 4
      %v870 = vshll.u32 %v828, 16
      %v872 = vrot.slane %v870, 5
      %v873 = vsel %vm322, %v868, %v872
      %v875 = vshrl.u32 %v829, 16
      %v877 = vrot.slane %v875, 4
      %v878 = vshll.u32 %v829, 16
      %v880 = vrot.slane %v878, 5
      %v881 = vor.u32 %v877, %v880
      %v882 = vrot.slane %v881, 4
      %v884 = vshll.u32 %v830, 16
      %v886 = vrot.slane %v884, 5
      %v887 = vsel %vm322, %v882, %v886
      %v888 = vshrl.u32 %v830, 16
      %v890 = vrot.slane %v888, 4
      %v891 = vor.u32 %v890, %v886
      %v892 = vrot.slane %v891, 4
      %v894 = vshll.u32 %v831, 16
      %v896 = vrot.slane %v894, 5
      %v897 = vsel %vm322, %v892, %v896
      %v899 = vshrl.u32 %v832, 16
      %v901 = vrot.slane %v899, 4
      %v902 = vshll.u32 %v832, 16
      %v904 = vrot.slane %v902, 5
      %v905 = vor.u32 %v901, %v904
      %v906 = vrot.slane %v905, 4
      %v908 = vshll.u32 %v833, 16
      %v910 = vrot.slane %v908, 5
      %v911 = vsel %vm322, %v906, %v910
      %v912 = vshrl.u32 %v833, 16
      %v914 = vrot.slane %v912, 4
      %v915 = vor.u32 %v914, %v910
      %v916 = vrot.slane %v915, 4
      %v918 = vshll.u32 %v834, 16
      %v920 = vrot.slane %v918, 5
      %v921 = vsel %vm322, %v916, %v920
      %v923 = vshrl.u32 %v835, 16
      %v925 = vrot.slane %v923, 4
      %v926 = vshll.u32 %v835, 16
      %v928 = vrot.slane %v926, 5
      %v929 = vor.u32 %v925, %v928
      %v930 = vrot.slane %v929, 4
      %v932 = vshll.u32 %v836, 16
      %v934 = vrot.slane %v932, 5
      %v935 = vsel %vm322, %v930, %v934
      %v936 = vshrl.u32 %v836, 16
      %v938 = vrot.slane %v936, 4
      %v939 = vor.u32 %v938, %v934
      %v940 = vrot.slane %v939, 4
      %v942 = vshll.u32 %v837, 16
      %v944 = vrot.slane %v942, 5
      %v945 = vsel %vm322, %v940, %v944
      %v947 = vshrl.u32 %v838, 16
      %v949 = vrot.slane %v947, 4
      %v950 = vshll.u32 %v838, 16
      %v952 = vrot.slane %v950, 5
      %v953 = vor.u32 %v949, %v952
      %v954 = vrot.slane %v953, 4
      %v956 = vshll.u32 %v839, 16
      %v958 = vrot.slane %v956, 5
      %v959 = vsel %vm322, %v954, %v958
      %v960 = vshrl.u32 %v839, 16
      %v962 = vrot.slane %v960, 4
      %v963 = vor.u32 %v962, %v958
      %v964 = vrot.slane %v963, 4
      %v966 = vshll.u32 %v840, 16
      %v968 = vrot.slane %v966, 5
      %v969 = vsel %vm322, %v964, %v968
      %v971 = vshrl.u32 %v841, 16
      %v973 = vrot.slane %v971, 4
      %v974 = vshll.u32 %v841, 16
      %v976 = vrot.slane %v974, 5
      %v977 = vor.u32 %v973, %v976
      %v978 = vrot.slane %v977, 4
      %v980 = vshll.u32 %v842, 16
      %v982 = vrot.slane %v980, 5
      %v983 = vsel %vm322, %v978, %v982
      %v984 = vshrl.u32 %v842, 16
      %v986 = vrot.slane %v984, 4
      %v987 = vor.u32 %v986, %v982
      %v988 = vrot.slane %v987, 4
      %v990 = vshll.u32 %v843, 16
      %v992 = vrot.slane %v990, 5
      %v993 = vsel %vm322, %v988, %v992
      %v995 = vshrl.u32 %v844, 16
      %v997 = vrot.slane %v995, 4
      %v998 = vshll.u32 %v844, 16
      %v1000 = vrot.slane %v998, 5
      %v1001 = vor.u32 %v997, %v1000
      %v1002 = vrot.slane %v1001, 4
      %v1004 = vshll.u32 %v845, 16
      %v1006 = vrot.slane %v1004, 5
      %v1007 = vsel %vm322, %v1002, %v1006
      %v1008 = vshrl.u32 %v845, 16
      %v1010 = vrot.slane %v1008, 4
      %v1011 = vor.u32 %v1010, %v1006
      %v1012 = vrot.slane %v1011, 4
      %v1014 = vshll.u32 %v846, 16
      %v1016 = vrot.slane %v1014, 5
      %v1017 = vsel %vm322, %v1012, %v1016
      %v1019 = vshrl.u32 %v847, 16
      %v1021 = vrot.slane %v1019, 4
      %v1022 = vshll.u32 %v847, 16
      %v1024 = vrot.slane %v1022, 5
      %v1025 = vor.u32 %v1021, %v1024
      %v1026 = vrot.slane %v1025, 4
      %v1028 = vshll.u32 %v848, 16
      %v1030 = vrot.slane %v1028, 5
      %v1031 = vsel %vm322, %v1026, %v1030
      %v1032 = vshrl.u32 %v848, 16
      %v1034 = vrot.slane %v1032, 4
      %v1035 = vor.u32 %v1034, %v1030
      %v1036 = vrot.slane %v1035, 4
      %v1038 = vshll.u32 %v849, 16
      %v1040 = vrot.slane %v1038, 5
      %v1041 = vsel %vm322, %v1036, %v1040
      %v1042 = vunpack.c.l.b16 %v863
      %v1043 = vunpack.c.l.b16 %v873
      %v1044 = vunpack.c.l.b16 %v887
      %v1045 = vunpack.c.l.b16 %v897
      %v1046 = vunpack.c.l.b16 %v911
      %v1047 = vunpack.c.l.b16 %v921
      %v1048 = vunpack.c.l.b16 %v935
      %v1049 = vunpack.c.l.b16 %v945
      %v1050 = vunpack.c.l.b16 %v959
      %v1051 = vunpack.c.l.b16 %v969
      %v1052 = vunpack.c.l.b16 %v983
      %v1053 = vunpack.c.l.b16 %v993
      %v1054 = vunpack.c.l.b16 %v1007
      %v1055 = vunpack.c.l.b16 %v1017
      %v1056 = vunpack.c.l.b16 %v1031
      %v1057 = vunpack.c.l.b16 %v1041
      %v1058 = vpack.c.b16 %v1043, %v1042
      %v1059 = vpack.c.b16 %v1045, %v1044
      %v1060 = vpack.c.b16 %v1047, %v1046
      %v1061 = vpack.c.b16 %v1049, %v1048
      %v1062 = vpack.c.b16 %v1051, %v1050
      %v1063 = vpack.c.b16 %v1053, %v1052
      %v1064 = vpack.c.b16 %v1055, %v1054
      %v1065 = vpack.c.b16 %v1057, %v1056
      %1066 = vrot.lane.b32.xlu0 %v1058, 16
      %v1067 = vpop.permute.xlu0 %1066
      %1068 = vrot.lane.b32.xlu0 %v1059, 16
      %v1069 = vpop.permute.xlu0 %1068
      %1070 = vrot.lane.b32.xlu0 %v1060, 16
      %v1071 = vpop.permute.xlu0 %1070
      %1072 = vrot.lane.b32.xlu0 %v1061, 16
      %v1073 = vpop.permute.xlu0 %1072
      %1074 = vrot.lane.b32.xlu0 %v1062, 16
      %v1075 = vpop.permute.xlu0 %1074
      %1076 = vrot.lane.b32.xlu0 %v1063, 16
      %v1077 = vpop.permute.xlu0 %1076
      %1078 = vrot.lane.b32.xlu0 %v1064, 16
      %v1079 = vpop.permute.xlu0 %1078
      %1080 = vrot.lane.b32.xlu0 %v1065, 16
      %v1081 = vpop.permute.xlu0 %1080
      %vm1090 = vcmask 162944
      %1091 = vst.msk [vmem:[#allocation2] sm:$0xff] %vm1090, %v1067
      %1092 = vst.msk [vmem:[#allocation2 + $0x8] sm:$0xff] %vm1090, %v1069
      %1093 = vst.msk [vmem:[#allocation2 + $0x10] sm:$0xff] %vm1090, %v1071
      %1094 = vst.msk [vmem:[#allocation2 + $0x18] sm:$0xff] %vm1090, %v1073
      %1095 = vst.msk [vmem:[#allocation2 + $0x20] sm:$0xff] %vm1090, %v1075
      %1096 = vst.msk [vmem:[#allocation2 + $0x28] sm:$0xff] %vm1090, %v1077
      %1097 = vst.msk [vmem:[#allocation2 + $0x30] sm:$0xff] %vm1090, %v1079
      %1098 = vst.msk [vmem:[#allocation2 + $0x38] sm:$0xff] %vm1090, %v1081
      %v1099 = vld [vmem:[%s736] sm:$0xe]
      %v1100 = vld [vmem:[%s736 + $0x4] sm:$0xf]
      %v1101 = vld [vmem:[%s736 + $0x8] sm:$0x1]
      %v1102 = vld [vmem:[%s736 + $0xc] sm:$0xe]
      %v1103 = vld [vmem:[%s736 + $0x10] sm:$0xf]
      %v1104 = vld [vmem:[%s736 + $0x14] sm:$0x1]
      %v1105 = vld [vmem:[%s736 + $0x18] sm:$0xe]
      %v1106 = vld [vmem:[%s736 + $0x1c] sm:$0xf]
      %v1107 = vld [vmem:[%s736 + $0x20] sm:$0x1]
      %v1108 = vld [vmem:[%s736 + $0x24] sm:$0xe]
      %v1109 = vld [vmem:[%s736 + $0x28] sm:$0xf]
      %v1110 = vld [vmem:[%s736 + $0x2c] sm:$0x1]
      %v1111 = vld [vmem:[%s736 + $0x30] sm:$0xe]
      %v1112 = vld [vmem:[%s736 + $0x34] sm:$0xf]
      %v1113 = vld [vmem:[%s736 + $0x38] sm:$0x1]
      %v1114 = vld [vmem:[%s736 + $0x3c] sm:$0xe]
      %v1115 = vld [vmem:[%s736 + $0x40] sm:$0xf]
      %v1116 = vld [vmem:[%s736 + $0x44] sm:$0x1]
      %v1117 = vld [vmem:[%s736 + $0x48] sm:$0xe]
      %v1118 = vld [vmem:[%s736 + $0x4c] sm:$0xf]
      %v1119 = vld [vmem:[%s736 + $0x50] sm:$0x1]
      %v1120 = vld [vmem:[%s736 + $0x54] sm:$0xe]
      %v1121 = vld [vmem:[%s736 + $0x58] sm:$0xf]
      %v1122 = vld [vmem:[%s736 + $0x5c] sm:$0x1]
      %v1147 = vrot.slane %v1099, 5
      %v1148 = vrot.slane %v1147, 4
      %v1149 = vrot.slane %v1100, 5
      %v1150 = vsel %vm622, %v1148, %v1149
      %v1151 = vrot.slane %v1149, 4
      %v1152 = vrot.slane %v1101, 5
      %v1153 = vsel %vm622, %v1151, %v1152
      %v1154 = vrot.slane %v1102, 5
      %v1155 = vrot.slane %v1154, 4
      %v1156 = vrot.slane %v1103, 5
      %v1157 = vsel %vm622, %v1155, %v1156
      %v1158 = vrot.slane %v1156, 4
      %v1159 = vrot.slane %v1104, 5
      %v1160 = vsel %vm622, %v1158, %v1159
      %v1161 = vrot.slane %v1105, 5
      %v1162 = vrot.slane %v1161, 4
      %v1163 = vrot.slane %v1106, 5
      %v1164 = vsel %vm622, %v1162, %v1163
      %v1165 = vrot.slane %v1163, 4
      %v1166 = vrot.slane %v1107, 5
      %v1167 = vsel %vm622, %v1165, %v1166
      %v1168 = vrot.slane %v1108, 5
      %v1169 = vrot.slane %v1168, 4
      %v1170 = vrot.slane %v1109, 5
      %v1171 = vsel %vm622, %v1169, %v1170
      %v1172 = vrot.slane %v1170, 4
      %v1173 = vrot.slane %v1110, 5
      %v1174 = vsel %vm622, %v1172, %v1173
      %v1175 = vrot.slane %v1111, 5
      %v1176 = vrot.slane %v1175, 4
      %v1177 = vrot.slane %v1112, 5
      %v1178 = vsel %vm622, %v1176, %v1177
      %v1179 = vrot.slane %v1177, 4
      %v1180 = vrot.slane %v1113, 5
      %v1181 = vsel %vm622, %v1179, %v1180
      %v1182 = vrot.slane %v1114, 5
      %v1183 = vrot.slane %v1182, 4
      %v1184 = vrot.slane %v1115, 5
      %v1185 = vsel %vm622, %v1183, %v1184
      %v1186 = vrot.slane %v1184, 4
      %v1187 = vrot.slane %v1116, 5
      %v1188 = vsel %vm622, %v1186, %v1187
      %v1189 = vrot.slane %v1117, 5
      %v1190 = vrot.slane %v1189, 4
      %v1191 = vrot.slane %v1118, 5
      %v1192 = vsel %vm622, %v1190, %v1191
      %v1193 = vrot.slane %v1191, 4
      %v1194 = vrot.slane %v1119, 5
      %v1195 = vsel %vm622, %v1193, %v1194
      %v1196 = vrot.slane %v1120, 5
      %v1197 = vrot.slane %v1196, 4
      %v1198 = vrot.slane %v1121, 5
      %v1199 = vsel %vm622, %v1197, %v1198
      %v1200 = vrot.slane %v1198, 4
      %v1201 = vrot.slane %v1122, 5
      %v1202 = vsel %vm622, %v1200, %v1201
      %v1203 = vunpack.c.l.b16 %v1150
      %v1204 = vunpack.c.l.b16 %v1153
      %v1205 = vunpack.c.l.b16 %v1157
      %v1206 = vunpack.c.l.b16 %v1160
      %v1207 = vunpack.c.l.b16 %v1164
      %v1208 = vunpack.c.l.b16 %v1167
      %v1209 = vunpack.c.l.b16 %v1171
      %v1210 = vunpack.c.l.b16 %v1174
      %v1211 = vunpack.c.l.b16 %v1178
      %v1212 = vunpack.c.l.b16 %v1181
      %v1213 = vunpack.c.l.b16 %v1185
      %v1214 = vunpack.c.l.b16 %v1188
      %v1215 = vunpack.c.l.b16 %v1192
      %v1216 = vunpack.c.l.b16 %v1195
      %v1217 = vunpack.c.l.b16 %v1199
      %v1218 = vunpack.c.l.b16 %v1202
      %v1219 = vpack.c.b16 %v1204, %v1203
      %v1220 = vpack.c.b16 %v1206, %v1205
      %v1221 = vpack.c.b16 %v1208, %v1207
      %v1222 = vpack.c.b16 %v1210, %v1209
      %v1223 = vpack.c.b16 %v1212, %v1211
      %v1224 = vpack.c.b16 %v1214, %v1213
      %v1225 = vpack.c.b16 %v1216, %v1215
      %v1226 = vpack.c.b16 %v1218, %v1217
      %1227 = vrot.lane.b32.xlu0 %v1219, 20
      %v1228 = vpop.permute.xlu0 %1227
      %1229 = vrot.lane.b32.xlu0 %v1220, 20
      %v1230 = vpop.permute.xlu0 %1229
      %1231 = vrot.lane.b32.xlu0 %v1221, 20
      %v1232 = vpop.permute.xlu0 %1231
      %1233 = vrot.lane.b32.xlu0 %v1222, 20
      %v1234 = vpop.permute.xlu0 %1233
      %1235 = vrot.lane.b32.xlu0 %v1223, 20
      %v1236 = vpop.permute.xlu0 %1235
      %1237 = vrot.lane.b32.xlu0 %v1224, 20
      %v1238 = vpop.permute.xlu0 %1237
      %1239 = vrot.lane.b32.xlu0 %v1225, 20
      %v1240 = vpop.permute.xlu0 %1239
      %1241 = vrot.lane.b32.xlu0 %v1226, 20
      %v1242 = vpop.permute.xlu0 %1241
      %vm1251 = vcmask 195744
      %1252 = vst.msk [vmem:[#allocation2] sm:$0xff] %vm1251, %v1228
      %1253 = vst.msk [vmem:[#allocation2 + $0x8] sm:$0xff] %vm1251, %v1230
      %1254 = vst.msk [vmem:[#allocation2 + $0x10] sm:$0xff] %vm1251, %v1232
      %1255 = vst.msk [vmem:[#allocation2 + $0x18] sm:$0xff] %vm1251, %v1234
      %1256 = vst.msk [vmem:[#allocation2 + $0x20] sm:$0xff] %vm1251, %v1236
      %1257 = vst.msk [vmem:[#allocation2 + $0x28] sm:$0xff] %vm1251, %v1238
      %1258 = vst.msk [vmem:[#allocation2 + $0x30] sm:$0xff] %vm1251, %v1240
      %1259 = vst.msk [vmem:[#allocation2 + $0x38] sm:$0xff] %vm1251, %v1242
      %s1260 = scalar_lea.vmem %s206, 24
      %v1261 = vld [vmem:[%s1260] sm:$0xf]
      %v1262 = vld [vmem:[%s1260 + $0x4] sm:$0xf]
      %v1263 = vld [vmem:[%s1260 + $0xc] sm:$0xf]
      %v1264 = vld [vmem:[%s1260 + $0x10] sm:$0xf]
      %v1265 = vld [vmem:[%s1260 + $0x18] sm:$0xf]
      %v1266 = vld [vmem:[%s1260 + $0x1c] sm:$0xf]
      %v1267 = vld [vmem:[%s1260 + $0x24] sm:$0xf]
      %v1268 = vld [vmem:[%s1260 + $0x28] sm:$0xf]
      %v1269 = vld [vmem:[%s1260 + $0x30] sm:$0xf]
      %v1270 = vld [vmem:[%s1260 + $0x34] sm:$0xf]
      %v1271 = vld [vmem:[%s1260 + $0x3c] sm:$0xf]
      %v1272 = vld [vmem:[%s1260 + $0x40] sm:$0xf]
      %v1273 = vld [vmem:[%s1260 + $0x48] sm:$0xf]
      %v1274 = vld [vmem:[%s1260 + $0x4c] sm:$0xf]
      %v1275 = vld [vmem:[%s1260 + $0x54] sm:$0xf]
      %v1276 = vld [vmem:[%s1260 + $0x58] sm:$0xf]
      %v1293 = vunpack.c.l.b16 %v1261
      %v1294 = vunpack.c.l.b16 %v1262
      %v1295 = vunpack.c.l.b16 %v1263
      %v1296 = vunpack.c.l.b16 %v1264
      %v1297 = vunpack.c.l.b16 %v1265
      %v1298 = vunpack.c.l.b16 %v1266
      %v1299 = vunpack.c.l.b16 %v1267
      %v1300 = vunpack.c.l.b16 %v1268
      %v1301 = vunpack.c.l.b16 %v1269
      %v1302 = vunpack.c.l.b16 %v1270
      %v1303 = vunpack.c.l.b16 %v1271
      %v1304 = vunpack.c.l.b16 %v1272
      %v1305 = vunpack.c.l.b16 %v1273
      %v1306 = vunpack.c.l.b16 %v1274
      %v1307 = vunpack.c.l.b16 %v1275
      %v1308 = vunpack.c.l.b16 %v1276
      %v1309 = vpack.c.b16 %v1294, %v1293
      %v1310 = vpack.c.b16 %v1296, %v1295
      %v1311 = vpack.c.b16 %v1298, %v1297
      %v1312 = vpack.c.b16 %v1300, %v1299
      %v1313 = vpack.c.b16 %v1302, %v1301
      %v1314 = vpack.c.b16 %v1304, %v1303
      %v1315 = vpack.c.b16 %v1306, %v1305
      %v1316 = vpack.c.b16 %v1308, %v1307
      %1317 = vrot.lane.b32.xlu0 %v1309, 24
      %v1318 = vpop.permute.xlu0 %1317
      %1319 = vrot.lane.b32.xlu0 %v1310, 24
      %v1320 = vpop.permute.xlu0 %1319
      %1321 = vrot.lane.b32.xlu0 %v1311, 24
      %v1322 = vpop.permute.xlu0 %1321
      %1323 = vrot.lane.b32.xlu0 %v1312, 24
      %v1324 = vpop.permute.xlu0 %1323
      %1325 = vrot.lane.b32.xlu0 %v1313, 24
      %v1326 = vpop.permute.xlu0 %1325
      %1327 = vrot.lane.b32.xlu0 %v1314, 24
      %v1328 = vpop.permute.xlu0 %1327
      %1329 = vrot.lane.b32.xlu0 %v1315, 24
      %v1330 = vpop.permute.xlu0 %1329
      %1331 = vrot.lane.b32.xlu0 %v1316, 24
      %v1332 = vpop.permute.xlu0 %1331
      %vm1341 = vcmask 228544
      %1342 = vst.msk [vmem:[#allocation2] sm:$0xff] %vm1341, %v1318
      %1343 = vst.msk [vmem:[#allocation2 + $0x8] sm:$0xff] %vm1341, %v1320
      %1344 = vst.msk [vmem:[#allocation2 + $0x10] sm:$0xff] %vm1341, %v1322
      %1345 = vst.msk [vmem:[#allocation2 + $0x18] sm:$0xff] %vm1341, %v1324
      %1346 = vst.msk [vmem:[#allocation2 + $0x20] sm:$0xff] %vm1341, %v1326
      %1347 = vst.msk [vmem:[#allocation2 + $0x28] sm:$0xff] %vm1341, %v1328
      %1348 = vst.msk [vmem:[#allocation2 + $0x30] sm:$0xff] %vm1341, %v1330
      %1349 = vst.msk [vmem:[#allocation2 + $0x38] sm:$0xff] %vm1341, %v1332
      %v1350 = vld [vmem:[%s1260] sm:$0xf]
      %v1351 = vld [vmem:[%s1260 + $0x4] sm:$0xf]
      %v1352 = vld [vmem:[%s1260 + $0x8] sm:$0x1]
      %v1353 = vld [vmem:[%s1260 + $0xc] sm:$0xf]
      %v1354 = vld [vmem:[%s1260 + $0x10] sm:$0xf]
      %v1355 = vld [vmem:[%s1260 + $0x14] sm:$0x1]
      %v1356 = vld [vmem:[%s1260 + $0x18] sm:$0xf]
      %v1357 = vld [vmem:[%s1260 + $0x1c] sm:$0xf]
      %v1358 = vld [vmem:[%s1260 + $0x20] sm:$0x1]
      %v1359 = vld [vmem:[%s1260 + $0x24] sm:$0xf]
      %v1360 = vld [vmem:[%s1260 + $0x28] sm:$0xf]
      %v1361 = vld [vmem:[%s1260 + $0x2c] sm:$0x1]
      %v1362 = vld [vmem:[%s1260 + $0x30] sm:$0xf]
      %v1363 = vld [vmem:[%s1260 + $0x34] sm:$0xf]
      %v1364 = vld [vmem:[%s1260 + $0x38] sm:$0x1]
      %v1365 = vld [vmem:[%s1260 + $0x3c] sm:$0xf]
      %v1366 = vld [vmem:[%s1260 + $0x40] sm:$0xf]
      %v1367 = vld [vmem:[%s1260 + $0x44] sm:$0x1]
      %v1368 = vld [vmem:[%s1260 + $0x48] sm:$0xf]
      %v1369 = vld [vmem:[%s1260 + $0x4c] sm:$0xf]
      %v1370 = vld [vmem:[%s1260 + $0x50] sm:$0x1]
      %v1371 = vld [vmem:[%s1260 + $0x54] sm:$0xf]
      %v1372 = vld [vmem:[%s1260 + $0x58] sm:$0xf]
      %v1373 = vld [vmem:[%s1260 + $0x5c] sm:$0x1]
      %v1375 = vshrl.u32 %v1350, 16
      %v1377 = vrot.slane %v1375, 4
      %v1378 = vshll.u32 %v1350, 16
      %v1380 = vrot.slane %v1378, 5
      %v1381 = vor.u32 %v1377, %v1380
      %v1382 = vrot.slane %v1381, 4
      %v1384 = vshll.u32 %v1351, 16
      %v1386 = vrot.slane %v1384, 5
      %v1387 = vsel %vm322, %v1382, %v1386
      %v1388 = vshrl.u32 %v1351, 16
      %v1390 = vrot.slane %v1388, 4
      %v1391 = vor.u32 %v1390, %v1386
      %v1392 = vrot.slane %v1391, 4
      %v1394 = vshll.u32 %v1352, 16
      %v1396 = vrot.slane %v1394, 5
      %v1397 = vsel %vm322, %v1392, %v1396
      %v1399 = vshrl.u32 %v1353, 16
      %v1401 = vrot.slane %v1399, 4
      %v1402 = vshll.u32 %v1353, 16
      %v1404 = vrot.slane %v1402, 5
      %v1405 = vor.u32 %v1401, %v1404
      %v1406 = vrot.slane %v1405, 4
      %v1408 = vshll.u32 %v1354, 16
      %v1410 = vrot.slane %v1408, 5
      %v1411 = vsel %vm322, %v1406, %v1410
      %v1412 = vshrl.u32 %v1354, 16
      %v1414 = vrot.slane %v1412, 4
      %v1415 = vor.u32 %v1414, %v1410
      %v1416 = vrot.slane %v1415, 4
      %v1418 = vshll.u32 %v1355, 16
      %v1420 = vrot.slane %v1418, 5
      %v1421 = vsel %vm322, %v1416, %v1420
      %v1423 = vshrl.u32 %v1356, 16
      %v1425 = vrot.slane %v1423, 4
      %v1426 = vshll.u32 %v1356, 16
      %v1428 = vrot.slane %v1426, 5
      %v1429 = vor.u32 %v1425, %v1428
      %v1430 = vrot.slane %v1429, 4
      %v1432 = vshll.u32 %v1357, 16
      %v1434 = vrot.slane %v1432, 5
      %v1435 = vsel %vm322, %v1430, %v1434
      %v1436 = vshrl.u32 %v1357, 16
      %v1438 = vrot.slane %v1436, 4
      %v1439 = vor.u32 %v1438, %v1434
      %v1440 = vrot.slane %v1439, 4
      %v1442 = vshll.u32 %v1358, 16
      %v1444 = vrot.slane %v1442, 5
      %v1445 = vsel %vm322, %v1440, %v1444
      %v1447 = vshrl.u32 %v1359, 16
      %v1449 = vrot.slane %v1447, 4
      %v1450 = vshll.u32 %v1359, 16
      %v1452 = vrot.slane %v1450, 5
      %v1453 = vor.u32 %v1449, %v1452
      %v1454 = vrot.slane %v1453, 4
      %v1456 = vshll.u32 %v1360, 16
      %v1458 = vrot.slane %v1456, 5
      %v1459 = vsel %vm322, %v1454, %v1458
      %v1460 = vshrl.u32 %v1360, 16
      %v1462 = vrot.slane %v1460, 4
      %v1463 = vor.u32 %v1462, %v1458
      %v1464 = vrot.slane %v1463, 4
      %v1466 = vshll.u32 %v1361, 16
      %v1468 = vrot.slane %v1466, 5
      %v1469 = vsel %vm322, %v1464, %v1468
      %v1471 = vshrl.u32 %v1362, 16
      %v1473 = vrot.slane %v1471, 4
      %v1474 = vshll.u32 %v1362, 16
      %v1476 = vrot.slane %v1474, 5
      %v1477 = vor.u32 %v1473, %v1476
      %v1478 = vrot.slane %v1477, 4
      %v1480 = vshll.u32 %v1363, 16
      %v1482 = vrot.slane %v1480, 5
      %v1483 = vsel %vm322, %v1478, %v1482
      %v1484 = vshrl.u32 %v1363, 16
      %v1486 = vrot.slane %v1484, 4
      %v1487 = vor.u32 %v1486, %v1482
      %v1488 = vrot.slane %v1487, 4
      %v1490 = vshll.u32 %v1364, 16
      %v1492 = vrot.slane %v1490, 5
      %v1493 = vsel %vm322, %v1488, %v1492
      %v1495 = vshrl.u32 %v1365, 16
      %v1497 = vrot.slane %v1495, 4
      %v1498 = vshll.u32 %v1365, 16
      %v1500 = vrot.slane %v1498, 5
      %v1501 = vor.u32 %v1497, %v1500
      %v1502 = vrot.slane %v1501, 4
      %v1504 = vshll.u32 %v1366, 16
      %v1506 = vrot.slane %v1504, 5
      %v1507 = vsel %vm322, %v1502, %v1506
      %v1508 = vshrl.u32 %v1366, 16
      %v1510 = vrot.slane %v1508, 4
      %v1511 = vor.u32 %v1510, %v1506
      %v1512 = vrot.slane %v1511, 4
      %v1514 = vshll.u32 %v1367, 16
      %v1516 = vrot.slane %v1514, 5
      %v1517 = vsel %vm322, %v1512, %v1516
      %v1519 = vshrl.u32 %v1368, 16
      %v1521 = vrot.slane %v1519, 4
      %v1522 = vshll.u32 %v1368, 16
      %v1524 = vrot.slane %v1522, 5
      %v1525 = vor.u32 %v1521, %v1524
      %v1526 = vrot.slane %v1525, 4
      %v1528 = vshll.u32 %v1369, 16
      %v1530 = vrot.slane %v1528, 5
      %v1531 = vsel %vm322, %v1526, %v1530
      %v1532 = vshrl.u32 %v1369, 16
      %v1534 = vrot.slane %v1532, 4
      %v1535 = vor.u32 %v1534, %v1530
      %v1536 = vrot.slane %v1535, 4
      %v1538 = vshll.u32 %v1370, 16
      %v1540 = vrot.slane %v1538, 5
      %v1541 = vsel %vm322, %v1536, %v1540
      %v1543 = vshrl.u32 %v1371, 16
      %v1545 = vrot.slane %v1543, 4
      %v1546 = vshll.u32 %v1371, 16
      %v1548 = vrot.slane %v1546, 5
      %v1549 = vor.u32 %v1545, %v1548
      %v1550 = vrot.slane %v1549, 4
      %v1552 = vshll.u32 %v1372, 16
      %v1554 = vrot.slane %v1552, 5
      %v1555 = vsel %vm322, %v1550, %v1554
      %v1556 = vshrl.u32 %v1372, 16
      %v1558 = vrot.slane %v1556, 4
      %v1559 = vor.u32 %v1558, %v1554
      %v1560 = vrot.slane %v1559, 4
      %v1562 = vshll.u32 %v1373, 16
      %v1564 = vrot.slane %v1562, 5
      %v1565 = vsel %vm322, %v1560, %v1564
      %v1566 = vunpack.c.l.b16 %v1387
      %v1567 = vunpack.c.l.b16 %v1397
      %v1568 = vunpack.c.l.b16 %v1411
      %v1569 = vunpack.c.l.b16 %v1421
      %v1570 = vunpack.c.l.b16 %v1435
      %v1571 = vunpack.c.l.b16 %v1445
      %v1572 = vunpack.c.l.b16 %v1459
      %v1573 = vunpack.c.l.b16 %v1469
      %v1574 = vunpack.c.l.b16 %v1483
      %v1575 = vunpack.c.l.b16 %v1493
      %v1576 = vunpack.c.l.b16 %v1507
      %v1577 = vunpack.c.l.b16 %v1517
      %v1578 = vunpack.c.l.b16 %v1531
      %v1579 = vunpack.c.l.b16 %v1541
      %v1580 = vunpack.c.l.b16 %v1555
      %v1581 = vunpack.c.l.b16 %v1565
      %v1582 = vpack.c.b16 %v1567, %v1566
      %v1583 = vpack.c.b16 %v1569, %v1568
      %v1584 = vpack.c.b16 %v1571, %v1570
      %v1585 = vpack.c.b16 %v1573, %v1572
      %v1586 = vpack.c.b16 %v1575, %v1574
      %v1587 = vpack.c.b16 %v1577, %v1576
      %v1588 = vpack.c.b16 %v1579, %v1578
      %v1589 = vpack.c.b16 %v1581, %v1580
      %1590 = vrot.lane.b32.xlu0 %v1582, 28
      %v1591 = vpop.permute.xlu0 %1590
      %1592 = vrot.lane.b32.xlu0 %v1583, 28
      %v1593 = vpop.permute.xlu0 %1592
      %1594 = vrot.lane.b32.xlu0 %v1584, 28
      %v1595 = vpop.permute.xlu0 %1594
      %1596 = vrot.lane.b32.xlu0 %v1585, 28
      %v1597 = vpop.permute.xlu0 %1596
      %1598 = vrot.lane.b32.xlu0 %v1586, 28
      %v1599 = vpop.permute.xlu0 %1598
      %1600 = vrot.lane.b32.xlu0 %v1587, 28
      %v1601 = vpop.permute.xlu0 %1600
      %1602 = vrot.lane.b32.xlu0 %v1588, 28
      %v1603 = vpop.permute.xlu0 %1602
      %1604 = vrot.lane.b32.xlu0 %v1589, 28
      %v1605 = vpop.permute.xlu0 %1604
      %vm1614 = vcmask 261344
      %1615 = vst.msk [vmem:[#allocation2] sm:$0xff] %vm1614, %v1591
      %1616 = vst.msk [vmem:[#allocation2 + $0x8] sm:$0xff] %vm1614, %v1593
      %1617 = vst.msk [vmem:[#allocation2 + $0x10] sm:$0xff] %vm1614, %v1595
      %1618 = vst.msk [vmem:[#allocation2 + $0x18] sm:$0xff] %vm1614, %v1597
      %1619 = vst.msk [vmem:[#allocation2 + $0x20] sm:$0xff] %vm1614, %v1599
      %1620 = vst.msk [vmem:[#allocation2 + $0x28] sm:$0xff] %vm1614, %v1601
      %1621 = vst.msk [vmem:[#allocation2 + $0x30] sm:$0xff] %vm1614, %v1603
      %1622 = vst.msk [vmem:[#allocation2 + $0x38] sm:$0xff] %vm1614, %v1605
      %v1623 = vld [vmem:[%s1260] sm:$0xe]
      %v1624 = vld [vmem:[%s1260 + $0x4] sm:$0xf]
      %v1625 = vld [vmem:[%s1260 + $0x8] sm:$0x1]
      %v1626 = vld [vmem:[%s1260 + $0xc] sm:$0xe]
      %v1627 = vld [vmem:[%s1260 + $0x10] sm:$0xf]
      %v1628 = vld [vmem:[%s1260 + $0x14] sm:$0x1]
      %v1629 = vld [vmem:[%s1260 + $0x18] sm:$0xe]
      %v1630 = vld [vmem:[%s1260 + $0x1c] sm:$0xf]
      %v1631 = vld [vmem:[%s1260 + $0x20] sm:$0x1]
      %v1632 = vld [vmem:[%s1260 + $0x24] sm:$0xe]
      %v1633 = vld [vmem:[%s1260 + $0x28] sm:$0xf]
      %v1634 = vld [vmem:[%s1260 + $0x2c] sm:$0x1]
      %v1635 = vld [vmem:[%s1260 + $0x30] sm:$0xe]
      %v1636 = vld [vmem:[%s1260 + $0x34] sm:$0xf]
      %v1637 = vld [vmem:[%s1260 + $0x38] sm:$0x1]
      %v1638 = vld [vmem:[%s1260 + $0x3c] sm:$0xe]
      %v1639 = vld [vmem:[%s1260 + $0x40] sm:$0xf]
      %v1640 = vld [vmem:[%s1260 + $0x44] sm:$0x1]
      %v1641 = vld [vmem:[%s1260 + $0x48] sm:$0xe]
      %v1642 = vld [vmem:[%s1260 + $0x4c] sm:$0xf]
      %v1643 = vld [vmem:[%s1260 + $0x50] sm:$0x1]
      %v1644 = vld [vmem:[%s1260 + $0x54] sm:$0xe]
      %v1645 = vld [vmem:[%s1260 + $0x58] sm:$0xf]
      %v1646 = vld [vmem:[%s1260 + $0x5c] sm:$0x1]
      %v1671 = vrot.slane %v1623, 5
      %v1672 = vrot.slane %v1671, 4
      %v1673 = vrot.slane %v1624, 5
      %v1674 = vsel %vm622, %v1672, %v1673
      %v1675 = vrot.slane %v1673, 4
      %v1676 = vrot.slane %v1625, 5
      %v1677 = vsel %vm622, %v1675, %v1676
      %v1678 = vrot.slane %v1626, 5
      %v1679 = vrot.slane %v1678, 4
      %v1680 = vrot.slane %v1627, 5
      %v1681 = vsel %vm622, %v1679, %v1680
      %v1682 = vrot.slane %v1680, 4
      %v1683 = vrot.slane %v1628, 5
      %v1684 = vsel %vm622, %v1682, %v1683
      %v1685 = vrot.slane %v1629, 5
      %v1686 = vrot.slane %v1685, 4
      %v1687 = vrot.slane %v1630, 5
      %v1688 = vsel %vm622, %v1686, %v1687
      %v1689 = vrot.slane %v1687, 4
      %v1690 = vrot.slane %v1631, 5
      %v1691 = vsel %vm622, %v1689, %v1690
      %v1692 = vrot.slane %v1632, 5
      %v1693 = vrot.slane %v1692, 4
      %v1694 = vrot.slane %v1633, 5
      %v1695 = vsel %vm622, %v1693, %v1694
      %v1696 = vrot.slane %v1694, 4
      %v1697 = vrot.slane %v1634, 5
      %v1698 = vsel %vm622, %v1696, %v1697
      %v1699 = vrot.slane %v1635, 5
      %v1700 = vrot.slane %v1699, 4
      %v1701 = vrot.slane %v1636, 5
      %v1702 = vsel %vm622, %v1700, %v1701
      %v1703 = vrot.slane %v1701, 4
      %v1704 = vrot.slane %v1637, 5
      %v1705 = vsel %vm622, %v1703, %v1704
      %v1706 = vrot.slane %v1638, 5
      %v1707 = vrot.slane %v1706, 4
      %v1708 = vrot.slane %v1639, 5
      %v1709 = vsel %vm622, %v1707, %v1708
      %v1710 = vrot.slane %v1708, 4
      %v1711 = vrot.slane %v1640, 5
      %v1712 = vsel %vm622, %v1710, %v1711
      %v1713 = vrot.slane %v1641, 5
      %v1714 = vrot.slane %v1713, 4
      %v1715 = vrot.slane %v1642, 5
      %v1716 = vsel %vm622, %v1714, %v1715
      %v1717 = vrot.slane %v1715, 4
      %v1718 = vrot.slane %v1643, 5
      %v1719 = vsel %vm622, %v1717, %v1718
      %v1720 = vrot.slane %v1644, 5
      %v1721 = vrot.slane %v1720, 4
      %v1722 = vrot.slane %v1645, 5
      %v1723 = vsel %vm622, %v1721, %v1722
      %v1724 = vrot.slane %v1722, 4
      %v1725 = vrot.slane %v1646, 5
      %v1726 = vsel %vm622, %v1724, %v1725
      %v1727 = vunpack.c.l.b16 %v1674
      %v1728 = vunpack.c.l.b16 %v1677
      %v1729 = vunpack.c.l.b16 %v1681
      %v1730 = vunpack.c.l.b16 %v1684
      %v1731 = vunpack.c.l.b16 %v1688
      %v1732 = vunpack.c.l.b16 %v1691
      %v1733 = vunpack.c.l.b16 %v1695
      %v1734 = vunpack.c.l.b16 %v1698
      %v1735 = vunpack.c.l.b16 %v1702
      %v1736 = vunpack.c.l.b16 %v1705
      %v1737 = vunpack.c.l.b16 %v1709
      %v1738 = vunpack.c.l.b16 %v1712
      %v1739 = vunpack.c.l.b16 %v1716
      %v1740 = vunpack.c.l.b16 %v1719
      %v1741 = vunpack.c.l.b16 %v1723
      %v1742 = vunpack.c.l.b16 %v1726
      %v1743 = vpack.c.b16 %v1728, %v1727
      %v1744 = vpack.c.b16 %v1730, %v1729
      %v1745 = vpack.c.b16 %v1732, %v1731
      %v1746 = vpack.c.b16 %v1734, %v1733
      %v1747 = vpack.c.b16 %v1736, %v1735
      %v1748 = vpack.c.b16 %v1738, %v1737
      %v1749 = vpack.c.b16 %v1740, %v1739
      %v1750 = vpack.c.b16 %v1742, %v1741
      %1751 = vrot.lane.b32.xlu0 %v1743, 32
      %v1752 = vpop.permute.xlu0 %1751
      %1753 = vrot.lane.b32.xlu0 %v1744, 32
      %v1754 = vpop.permute.xlu0 %1753
      %1755 = vrot.lane.b32.xlu0 %v1745, 32
      %v1756 = vpop.permute.xlu0 %1755
      %1757 = vrot.lane.b32.xlu0 %v1746, 32
      %v1758 = vpop.permute.xlu0 %1757
      %1759 = vrot.lane.b32.xlu0 %v1747, 32
      %v1760 = vpop.permute.xlu0 %1759
      %1761 = vrot.lane.b32.xlu0 %v1748, 32
      %v1762 = vpop.permute.xlu0 %1761
      %1763 = vrot.lane.b32.xlu0 %v1749, 32
      %v1764 = vpop.permute.xlu0 %1763
      %1765 = vrot.lane.b32.xlu0 %v1750, 32
      %v1766 = vpop.permute.xlu0 %1765
      %vm1775 = vcmask 294144
      %1776 = vst.msk [vmem:[#allocation2] sm:$0xff] %vm1775, %v1752
      %1777 = vst.msk [vmem:[#allocation2 + $0x8] sm:$0xff] %vm1775, %v1754
      %1778 = vst.msk [vmem:[#allocation2 + $0x10] sm:$0xff] %vm1775, %v1756
      %1779 = vst.msk [vmem:[#allocation2 + $0x18] sm:$0xff] %vm1775, %v1758
      %1780 = vst.msk [vmem:[#allocation2 + $0x20] sm:$0xff] %vm1775, %v1760
      %1781 = vst.msk [vmem:[#allocation2 + $0x28] sm:$0xff] %vm1775, %v1762
      %1782 = vst.msk [vmem:[#allocation2 + $0x30] sm:$0xff] %vm1775, %v1764
      %1783 = vst.msk [vmem:[#allocation2 + $0x38] sm:$0xff] %vm1775, %v1766
      %v1784 = vld [vmem:[#allocation2] sm:$0xff]
      %v1785 = vld [vmem:[#allocation2 + $0x8] sm:$0xff]
      %v1786 = vld [vmem:[#allocation2 + $0x10] sm:$0xff]
      %v1787 = vld [vmem:[#allocation2 + $0x18] sm:$0xff]
      %v1788 = vld [vmem:[#allocation2 + $0x20] sm:$0xff]
      %v1789 = vld [vmem:[#allocation2 + $0x28] sm:$0xff]
      %v1790 = vld [vmem:[#allocation2 + $0x30] sm:$0xff]
      %v1791 = vld [vmem:[#allocation2 + $0x38] sm:$0xff]
      %v1792 = vld [vmem:[%s210] sm:$0xf]
      %v1793 = vld [vmem:[%s210 + $0x4] sm:$0xf]
      %v1794 = vld [vmem:[%s210 + $0x8] sm:$0xf]
      %v1795 = vld [vmem:[%s210 + $0xc] sm:$0xf]
      %v1796 = vld [vmem:[%s210 + $0x10] sm:$0x3]
      %v1797 = vld [vmem:[%s213] sm:$0x1]
      %v1799 = vlaneseq
      %v1800 = vshrl.u32 %v1799, 7
      %v1801 = vsub.s32 0, %v1800
      %v1802 = vrot.slane %v1797, %v1801
      %v1809 = vunpack.c.l.b16 %v1792
      %v1810 = vunpack.c.l.b16 %v1793
      %v1811 = vunpack.c.l.b16 %v1794
      %v1812 = vunpack.c.l.b16 %v1795
      %v1813 = vunpack.c.l.b16 %v1796
      %v1814 = vpack.c.b16 %v1810, %v1809
      %v1815 = vpack.c.b16 %v1812, %v1811
      %v1816 = vpack.c.b16 %v1813, %v1813
      %vm1819 = vcmask 293888
      %v1821 = vsel %vm1819, %v1784, 0
      %v1824 = vsel %vm1819, %v1785, 0
      %v1827 = vsel %vm1819, %v1786, 0
      %v1830 = vsel %vm1819, %v1787, 0
      %v1833 = vsel %vm1819, %v1788, 0
      %v1836 = vsel %vm1819, %v1789, 0
      %v1839 = vsel %vm1819, %v1790, 0
      %v1842 = vsel %vm1819, %v1791, 0
      %vm1844 = vcmask 1041408
      %v1846 = vsel %vm1844, %v1816, 0
      %1848 = vmatprep.subr.bf16.mxu0 0
      %1849 = vmatpush1.bf16.msra.mxu0 %v1814
      %1850 = vmatprep.subr.bf16.mxu0 0
      %1851 = vmatpush1.bf16.msra.mxu0 %v1815
      %1852 = vmatprep.subr.bf16.mxu0 0
      %1853 = vmatpush1.bf16.msra.mxu0 %v1846
      %1854 = vmatprep.subr.bf16.mxu0 0
      %1855 = vmatpush1.bf16.msra.mxu0 0
      %1856 = vmatprep.subr.bf16.mxu0 0
      %1857 = vmatpush1.bf16.msra.mxu0 0
      %1858 = vmatprep.subr.bf16.mxu0 0
      %1859 = vmatpush1.bf16.msra.mxu0 0
      %1860 = vmatprep.subr.bf16.mxu0 0
      %1861 = vmatpush1.bf16.msra.mxu0 0
      %1862 = vmatprep.subr.bf16.mxu0 0
      %1863 = vmatpush1.bf16.msra.mxu0 0
      %1864 = vmatprep.subr.bf16.mxu0 0
      %1865 = vmatpush1.bf16.msra.mxu0 0
      %1866 = vmatprep.subr.bf16.mxu0 0
      %1867 = vmatpush1.bf16.msra.mxu0 0
      %1868 = vmatprep.subr.bf16.mxu0 0
      %1869 = vmatpush1.bf16.msra.mxu0 0
      %1870 = vmatprep.subr.bf16.mxu0 0
      %1871 = vmatpush1.bf16.msra.mxu0 0
      %1872 = vmatprep.subr.bf16.mxu0 0
      %1873 = vmatpush1.bf16.msra.mxu0 0
      %1874 = vmatprep.subr.bf16.mxu0 0
      %1875 = vmatpush1.bf16.msra.mxu0 0
      %1876 = vmatprep.subr.bf16.mxu0 0
      %1877 = vmatpush1.bf16.msra.mxu0 0
      %1878 = vmatprep.subr.bf16.mxu0 0
      %1879 = vmatpush1.bf16.msra.mxu0 0
      %1880 = vmatprep.mubr.bf16.mxu0 0
      %1881 = vmatmul.mubr.bf16.gmra.mrb[0].mxu0 %v1821
      %v1882 = vpop.f32.mrb[0].mxu0
      %v1883 = vadd.f32 %v1802, %v1882
      %v1884 = vpop.f32.mrb[0].mxu0
      %v1885 = vpop.f32.mrb[0].mxu0
      %v1886 = vadd.f32 %v1802, %v1885
      %v1887 = vpop.f32.mrb[0].mxu0
      %1888 = vmatprep.mubr.bf16.mxu0 0
      %1889 = vmatmul.mubr.bf16.gmra.mrb[0].mxu0 %v1824
      %v1890 = vpop.f32.mrb[0].mxu0
      %v1891 = vadd.f32 %v1802, %v1890
      %v1892 = vpop.f32.mrb[0].mxu0
      %v1893 = vpop.f32.mrb[0].mxu0
      %v1894 = vadd.f32 %v1802, %v1893
      %v1895 = vpop.f32.mrb[0].mxu0
      %1896 = vmatprep.mubr.bf16.mxu0 0
      %1897 = vmatmul.mubr.bf16.gmra.mrb[0].mxu0 %v1827
      %v1898 = vpop.f32.mrb[0].mxu0
      %v1899 = vadd.f32 %v1802, %v1898
      %v1900 = vpop.f32.mrb[0].mxu0
      %v1901 = vpop.f32.mrb[0].mxu0
      %v1902 = vadd.f32 %v1802, %v1901
      %v1903 = vpop.f32.mrb[0].mxu0
      %1904 = vmatprep.mubr.bf16.mxu0 0
      %1905 = vmatmul.mubr.bf16.gmra.mrb[0].mxu0 %v1830
      %v1906 = vpop.f32.mrb[0].mxu0
      %v1907 = vadd.f32 %v1802, %v1906
      %v1908 = vpop.f32.mrb[0].mxu0
      %v1909 = vpop.f32.mrb[0].mxu0
      %v1910 = vadd.f32 %v1802, %v1909
      %v1911 = vpop.f32.mrb[0].mxu0
      %1912 = vmatprep.mubr.bf16.mxu0 0
      %1913 = vmatmul.mubr.bf16.gmra.mrb[0].mxu0 %v1833
      %v1914 = vpop.f32.mrb[0].mxu0
      %v1915 = vadd.f32 %v1802, %v1914
      %v1916 = vpop.f32.mrb[0].mxu0
      %v1917 = vpop.f32.mrb[0].mxu0
      %v1918 = vadd.f32 %v1802, %v1917
      %v1919 = vpop.f32.mrb[0].mxu0
      %1920 = vmatprep.mubr.bf16.mxu0 0
      %1921 = vmatmul.mubr.bf16.gmra.mrb[0].mxu0 %v1836
      %v1922 = vpop.f32.mrb[0].mxu0
      %v1923 = vadd.f32 %v1802, %v1922
      %v1924 = vpop.f32.mrb[0].mxu0
      %v1925 = vpop.f32.mrb[0].mxu0
      %v1926 = vadd.f32 %v1802, %v1925
      %v1927 = vpop.f32.mrb[0].mxu0
      %1928 = vmatprep.mubr.bf16.mxu0 0
      %1929 = vmatmul.mubr.bf16.gmra.mrb[0].mxu0 %v1839
      %v1930 = vpop.f32.mrb[0].mxu0
      %v1931 = vadd.f32 %v1802, %v1930
      %v1932 = vpop.f32.mrb[0].mxu0
      %v1933 = vpop.f32.mrb[0].mxu0
      %v1934 = vadd.f32 %v1802, %v1933
      %v1935 = vpop.f32.mrb[0].mxu0
      %1936 = vmatprep.mubr.bf16.mxu0 0
      %1937 = vmatmul.mubr.bf16.gmra.mrb[0].mxu0 %v1842
      %v1938 = vpop.f32.mrb[0].mxu0
      %v1939 = vadd.f32 %v1802, %v1938
      %v1940 = vpop.f32.mrb[0].mxu0
      %v1941 = vpop.f32.mrb[0].mxu0
      %v1942 = vadd.f32 %v1802, %v1941
      %v1943 = vpop.f32.mrb[0].mxu0
      %1944 = vdwg.mxu0
      %v1945 = vmax.f32 %v1883, 0.0
      %v1946 = vmax.f32 %v1886, 0.0
      %v1947 = vmax.f32 %v1891, 0.0
      %v1948 = vmax.f32 %v1894, 0.0
      %v1949 = vmax.f32 %v1899, 0.0
      %v1950 = vmax.f32 %v1902, 0.0
      %v1951 = vmax.f32 %v1907, 0.0
      %v1952 = vmax.f32 %v1910, 0.0
      %v1953 = vmax.f32 %v1915, 0.0
      %v1954 = vmax.f32 %v1918, 0.0
      %v1955 = vmax.f32 %v1923, 0.0
      %v1956 = vmax.f32 %v1926, 0.0
      %v1957 = vmax.f32 %v1931, 0.0
      %v1958 = vmax.f32 %v1934, 0.0
      %v1959 = vmax.f32 %v1939, 0.0
      %v1960 = vmax.f32 %v1942, 0.0
      %v1961 = vpack.c.bf16 %v1946, %v1945
      %v1962 = vpack.c.bf16 %v1948, %v1947
      %v1963 = vpack.c.bf16 %v1950, %v1949
      %v1964 = vpack.c.bf16 %v1952, %v1951
      %v1965 = vpack.c.bf16 %v1954, %v1953
      %v1966 = vpack.c.bf16 %v1956, %v1955
      %v1967 = vpack.c.bf16 %v1958, %v1957
      %v1968 = vpack.c.bf16 %v1960, %v1959
      %v1977 = vunpack.c.l.b16 %v1961
      %v1978 = vunpack.c.h.b16 %v1961
      %v1979 = vunpack.c.l.b16 %v1962
      %v1980 = vunpack.c.h.b16 %v1962
      %v1981 = vunpack.c.l.b16 %v1963
      %v1982 = vunpack.c.h.b16 %v1963
      %v1983 = vunpack.c.l.b16 %v1964
      %v1984 = vunpack.c.h.b16 %v1964
      %v1985 = vunpack.c.l.b16 %v1965
      %v1986 = vunpack.c.h.b16 %v1965
      %v1987 = vunpack.c.l.b16 %v1966
      %v1988 = vunpack.c.h.b16 %v1966
      %v1989 = vunpack.c.l.b16 %v1967
      %v1990 = vunpack.c.h.b16 %v1967
      %v1991 = vunpack.c.l.b16 %v1968
      %v1992 = vunpack.c.h.b16 %v1968
      %v1993 = vpack.c.b16 %v1977, %v1977
      %v1994 = vpack.c.b16 %v1978, %v1978
      %v1995 = vpack.c.b16 %v1979, %v1979
      %v1996 = vpack.c.b16 %v1980, %v1980
      %v1997 = vpack.c.b16 %v1981, %v1981
      %v1998 = vpack.c.b16 %v1982, %v1982
      %v1999 = vpack.c.b16 %v1983, %v1983
      %v2000 = vpack.c.b16 %v1984, %v1984
      %v2001 = vpack.c.b16 %v1985, %v1985
      %v2002 = vpack.c.b16 %v1986, %v1986
      %v2003 = vpack.c.b16 %v1987, %v1987
      %v2004 = vpack.c.b16 %v1988, %v1988
      %v2005 = vpack.c.b16 %v1989, %v1989
      %v2006 = vpack.c.b16 %v1990, %v1990
      %v2007 = vpack.c.b16 %v1991, %v1991
      %v2008 = vpack.c.b16 %v1992, %v1992
      %2025 = vst [vmem:[%s221] sm:$0xf] %v1993
      %2026 = vst [vmem:[%s221 + $0x4] sm:$0xf] %v1994
      %2027 = vst [vmem:[%s221 + $0x8] sm:$0xf] %v1995
      %2028 = vst [vmem:[%s221 + $0xc] sm:$0xf] %v1996
      %2029 = vst [vmem:[%s221 + $0x10] sm:$0xf] %v1997
      %2030 = vst [vmem:[%s221 + $0x14] sm:$0xf] %v1998
      %2031 = vst [vmem:[%s221 + $0x18] sm:$0xf] %v1999
      %2032 = vst [vmem:[%s221 + $0x1c] sm:$0xf] %v2000
      %2033 = vst [vmem:[%s221 + $0x20] sm:$0xf] %v2001
      %2034 = vst [vmem:[%s221 + $0x24] sm:$0xf] %v2002
      %2035 = vst [vmem:[%s221 + $0x28] sm:$0xf] %v2003
      %2036 = vst [vmem:[%s221 + $0x2c] sm:$0xf] %v2004
      %2037 = vst [vmem:[%s221 + $0x30] sm:$0xf] %v2005
      %2038 = vst [vmem:[%s221 + $0x34] sm:$0xf] %v2006
      %2039 = vst [vmem:[%s221 + $0x38] sm:$0xf] %v2007
      %2040 = vst [vmem:[%s221 + $0x3c] sm:$0xf] %v2008
      %s2041 = scalar_lea.vmem %s206, 96
      %v2042 = vld [vmem:[%s2041] sm:$0xf]
      %v2043 = vld [vmem:[%s2041 + $0x4] sm:$0xf]
      %v2044 = vld [vmem:[%s2041 + $0xc] sm:$0xf]
      %v2045 = vld [vmem:[%s2041 + $0x10] sm:$0xf]
      %v2046 = vld [vmem:[%s2041 + $0x18] sm:$0xf]
      %v2047 = vld [vmem:[%s2041 + $0x1c] sm:$0xf]
      %v2048 = vld [vmem:[%s2041 + $0x24] sm:$0xf]
      %v2049 = vld [vmem:[%s2041 + $0x28] sm:$0xf]
      %v2050 = vld [vmem:[%s2041 + $0x30] sm:$0xf]
      %v2051 = vld [vmem:[%s2041 + $0x34] sm:$0xf]
      %v2052 = vld [vmem:[%s2041 + $0x3c] sm:$0xf]
      %v2053 = vld [vmem:[%s2041 + $0x40] sm:$0xf]
      %v2054 = vld [vmem:[%s2041 + $0x48] sm:$0xf]
      %v2055 = vld [vmem:[%s2041 + $0x4c] sm:$0xf]
      %v2056 = vld [vmem:[%s2041 + $0x54] sm:$0xf]
      %v2057 = vld [vmem:[%s2041 + $0x58] sm:$0xf]
      %v2074 = vunpack.c.l.b16 %v2042
      %v2075 = vunpack.c.l.b16 %v2043
      %v2076 = vunpack.c.l.b16 %v2044
      %v2077 = vunpack.c.l.b16 %v2045
      %v2078 = vunpack.c.l.b16 %v2046
      %v2079 = vunpack.c.l.b16 %v2047
      %v2080 = vunpack.c.l.b16 %v2048
      %v2081 = vunpack.c.l.b16 %v2049
      %v2082 = vunpack.c.l.b16 %v2050
      %v2083 = vunpack.c.l.b16 %v2051
      %v2084 = vunpack.c.l.b16 %v2052
      %v2085 = vunpack.c.l.b16 %v2053
      %v2086 = vunpack.c.l.b16 %v2054
      %v2087 = vunpack.c.l.b16 %v2055
      %v2088 = vunpack.c.l.b16 %v2056
      %v2089 = vunpack.c.l.b16 %v2057
      %v2090 = vpack.c.b16 %v2075, %v2074
      %v2091 = vpack.c.b16 %v2077, %v2076
      %v2092 = vpack.c.b16 %v2079, %v2078
      %v2093 = vpack.c.b16 %v2081, %v2080
      %v2094 = vpack.c.b16 %v2083, %v2082
      %v2095 = vpack.c.b16 %v2085, %v2084
      %v2096 = vpack.c.b16 %v2087, %v2086
      %v2097 = vpack.c.b16 %v2089, %v2088
      %2106 = vst.msk [vmem:[#allocation2] sm:$0xff] %vm287, %v2090
      %2107 = vst.msk [vmem:[#allocation2 + $0x8] sm:$0xff] %vm287, %v2091
      %2108 = vst.msk [vmem:[#allocation2 + $0x10] sm:$0xff] %vm287, %v2092
      %2109 = vst.msk [vmem:[#allocation2 + $0x18] sm:$0xff] %vm287, %v2093
      %2110 = vst.msk [vmem:[#allocation2 + $0x20] sm:$0xff] %vm287, %v2094
      %2111 = vst.msk [vmem:[#allocation2 + $0x28] sm:$0xff] %vm287, %v2095
      %2112 = vst.msk [vmem:[#allocation2 + $0x30] sm:$0xff] %vm287, %v2096
      %2113 = vst.msk [vmem:[#allocation2 + $0x38] sm:$0xff] %vm287, %v2097
      %v2114 = vld [vmem:[%s2041] sm:$0xf]
      %v2115 = vld [vmem:[%s2041 + $0x4] sm:$0xf]
      %v2116 = vld [vmem:[%s2041 + $0x8] sm:$0x1]
      %v2117 = vld [vmem:[%s2041 + $0xc] sm:$0xf]
      %v2118 = vld [vmem:[%s2041 + $0x10] sm:$0xf]
      %v2119 = vld [vmem:[%s2041 + $0x14] sm:$0x1]
      %v2120 = vld [vmem:[%s2041 + $0x18] sm:$0xf]
      %v2121 = vld [vmem:[%s2041 + $0x1c] sm:$0xf]
      %v2122 = vld [vmem:[%s2041 + $0x20] sm:$0x1]
      %v2123 = vld [vmem:[%s2041 + $0x24] sm:$0xf]
      %v2124 = vld [vmem:[%s2041 + $0x28] sm:$0xf]
      %v2125 = vld [vmem:[%s2041 + $0x2c] sm:$0x1]
      %v2126 = vld [vmem:[%s2041 + $0x30] sm:$0xf]
      %v2127 = vld [vmem:[%s2041 + $0x34] sm:$0xf]
      %v2128 = vld [vmem:[%s2041 + $0x38] sm:$0x1]
      %v2129 = vld [vmem:[%s2041 + $0x3c] sm:$0xf]
      %v2130 = vld [vmem:[%s2041 + $0x40] sm:$0xf]
      %v2131 = vld [vmem:[%s2041 + $0x44] sm:$0x1]
      %v2132 = vld [vmem:[%s2041 + $0x48] sm:$0xf]
      %v2133 = vld [vmem:[%s2041 + $0x4c] sm:$0xf]
      %v2134 = vld [vmem:[%s2041 + $0x50] sm:$0x1]
      %v2135 = vld [vmem:[%s2041 + $0x54] sm:$0xf]
      %v2136 = vld [vmem:[%s2041 + $0x58] sm:$0xf]
      %v2137 = vld [vmem:[%s2041 + $0x5c] sm:$0x1]
      %v2139 = vshrl.u32 %v2114, 16
      %v2141 = vrot.slane %v2139, 4
      %v2142 = vshll.u32 %v2114, 16
      %v2144 = vrot.slane %v2142, 5
      %v2145 = vor.u32 %v2141, %v2144
      %v2146 = vrot.slane %v2145, 4
      %v2148 = vshll.u32 %v2115, 16
      %v2150 = vrot.slane %v2148, 5
      %v2151 = vsel %vm322, %v2146, %v2150
      %v2152 = vshrl.u32 %v2115, 16
      %v2154 = vrot.slane %v2152, 4
      %v2155 = vor.u32 %v2154, %v2150
      %v2156 = vrot.slane %v2155, 4
      %v2158 = vshll.u32 %v2116, 16
      %v2160 = vrot.slane %v2158, 5
      %v2161 = vsel %vm322, %v2156, %v2160
      %v2163 = vshrl.u32 %v2117, 16
      %v2165 = vrot.slane %v2163, 4
      %v2166 = vshll.u32 %v2117, 16
      %v2168 = vrot.slane %v2166, 5
      %v2169 = vor.u32 %v2165, %v2168
      %v2170 = vrot.slane %v2169, 4
      %v2172 = vshll.u32 %v2118, 16
      %v2174 = vrot.slane %v2172, 5
      %v2175 = vsel %vm322, %v2170, %v2174
      %v2176 = vshrl.u32 %v2118, 16
      %v2178 = vrot.slane %v2176, 4
      %v2179 = vor.u32 %v2178, %v2174
      %v2180 = vrot.slane %v2179, 4
      %v2182 = vshll.u32 %v2119, 16
      %v2184 = vrot.slane %v2182, 5
      %v2185 = vsel %vm322, %v2180, %v2184
      %v2187 = vshrl.u32 %v2120, 16
      %v2189 = vrot.slane %v2187, 4
      %v2190 = vshll.u32 %v2120, 16
      %v2192 = vrot.slane %v2190, 5
      %v2193 = vor.u32 %v2189, %v2192
      %v2194 = vrot.slane %v2193, 4
      %v2196 = vshll.u32 %v2121, 16
      %v2198 = vrot.slane %v2196, 5
      %v2199 = vsel %vm322, %v2194, %v2198
      %v2200 = vshrl.u32 %v2121, 16
      %v2202 = vrot.slane %v2200, 4
      %v2203 = vor.u32 %v2202, %v2198
      %v2204 = vrot.slane %v2203, 4
      %v2206 = vshll.u32 %v2122, 16
      %v2208 = vrot.slane %v2206, 5
      %v2209 = vsel %vm322, %v2204, %v2208
      %v2211 = vshrl.u32 %v2123, 16
      %v2213 = vrot.slane %v2211, 4
      %v2214 = vshll.u32 %v2123, 16
      %v2216 = vrot.slane %v2214, 5
      %v2217 = vor.u32 %v2213, %v2216
      %v2218 = vrot.slane %v2217, 4
      %v2220 = vshll.u32 %v2124, 16
      %v2222 = vrot.slane %v2220, 5
      %v2223 = vsel %vm322, %v2218, %v2222
      %v2224 = vshrl.u32 %v2124, 16
      %v2226 = vrot.slane %v2224, 4
      %v2227 = vor.u32 %v2226, %v2222
      %v2228 = vrot.slane %v2227, 4
      %v2230 = vshll.u32 %v2125, 16
      %v2232 = vrot.slane %v2230, 5
      %v2233 = vsel %vm322, %v2228, %v2232
      %v2235 = vshrl.u32 %v2126, 16
      %v2237 = vrot.slane %v2235, 4
      %v2238 = vshll.u32 %v2126, 16
      %v2240 = vrot.slane %v2238, 5
      %v2241 = vor.u32 %v2237, %v2240
      %v2242 = vrot.slane %v2241, 4
      %v2244 = vshll.u32 %v2127, 16
      %v2246 = vrot.slane %v2244, 5
      %v2247 = vsel %vm322, %v2242, %v2246
      %v2248 = vshrl.u32 %v2127, 16
      %v2250 = vrot.slane %v2248, 4
      %v2251 = vor.u32 %v2250, %v2246
      %v2252 = vrot.slane %v2251, 4
      %v2254 = vshll.u32 %v2128, 16
      %v2256 = vrot.slane %v2254, 5
      %v2257 = vsel %vm322, %v2252, %v2256
      %v2259 = vshrl.u32 %v2129, 16
      %v2261 = vrot.slane %v2259, 4
      %v2262 = vshll.u32 %v2129, 16
      %v2264 = vrot.slane %v2262, 5
      %v2265 = vor.u32 %v2261, %v2264
      %v2266 = vrot.slane %v2265, 4
      %v2268 = vshll.u32 %v2130, 16
      %v2270 = vrot.slane %v2268, 5
      %v2271 = vsel %vm322, %v2266, %v2270
      %v2272 = vshrl.u32 %v2130, 16
      %v2274 = vrot.slane %v2272, 4
      %v2275 = vor.u32 %v2274, %v2270
      %v2276 = vrot.slane %v2275, 4
      %v2278 = vshll.u32 %v2131, 16
      %v2280 = vrot.slane %v2278, 5
      %v2281 = vsel %vm322, %v2276, %v2280
      %v2283 = vshrl.u32 %v2132, 16
      %v2285 = vrot.slane %v2283, 4
      %v2286 = vshll.u32 %v2132, 16
      %v2288 = vrot.slane %v2286, 5
      %v2289 = vor.u32 %v2285, %v2288
      %v2290 = vrot.slane %v2289, 4
      %v2292 = vshll.u32 %v2133, 16
      %v2294 = vrot.slane %v2292, 5
      %v2295 = vsel %vm322, %v2290, %v2294
      %v2296 = vshrl.u32 %v2133, 16
      %v2298 = vrot.slane %v2296, 4
      %v2299 = vor.u32 %v2298, %v2294
      %v2300 = vrot.slane %v2299, 4
      %v2302 = vshll.u32 %v2134, 16
      %v2304 = vrot.slane %v2302, 5
      %v2305 = vsel %vm322, %v2300, %v2304
      %v2307 = vshrl.u32 %v2135, 16
      %v2309 = vrot.slane %v2307, 4
      %v2310 = vshll.u32 %v2135, 16
      %v2312 = vrot.slane %v2310, 5
      %v2313 = vor.u32 %v2309, %v2312
      %v2314 = vrot.slane %v2313, 4
      %v2316 = vshll.u32 %v2136, 16
      %v2318 = vrot.slane %v2316, 5
      %v2319 = vsel %vm322, %v2314, %v2318
      %v2320 = vshrl.u32 %v2136, 16
      %v2322 = vrot.slane %v2320, 4
      %v2323 = vor.u32 %v2322, %v2318
      %v2324 = vrot.slane %v2323, 4
      %v2326 = vshll.u32 %v2137, 16
      %v2328 = vrot.slane %v2326, 5
      %v2329 = vsel %vm322, %v2324, %v2328
      %v2330 = vunpack.c.l.b16 %v2151
      %v2331 = vunpack.c.l.b16 %v2161
      %v2332 = vunpack.c.l.b16 %v2175
      %v2333 = vunpack.c.l.b16 %v2185
      %v2334 = vunpack.c.l.b16 %v2199
      %v2335 = vunpack.c.l.b16 %v2209
      %v2336 = vunpack.c.l.b16 %v2223
      %v2337 = vunpack.c.l.b16 %v2233
      %v2338 = vunpack.c.l.b16 %v2247
      %v2339 = vunpack.c.l.b16 %v2257
      %v2340 = vunpack.c.l.b16 %v2271
      %v2341 = vunpack.c.l.b16 %v2281
      %v2342 = vunpack.c.l.b16 %v2295
      %v2343 = vunpack.c.l.b16 %v2305
      %v2344 = vunpack.c.l.b16 %v2319
      %v2345 = vunpack.c.l.b16 %v2329
      %v2346 = vpack.c.b16 %v2331, %v2330
      %v2347 = vpack.c.b16 %v2333, %v2332
      %v2348 = vpack.c.b16 %v2335, %v2334
      %v2349 = vpack.c.b16 %v2337, %v2336
      %v2350 = vpack.c.b16 %v2339, %v2338
      %v2351 = vpack.c.b16 %v2341, %v2340
      %v2352 = vpack.c.b16 %v2343, %v2342
      %v2353 = vpack.c.b16 %v2345, %v2344
      %2354 = vrot.lane.b32.xlu0 %v2346, 4
      %v2355 = vpop.permute.xlu0 %2354
      %2356 = vrot.lane.b32.xlu0 %v2347, 4
      %v2357 = vpop.permute.xlu0 %2356
      %2358 = vrot.lane.b32.xlu0 %v2348, 4
      %v2359 = vpop.permute.xlu0 %2358
      %2360 = vrot.lane.b32.xlu0 %v2349, 4
      %v2361 = vpop.permute.xlu0 %2360
      %2362 = vrot.lane.b32.xlu0 %v2350, 4
      %v2363 = vpop.permute.xlu0 %2362
      %2364 = vrot.lane.b32.xlu0 %v2351, 4
      %v2365 = vpop.permute.xlu0 %2364
      %2366 = vrot.lane.b32.xlu0 %v2352, 4
      %v2367 = vpop.permute.xlu0 %2366
      %2368 = vrot.lane.b32.xlu0 %v2353, 4
      %v2369 = vpop.permute.xlu0 %2368
      %2378 = vst.msk [vmem:[#allocation2] sm:$0xff] %vm563, %v2355
      %2379 = vst.msk [vmem:[#allocation2 + $0x8] sm:$0xff] %vm563, %v2357
      %2380 = vst.msk [vmem:[#allocation2 + $0x10] sm:$0xff] %vm563, %v2359
      %2381 = vst.msk [vmem:[#allocation2 + $0x18] sm:$0xff] %vm563, %v2361
      %2382 = vst.msk [vmem:[#allocation2 + $0x20] sm:$0xff] %vm563, %v2363
      %2383 = vst.msk [vmem:[#allocation2 + $0x28] sm:$0xff] %vm563, %v2365
      %2384 = vst.msk [vmem:[#allocation2 + $0x30] sm:$0xff] %vm563, %v2367
      %2385 = vst.msk [vmem:[#allocation2 + $0x38] sm:$0xff] %vm563, %v2369
      %v2386 = vld [vmem:[%s2041] sm:$0xe]
      %v2387 = vld [vmem:[%s2041 + $0x4] sm:$0xf]
      %v2388 = vld [vmem:[%s2041 + $0x8] sm:$0x1]
      %v2389 = vld [vmem:[%s2041 + $0xc] sm:$0xe]
      %v2390 = vld [vmem:[%s2041 + $0x10] sm:$0xf]
      %v2391 = vld [vmem:[%s2041 + $0x14] sm:$0x1]
      %v2392 = vld [vmem:[%s2041 + $0x18] sm:$0xe]
      %v2393 = vld [vmem:[%s2041 + $0x1c] sm:$0xf]
      %v2394 = vld [vmem:[%s2041 + $0x20] sm:$0x1]
      %v2395 = vld [vmem:[%s2041 + $0x24] sm:$0xe]
      %v2396 = vld [vmem:[%s2041 + $0x28] sm:$0xf]
      %v2397 = vld [vmem:[%s2041 + $0x2c] sm:$0x1]
      %v2398 = vld [vmem:[%s2041 + $0x30] sm:$0xe]
      %v2399 = vld [vmem:[%s2041 + $0x34] sm:$0xf]
      %v2400 = vld [vmem:[%s2041 + $0x38] sm:$0x1]
      %v2401 = vld [vmem:[%s2041 + $0x3c] sm:$0xe]
      %v2402 = vld [vmem:[%s2041 + $0x40] sm:$0xf]
      %v2403 = vld [vmem:[%s2041 + $0x44] sm:$0x1]
      %v2404 = vld [vmem:[%s2041 + $0x48] sm:$0xe]
      %v2405 = vld [vmem:[%s2041 + $0x4c] sm:$0xf]
      %v2406 = vld [vmem:[%s2041 + $0x50] sm:$0x1]
      %v2407 = vld [vmem:[%s2041 + $0x54] sm:$0xe]
      %v2408 = vld [vmem:[%s2041 + $0x58] sm:$0xf]
      %v2409 = vld [vmem:[%s2041 + $0x5c] sm:$0x1]
      %v2434 = vrot.slane %v2386, 5
      %v2435 = vrot.slane %v2434, 4
      %v2436 = vrot.slane %v2387, 5
      %v2437 = vsel %vm622, %v2435, %v2436
      %v2438 = vrot.slane %v2436, 4
      %v2439 = vrot.slane %v2388, 5
      %v2440 = vsel %vm622, %v2438, %v2439
      %v2441 = vrot.slane %v2389, 5
      %v2442 = vrot.slane %v2441, 4
      %v2443 = vrot.slane %v2390, 5
      %v2444 = vsel %vm622, %v2442, %v2443
      %v2445 = vrot.slane %v2443, 4
      %v2446 = vrot.slane %v2391, 5
      %v2447 = vsel %vm622, %v2445, %v2446
      %v2448 = vrot.slane %v2392, 5
      %v2449 = vrot.slane %v2448, 4
      %v2450 = vrot.slane %v2393, 5
      %v2451 = vsel %vm622, %v2449, %v2450
      %v2452 = vrot.slane %v2450, 4
      %v2453 = vrot.slane %v2394, 5
      %v2454 = vsel %vm622, %v2452, %v2453
      %v2455 = vrot.slane %v2395, 5
      %v2456 = vrot.slane %v2455, 4
      %v2457 = vrot.slane %v2396, 5
      %v2458 = vsel %vm622, %v2456, %v2457
      %v2459 = vrot.slane %v2457, 4
      %v2460 = vrot.slane %v2397, 5
      %v2461 = vsel %vm622, %v2459, %v2460
      %v2462 = vrot.slane %v2398, 5
      %v2463 = vrot.slane %v2462, 4
      %v2464 = vrot.slane %v2399, 5
      %v2465 = vsel %vm622, %v2463, %v2464
      %v2466 = vrot.slane %v2464, 4
      %v2467 = vrot.slane %v2400, 5
      %v2468 = vsel %vm622, %v2466, %v2467
      %v2469 = vrot.slane %v2401, 5
      %v2470 = vrot.slane %v2469, 4
      %v2471 = vrot.slane %v2402, 5
      %v2472 = vsel %vm622, %v2470, %v2471
      %v2473 = vrot.slane %v2471, 4
      %v2474 = vrot.slane %v2403, 5
      %v2475 = vsel %vm622, %v2473, %v2474
      %v2476 = vrot.slane %v2404, 5
      %v2477 = vrot.slane %v2476, 4
      %v2478 = vrot.slane %v2405, 5
      %v2479 = vsel %vm622, %v2477, %v2478
      %v2480 = vrot.slane %v2478, 4
      %v2481 = vrot.slane %v2406, 5
      %v2482 = vsel %vm622, %v2480, %v2481
      %v2483 = vrot.slane %v2407, 5
      %v2484 = vrot.slane %v2483, 4
      %v2485 = vrot.slane %v2408, 5
      %v2486 = vsel %vm622, %v2484, %v2485
      %v2487 = vrot.slane %v2485, 4
      %v2488 = vrot.slane %v2409, 5
      %v2489 = vsel %vm622, %v2487, %v2488
      %v2490 = vunpack.c.l.b16 %v2437
      %v2491 = vunpack.c.l.b16 %v2440
      %v2492 = vunpack.c.l.b16 %v2444
      %v2493 = vunpack.c.l.b16 %v2447
      %v2494 = vunpack.c.l.b16 %v2451
      %v2495 = vunpack.c.l.b16 %v2454
      %v2496 = vunpack.c.l.b16 %v2458
      %v2497 = vunpack.c.l.b16 %v2461
      %v2498 = vunpack.c.l.b16 %v2465
      %v2499 = vunpack.c.l.b16 %v2468
      %v2500 = vunpack.c.l.b16 %v2472
      %v2501 = vunpack.c.l.b16 %v2475
      %v2502 = vunpack.c.l.b16 %v2479
      %v2503 = vunpack.c.l.b16 %v2482
      %v2504 = vunpack.c.l.b16 %v2486
      %v2505 = vunpack.c.l.b16 %v2489
      %v2506 = vpack.c.b16 %v2491, %v2490
      %v2507 = vpack.c.b16 %v2493, %v2492
      %v2508 = vpack.c.b16 %v2495, %v2494
      %v2509 = vpack.c.b16 %v2497, %v2496
      %v2510 = vpack.c.b16 %v2499, %v2498
      %v2511 = vpack.c.b16 %v2501, %v2500
      %v2512 = vpack.c.b16 %v2503, %v2502
      %v2513 = vpack.c.b16 %v2505, %v2504
      %2514 = vrot.lane.b32.xlu0 %v2506, 8
      %v2515 = vpop.permute.xlu0 %2514
      %2516 = vrot.lane.b32.xlu0 %v2507, 8
      %v2517 = vpop.permute.xlu0 %2516
      %2518 = vrot.lane.b32.xlu0 %v2508, 8
      %v2519 = vpop.permute.xlu0 %2518
      %2520 = vrot.lane.b32.xlu0 %v2509, 8
      %v2521 = vpop.permute.xlu0 %2520
      %2522 = vrot.lane.b32.xlu0 %v2510, 8
      %v2523 = vpop.permute.xlu0 %2522
      %2524 = vrot.lane.b32.xlu0 %v2511, 8
      %v2525 = vpop.permute.xlu0 %2524
      %2526 = vrot.lane.b32.xlu0 %v2512, 8
      %v2527 = vpop.permute.xlu0 %2526
      %2528 = vrot.lane.b32.xlu0 %v2513, 8
      %v2529 = vpop.permute.xlu0 %2528
      %2538 = vst.msk [vmem:[#allocation2] sm:$0xff] %vm727, %v2515
      %2539 = vst.msk [vmem:[#allocation2 + $0x8] sm:$0xff] %vm727, %v2517
      %2540 = vst.msk [vmem:[#allocation2 + $0x10] sm:$0xff] %vm727, %v2519
      %2541 = vst.msk [vmem:[#allocation2 + $0x18] sm:$0xff] %vm727, %v2521
      %2542 = vst.msk [vmem:[#allocation2 + $0x20] sm:$0xff] %vm727, %v2523
      %2543 = vst.msk [vmem:[#allocation2 + $0x28] sm:$0xff] %vm727, %v2525
      %2544 = vst.msk [vmem:[#allocation2 + $0x30] sm:$0xff] %vm727, %v2527
      %2545 = vst.msk [vmem:[#allocation2 + $0x38] sm:$0xff] %vm727, %v2529
      %s2546 = scalar_lea.vmem %s206, 108
      %v2547 = vld [vmem:[%s2546] sm:$0xf]
      %v2548 = vld [vmem:[%s2546 + $0x4] sm:$0xf]
      %v2549 = vld [vmem:[%s2546 + $0xc] sm:$0xf]
      %v2550 = vld [vmem:[%s2546 + $0x10] sm:$0xf]
      %v2551 = vld [vmem:[%s2546 + $0x18] sm:$0xf]
      %v2552 = vld [vmem:[%s2546 + $0x1c] sm:$0xf]
      %v2553 = vld [vmem:[%s2546 + $0x24] sm:$0xf]
      %v2554 = vld [vmem:[%s2546 + $0x28] sm:$0xf]
      %v2555 = vld [vmem:[%s2546 + $0x30] sm:$0xf]
      %v2556 = vld [vmem:[%s2546 + $0x34] sm:$0xf]
      %v2557 = vld [vmem:[%s2546 + $0x3c] sm:$0xf]
      %v2558 = vld [vmem:[%s2546 + $0x40] sm:$0xf]
      %v2559 = vld [vmem:[%s2546 + $0x48] sm:$0xf]
      %v2560 = vld [vmem:[%s2546 + $0x4c] sm:$0xf]
      %v2561 = vld [vmem:[%s2546 + $0x54] sm:$0xf]
      %v2562 = vld [vmem:[%s2546 + $0x58] sm:$0xf]
      %v2579 = vunpack.c.l.b16 %v2547
      %v2580 = vunpack.c.l.b16 %v2548
      %v2581 = vunpack.c.l.b16 %v2549
      %v2582 = vunpack.c.l.b16 %v2550
      %v2583 = vunpack.c.l.b16 %v2551
      %v2584 = vunpack.c.l.b16 %v2552
      %v2585 = vunpack.c.l.b16 %v2553
      %v2586 = vunpack.c.l.b16 %v2554
      %v2587 = vunpack.c.l.b16 %v2555
      %v2588 = vunpack.c.l.b16 %v2556
      %v2589 = vunpack.c.l.b16 %v2557
      %v2590 = vunpack.c.l.b16 %v2558
      %v2591 = vunpack.c.l.b16 %v2559
      %v2592 = vunpack.c.l.b16 %v2560
      %v2593 = vunpack.c.l.b16 %v2561
      %v2594 = vunpack.c.l.b16 %v2562
      %v2595 = vpack.c.b16 %v2580, %v2579
      %v2596 = vpack.c.b16 %v2582, %v2581
      %v2597 = vpack.c.b16 %v2584, %v2583
      %v2598 = vpack.c.b16 %v2586, %v2585
      %v2599 = vpack.c.b16 %v2588, %v2587
      %v2600 = vpack.c.b16 %v2590, %v2589
      %v2601 = vpack.c.b16 %v2592, %v2591
      %v2602 = vpack.c.b16 %v2594, %v2593
      %2603 = vrot.lane.b32.xlu0 %v2595, 12
      %v2604 = vpop.permute.xlu0 %2603
      %2605 = vrot.lane.b32.xlu0 %v2596, 12
      %v2606 = vpop.permute.xlu0 %2605
      %2607 = vrot.lane.b32.xlu0 %v2597, 12
      %v2608 = vpop.permute.xlu0 %2607
      %2609 = vrot.lane.b32.xlu0 %v2598, 12
      %v2610 = vpop.permute.xlu0 %2609
      %2611 = vrot.lane.b32.xlu0 %v2599, 12
      %v2612 = vpop.permute.xlu0 %2611
      %2613 = vrot.lane.b32.xlu0 %v2600, 12
      %v2614 = vpop.permute.xlu0 %2613
      %2615 = vrot.lane.b32.xlu0 %v2601, 12
      %v2616 = vpop.permute.xlu0 %2615
      %2617 = vrot.lane.b32.xlu0 %v2602, 12
      %v2618 = vpop.permute.xlu0 %2617
      %2627 = vst.msk [vmem:[#allocation2] sm:$0xff] %vm817, %v2604
      %2628 = vst.msk [vmem:[#allocation2 + $0x8] sm:$0xff] %vm817, %v2606
      %2629 = vst.msk [vmem:[#allocation2 + $0x10] sm:$0xff] %vm817, %v2608
      %2630 = vst.msk [vmem:[#allocation2 + $0x18] sm:$0xff] %vm817, %v2610
      %2631 = vst.msk [vmem:[#allocation2 + $0x20] sm:$0xff] %vm817, %v2612
      %2632 = vst.msk [vmem:[#allocation2 + $0x28] sm:$0xff] %vm817, %v2614
      %2633 = vst.msk [vmem:[#allocation2 + $0x30] sm:$0xff] %vm817, %v2616
      %2634 = vst.msk [vmem:[#allocation2 + $0x38] sm:$0xff] %vm817, %v2618
      %v2635 = vld [vmem:[%s2546] sm:$0xf]
      %v2636 = vld [vmem:[%s2546 + $0x4] sm:$0xf]
      %v2637 = vld [vmem:[%s2546 + $0x8] sm:$0x1]
      %v2638 = vld [vmem:[%s2546 + $0xc] sm:$0xf]
      %v2639 = vld [vmem:[%s2546 + $0x10] sm:$0xf]
      %v2640 = vld [vmem:[%s2546 + $0x14] sm:$0x1]
      %v2641 = vld [vmem:[%s2546 + $0x18] sm:$0xf]
      %v2642 = vld [vmem:[%s2546 + $0x1c] sm:$0xf]
      %v2643 = vld [vmem:[%s2546 + $0x20] sm:$0x1]
      %v2644 = vld [vmem:[%s2546 + $0x24] sm:$0xf]
      %v2645 = vld [vmem:[%s2546 + $0x28] sm:$0xf]
      %v2646 = vld [vmem:[%s2546 + $0x2c] sm:$0x1]
      %v2647 = vld [vmem:[%s2546 + $0x30] sm:$0xf]
      %v2648 = vld [vmem:[%s2546 + $0x34] sm:$0xf]
      %v2649 = vld [vmem:[%s2546 + $0x38] sm:$0x1]
      %v2650 = vld [vmem:[%s2546 + $0x3c] sm:$0xf]
      %v2651 = vld [vmem:[%s2546 + $0x40] sm:$0xf]
      %v2652 = vld [vmem:[%s2546 + $0x44] sm:$0x1]
      %v2653 = vld [vmem:[%s2546 + $0x48] sm:$0xf]
      %v2654 = vld [vmem:[%s2546 + $0x4c] sm:$0xf]
      %v2655 = vld [vmem:[%s2546 + $0x50] sm:$0x1]
      %v2656 = vld [vmem:[%s2546 + $0x54] sm:$0xf]
      %v2657 = vld [vmem:[%s2546 + $0x58] sm:$0xf]
      %v2658 = vld [vmem:[%s2546 + $0x5c] sm:$0x1]
      %v2660 = vshrl.u32 %v2635, 16
      %v2662 = vrot.slane %v2660, 4
      %v2663 = vshll.u32 %v2635, 16
      %v2665 = vrot.slane %v2663, 5
      %v2666 = vor.u32 %v2662, %v2665
      %v2667 = vrot.slane %v2666, 4
      %v2669 = vshll.u32 %v2636, 16
      %v2671 = vrot.slane %v2669, 5
      %v2672 = vsel %vm322, %v2667, %v2671
      %v2673 = vshrl.u32 %v2636, 16
      %v2675 = vrot.slane %v2673, 4
      %v2676 = vor.u32 %v2675, %v2671
      %v2677 = vrot.slane %v2676, 4
      %v2679 = vshll.u32 %v2637, 16
      %v2681 = vrot.slane %v2679, 5
      %v2682 = vsel %vm322, %v2677, %v2681
      %v2684 = vshrl.u32 %v2638, 16
      %v2686 = vrot.slane %v2684, 4
      %v2687 = vshll.u32 %v2638, 16
      %v2689 = vrot.slane %v2687, 5
      %v2690 = vor.u32 %v2686, %v2689
      %v2691 = vrot.slane %v2690, 4
      %v2693 = vshll.u32 %v2639, 16
      %v2695 = vrot.slane %v2693, 5
      %v2696 = vsel %vm322, %v2691, %v2695
      %v2697 = vshrl.u32 %v2639, 16
      %v2699 = vrot.slane %v2697, 4
      %v2700 = vor.u32 %v2699, %v2695
      %v2701 = vrot.slane %v2700, 4
      %v2703 = vshll.u32 %v2640, 16
      %v2705 = vrot.slane %v2703, 5
      %v2706 = vsel %vm322, %v2701, %v2705
      %v2708 = vshrl.u32 %v2641, 16
      %v2710 = vrot.slane %v2708, 4
      %v2711 = vshll.u32 %v2641, 16
      %v2713 = vrot.slane %v2711, 5
      %v2714 = vor.u32 %v2710, %v2713
      %v2715 = vrot.slane %v2714, 4
      %v2717 = vshll.u32 %v2642, 16
      %v2719 = vrot.slane %v2717, 5
      %v2720 = vsel %vm322, %v2715, %v2719
      %v2721 = vshrl.u32 %v2642, 16
      %v2723 = vrot.slane %v2721, 4
      %v2724 = vor.u32 %v2723, %v2719
      %v2725 = vrot.slane %v2724, 4
      %v2727 = vshll.u32 %v2643, 16
      %v2729 = vrot.slane %v2727, 5
      %v2730 = vsel %vm322, %v2725, %v2729
      %v2732 = vshrl.u32 %v2644, 16
      %v2734 = vrot.slane %v2732, 4
      %v2735 = vshll.u32 %v2644, 16
      %v2737 = vrot.slane %v2735, 5
      %v2738 = vor.u32 %v2734, %v2737
      %v2739 = vrot.slane %v2738, 4
      %v2741 = vshll.u32 %v2645, 16
      %v2743 = vrot.slane %v2741, 5
      %v2744 = vsel %vm322, %v2739, %v2743
      %v2745 = vshrl.u32 %v2645, 16
      %v2747 = vrot.slane %v2745, 4
      %v2748 = vor.u32 %v2747, %v2743
      %v2749 = vrot.slane %v2748, 4
      %v2751 = vshll.u32 %v2646, 16
      %v2753 = vrot.slane %v2751, 5
      %v2754 = vsel %vm322, %v2749, %v2753
      %v2756 = vshrl.u32 %v2647, 16
      %v2758 = vrot.slane %v2756, 4
      %v2759 = vshll.u32 %v2647, 16
      %v2761 = vrot.slane %v2759, 5
      %v2762 = vor.u32 %v2758, %v2761
      %v2763 = vrot.slane %v2762, 4
      %v2765 = vshll.u32 %v2648, 16
      %v2767 = vrot.slane %v2765, 5
      %v2768 = vsel %vm322, %v2763, %v2767
      %v2769 = vshrl.u32 %v2648, 16
      %v2771 = vrot.slane %v2769, 4
      %v2772 = vor.u32 %v2771, %v2767
      %v2773 = vrot.slane %v2772, 4
      %v2775 = vshll.u32 %v2649, 16
      %v2777 = vrot.slane %v2775, 5
      %v2778 = vsel %vm322, %v2773, %v2777
      %v2780 = vshrl.u32 %v2650, 16
      %v2782 = vrot.slane %v2780, 4
      %v2783 = vshll.u32 %v2650, 16
      %v2785 = vrot.slane %v2783, 5
      %v2786 = vor.u32 %v2782, %v2785
      %v2787 = vrot.slane %v2786, 4
      %v2789 = vshll.u32 %v2651, 16
      %v2791 = vrot.slane %v2789, 5
      %v2792 = vsel %vm322, %v2787, %v2791
      %v2793 = vshrl.u32 %v2651, 16
      %v2795 = vrot.slane %v2793, 4
      %v2796 = vor.u32 %v2795, %v2791
      %v2797 = vrot.slane %v2796, 4
      %v2799 = vshll.u32 %v2652, 16
      %v2801 = vrot.slane %v2799, 5
      %v2802 = vsel %vm322, %v2797, %v2801
      %v2804 = vshrl.u32 %v2653, 16
      %v2806 = vrot.slane %v2804, 4
      %v2807 = vshll.u32 %v2653, 16
      %v2809 = vrot.slane %v2807, 5
      %v2810 = vor.u32 %v2806, %v2809
      %v2811 = vrot.slane %v2810, 4
      %v2813 = vshll.u32 %v2654, 16
      %v2815 = vrot.slane %v2813, 5
      %v2816 = vsel %vm322, %v2811, %v2815
      %v2817 = vshrl.u32 %v2654, 16
      %v2819 = vrot.slane %v2817, 4
      %v2820 = vor.u32 %v2819, %v2815
      %v2821 = vrot.slane %v2820, 4
      %v2823 = vshll.u32 %v2655, 16
      %v2825 = vrot.slane %v2823, 5
      %v2826 = vsel %vm322, %v2821, %v2825
      %v2828 = vshrl.u32 %v2656, 16
      %v2830 = vrot.slane %v2828, 4
      %v2831 = vshll.u32 %v2656, 16
      %v2833 = vrot.slane %v2831, 5
      %v2834 = vor.u32 %v2830, %v2833
      %v2835 = vrot.slane %v2834, 4
      %v2837 = vshll.u32 %v2657, 16
      %v2839 = vrot.slane %v2837, 5
      %v2840 = vsel %vm322, %v2835, %v2839
      %v2841 = vshrl.u32 %v2657, 16
      %v2843 = vrot.slane %v2841, 4
      %v2844 = vor.u32 %v2843, %v2839
      %v2845 = vrot.slane %v2844, 4
      %v2847 = vshll.u32 %v2658, 16
      %v2849 = vrot.slane %v2847, 5
      %v2850 = vsel %vm322, %v2845, %v2849
      %v2851 = vunpack.c.l.b16 %v2672
      %v2852 = vunpack.c.l.b16 %v2682
      %v2853 = vunpack.c.l.b16 %v2696
      %v2854 = vunpack.c.l.b16 %v2706
      %v2855 = vunpack.c.l.b16 %v2720
      %v2856 = vunpack.c.l.b16 %v2730
      %v2857 = vunpack.c.l.b16 %v2744
      %v2858 = vunpack.c.l.b16 %v2754
      %v2859 = vunpack.c.l.b16 %v2768
      %v2860 = vunpack.c.l.b16 %v2778
      %v2861 = vunpack.c.l.b16 %v2792
      %v2862 = vunpack.c.l.b16 %v2802
      %v2863 = vunpack.c.l.b16 %v2816
      %v2864 = vunpack.c.l.b16 %v2826
      %v2865 = vunpack.c.l.b16 %v2840
      %v2866 = vunpack.c.l.b16 %v2850
      %v2867 = vpack.c.b16 %v2852, %v2851
      %v2868 = vpack.c.b16 %v2854, %v2853
      %v2869 = vpack.c.b16 %v2856, %v2855
      %v2870 = vpack.c.b16 %v2858, %v2857
      %v2871 = vpack.c.b16 %v2860, %v2859
      %v2872 = vpack.c.b16 %v2862, %v2861
      %v2873 = vpack.c.b16 %v2864, %v2863
      %v2874 = vpack.c.b16 %v2866, %v2865
      %2875 = vrot.lane.b32.xlu0 %v2867, 16
      %v2876 = vpop.permute.xlu0 %2875
      %2877 = vrot.lane.b32.xlu0 %v2868, 16
      %v2878 = vpop.permute.xlu0 %2877
      %2879 = vrot.lane.b32.xlu0 %v2869, 16
      %v2880 = vpop.permute.xlu0 %2879
      %2881 = vrot.lane.b32.xlu0 %v2870, 16
      %v2882 = vpop.permute.xlu0 %2881
      %2883 = vrot.lane.b32.xlu0 %v2871, 16
      %v2884 = vpop.permute.xlu0 %2883
      %2885 = vrot.lane.b32.xlu0 %v2872, 16
      %v2886 = vpop.permute.xlu0 %2885
      %2887 = vrot.lane.b32.xlu0 %v2873, 16
      %v2888 = vpop.permute.xlu0 %2887
      %2889 = vrot.lane.b32.xlu0 %v2874, 16
      %v2890 = vpop.permute.xlu0 %2889
      %2899 = vst.msk [vmem:[#allocation2] sm:$0xff] %vm1090, %v2876
      %2900 = vst.msk [vmem:[#allocation2 + $0x8] sm:$0xff] %vm1090, %v2878
      %2901 = vst.msk [vmem:[#allocation2 + $0x10] sm:$0xff] %vm1090, %v2880
      %2902 = vst.msk [vmem:[#allocation2 + $0x18] sm:$0xff] %vm1090, %v2882
      %2903 = vst.msk [vmem:[#allocation2 + $0x20] sm:$0xff] %vm1090, %v2884
      %2904 = vst.msk [vmem:[#allocation2 + $0x28] sm:$0xff] %vm1090, %v2886
      %2905 = vst.msk [vmem:[#allocation2 + $0x30] sm:$0xff] %vm1090, %v2888
      %2906 = vst.msk [vmem:[#allocation2 + $0x38] sm:$0xff] %vm1090, %v2890
      %v2907 = vld [vmem:[%s2546] sm:$0xe]
      %v2908 = vld [vmem:[%s2546 + $0x4] sm:$0xf]
      %v2909 = vld [vmem:[%s2546 + $0x8] sm:$0x1]
      %v2910 = vld [vmem:[%s2546 + $0xc] sm:$0xe]
      %v2911 = vld [vmem:[%s2546 + $0x10] sm:$0xf]
      %v2912 = vld [vmem:[%s2546 + $0x14] sm:$0x1]
      %v2913 = vld [vmem:[%s2546 + $0x18] sm:$0xe]
      %v2914 = vld [vmem:[%s2546 + $0x1c] sm:$0xf]
      %v2915 = vld [vmem:[%s2546 + $0x20] sm:$0x1]
      %v2916 = vld [vmem:[%s2546 + $0x24] sm:$0xe]
      %v2917 = vld [vmem:[%s2546 + $0x28] sm:$0xf]
      %v2918 = vld [vmem:[%s2546 + $0x2c] sm:$0x1]
      %v2919 = vld [vmem:[%s2546 + $0x30] sm:$0xe]
      %v2920 = vld [vmem:[%s2546 + $0x34] sm:$0xf]
      %v2921 = vld [vmem:[%s2546 + $0x38] sm:$0x1]
      %v2922 = vld [vmem:[%s2546 + $0x3c] sm:$0xe]
      %v2923 = vld [vmem:[%s2546 + $0x40] sm:$0xf]
      %v2924 = vld [vmem:[%s2546 + $0x44] sm:$0x1]
      %v2925 = vld [vmem:[%s2546 + $0x48] sm:$0xe]
      %v2926 = vld [vmem:[%s2546 + $0x4c] sm:$0xf]
      %v2927 = vld [vmem:[%s2546 + $0x50] sm:$0x1]
      %v2928 = vld [vmem:[%s2546 + $0x54] sm:$0xe]
      %v2929 = vld [vmem:[%s2546 + $0x58] sm:$0xf]
      %v2930 = vld [vmem:[%s2546 + $0x5c] sm:$0x1]
      %v2955 = vrot.slane %v2907, 5
      %v2956 = vrot.slane %v2955, 4
      %v2957 = vrot.slane %v2908, 5
      %v2958 = vsel %vm622, %v2956, %v2957
      %v2959 = vrot.slane %v2957, 4
      %v2960 = vrot.slane %v2909, 5
      %v2961 = vsel %vm622, %v2959, %v2960
      %v2962 = vrot.slane %v2910, 5
      %v2963 = vrot.slane %v2962, 4
      %v2964 = vrot.slane %v2911, 5
      %v2965 = vsel %vm622, %v2963, %v2964
      %v2966 = vrot.slane %v2964, 4
      %v2967 = vrot.slane %v2912, 5
      %v2968 = vsel %vm622, %v2966, %v2967
      %v2969 = vrot.slane %v2913, 5
      %v2970 = vrot.slane %v2969, 4
      %v2971 = vrot.slane %v2914, 5
      %v2972 = vsel %vm622, %v2970, %v2971
      %v2973 = vrot.slane %v2971, 4
      %v2974 = vrot.slane %v2915, 5
      %v2975 = vsel %vm622, %v2973, %v2974
      %v2976 = vrot.slane %v2916, 5
      %v2977 = vrot.slane %v2976, 4
      %v2978 = vrot.slane %v2917, 5
      %v2979 = vsel %vm622, %v2977, %v2978
      %v2980 = vrot.slane %v2978, 4
      %v2981 = vrot.slane %v2918, 5
      %v2982 = vsel %vm622, %v2980, %v2981
      %v2983 = vrot.slane %v2919, 5
      %v2984 = vrot.slane %v2983, 4
      %v2985 = vrot.slane %v2920, 5
      %v2986 = vsel %vm622, %v2984, %v2985
      %v2987 = vrot.slane %v2985, 4
      %v2988 = vrot.slane %v2921, 5
      %v2989 = vsel %vm622, %v2987, %v2988
      %v2990 = vrot.slane %v2922, 5
      %v2991 = vrot.slane %v2990, 4
      %v2992 = vrot.slane %v2923, 5
      %v2993 = vsel %vm622, %v2991, %v2992
      %v2994 = vrot.slane %v2992, 4
      %v2995 = vrot.slane %v2924, 5
      %v2996 = vsel %vm622, %v2994, %v2995
      %v2997 = vrot.slane %v2925, 5
      %v2998 = vrot.slane %v2997, 4
      %v2999 = vrot.slane %v2926, 5
      %v3000 = vsel %vm622, %v2998, %v2999
      %v3001 = vrot.slane %v2999, 4
      %v3002 = vrot.slane %v2927, 5
      %v3003 = vsel %vm622, %v3001, %v3002
      %v3004 = vrot.slane %v2928, 5
      %v3005 = vrot.slane %v3004, 4
      %v3006 = vrot.slane %v2929, 5
      %v3007 = vsel %vm622, %v3005, %v3006
      %v3008 = vrot.slane %v3006, 4
      %v3009 = vrot.slane %v2930, 5
      %v3010 = vsel %vm622, %v3008, %v3009
      %v3011 = vunpack.c.l.b16 %v2958
      %v3012 = vunpack.c.l.b16 %v2961
      %v3013 = vunpack.c.l.b16 %v2965
      %v3014 = vunpack.c.l.b16 %v2968
      %v3015 = vunpack.c.l.b16 %v2972
      %v3016 = vunpack.c.l.b16 %v2975
      %v3017 = vunpack.c.l.b16 %v2979
      %v3018 = vunpack.c.l.b16 %v2982
      %v3019 = vunpack.c.l.b16 %v2986
      %v3020 = vunpack.c.l.b16 %v2989
      %v3021 = vunpack.c.l.b16 %v2993
      %v3022 = vunpack.c.l.b16 %v2996
      %v3023 = vunpack.c.l.b16 %v3000
      %v3024 = vunpack.c.l.b16 %v3003
      %v3025 = vunpack.c.l.b16 %v3007
      %v3026 = vunpack.c.l.b16 %v3010
      %v3027 = vpack.c.b16 %v3012, %v3011
      %v3028 = vpack.c.b16 %v3014, %v3013
      %v3029 = vpack.c.b16 %v3016, %v3015
      %v3030 = vpack.c.b16 %v3018, %v3017
      %v3031 = vpack.c.b16 %v3020, %v3019
      %v3032 = vpack.c.b16 %v3022, %v3021
      %v3033 = vpack.c.b16 %v3024, %v3023
      %v3034 = vpack.c.b16 %v3026, %v3025
      %3035 = vrot.lane.b32.xlu0 %v3027, 20
      %v3036 = vpop.permute.xlu0 %3035
      %3037 = vrot.lane.b32.xlu0 %v3028, 20
      %v3038 = vpop.permute.xlu0 %3037
      %3039 = vrot.lane.b32.xlu0 %v3029, 20
      %v3040 = vpop.permute.xlu0 %3039
      %3041 = vrot.lane.b32.xlu0 %v3030, 20
      %v3042 = vpop.permute.xlu0 %3041
      %3043 = vrot.lane.b32.xlu0 %v3031, 20
      %v3044 = vpop.permute.xlu0 %3043
      %3045 = vrot.lane.b32.xlu0 %v3032, 20
      %v3046 = vpop.permute.xlu0 %3045
      %3047 = vrot.lane.b32.xlu0 %v3033, 20
      %v3048 = vpop.permute.xlu0 %3047
      %3049 = vrot.lane.b32.xlu0 %v3034, 20
      %v3050 = vpop.permute.xlu0 %3049
      %3059 = vst.msk [vmem:[#allocation2] sm:$0xff] %vm1251, %v3036
      %3060 = vst.msk [vmem:[#allocation2 + $0x8] sm:$0xff] %vm1251, %v3038
      %3061 = vst.msk [vmem:[#allocation2 + $0x10] sm:$0xff] %vm1251, %v3040
      %3062 = vst.msk [vmem:[#allocation2 + $0x18] sm:$0xff] %vm1251, %v3042
      %3063 = vst.msk [vmem:[#allocation2 + $0x20] sm:$0xff] %vm1251, %v3044
      %3064 = vst.msk [vmem:[#allocation2 + $0x28] sm:$0xff] %vm1251, %v3046
      %3065 = vst.msk [vmem:[#allocation2 + $0x30] sm:$0xff] %vm1251, %v3048
      %3066 = vst.msk [vmem:[#allocation2 + $0x38] sm:$0xff] %vm1251, %v3050
      %s3067 = scalar_lea.vmem %s206, 120
      %v3068 = vld [vmem:[%s3067] sm:$0xf]
      %v3069 = vld [vmem:[%s3067 + $0x4] sm:$0xf]
      %v3070 = vld [vmem:[%s3067 + $0xc] sm:$0xf]
      %v3071 = vld [vmem:[%s3067 + $0x10] sm:$0xf]
      %v3072 = vld [vmem:[%s3067 + $0x18] sm:$0xf]
      %v3073 = vld [vmem:[%s3067 + $0x1c] sm:$0xf]
      %v3074 = vld [vmem:[%s3067 + $0x24] sm:$0xf]
      %v3075 = vld [vmem:[%s3067 + $0x28] sm:$0xf]
      %v3076 = vld [vmem:[%s3067 + $0x30] sm:$0xf]
      %v3077 = vld [vmem:[%s3067 + $0x34] sm:$0xf]
      %v3078 = vld [vmem:[%s3067 + $0x3c] sm:$0xf]
      %v3079 = vld [vmem:[%s3067 + $0x40] sm:$0xf]
      %v3080 = vld [vmem:[%s3067 + $0x48] sm:$0xf]
      %v3081 = vld [vmem:[%s3067 + $0x4c] sm:$0xf]
      %v3082 = vld [vmem:[%s3067 + $0x54] sm:$0xf]
      %v3083 = vld [vmem:[%s3067 + $0x58] sm:$0xf]
      %v3100 = vunpack.c.l.b16 %v3068
      %v3101 = vunpack.c.l.b16 %v3069
      %v3102 = vunpack.c.l.b16 %v3070
      %v3103 = vunpack.c.l.b16 %v3071
      %v3104 = vunpack.c.l.b16 %v3072
      %v3105 = vunpack.c.l.b16 %v3073
      %v3106 = vunpack.c.l.b16 %v3074
      %v3107 = vunpack.c.l.b16 %v3075
      %v3108 = vunpack.c.l.b16 %v3076
      %v3109 = vunpack.c.l.b16 %v3077
      %v3110 = vunpack.c.l.b16 %v3078
      %v3111 = vunpack.c.l.b16 %v3079
      %v3112 = vunpack.c.l.b16 %v3080
      %v3113 = vunpack.c.l.b16 %v3081
      %v3114 = vunpack.c.l.b16 %v3082
      %v3115 = vunpack.c.l.b16 %v3083
      %v3116 = vpack.c.b16 %v3101, %v3100
      %v3117 = vpack.c.b16 %v3103, %v3102
      %v3118 = vpack.c.b16 %v3105, %v3104
      %v3119 = vpack.c.b16 %v3107, %v3106
      %v3120 = vpack.c.b16 %v3109, %v3108
      %v3121 = vpack.c.b16 %v3111, %v3110
      %v3122 = vpack.c.b16 %v3113, %v3112
      %v3123 = vpack.c.b16 %v3115, %v3114
      %3124 = vrot.lane.b32.xlu0 %v3116, 24
      %v3125 = vpop.permute.xlu0 %3124
      %3126 = vrot.lane.b32.xlu0 %v3117, 24
      %v3127 = vpop.permute.xlu0 %3126
      %3128 = vrot.lane.b32.xlu0 %v3118, 24
      %v3129 = vpop.permute.xlu0 %3128
      %3130 = vrot.lane.b32.xlu0 %v3119, 24
      %v3131 = vpop.permute.xlu0 %3130
      %3132 = vrot.lane.b32.xlu0 %v3120, 24
      %v3133 = vpop.permute.xlu0 %3132
      %3134 = vrot.lane.b32.xlu0 %v3121, 24
      %v3135 = vpop.permute.xlu0 %3134
      %3136 = vrot.lane.b32.xlu0 %v3122, 24
      %v3137 = vpop.permute.xlu0 %3136
      %3138 = vrot.lane.b32.xlu0 %v3123, 24
      %v3139 = vpop.permute.xlu0 %3138
      %3148 = vst.msk [vmem:[#allocation2] sm:$0xff] %vm1341, %v3125
      %3149 = vst.msk [vmem:[#allocation2 + $0x8] sm:$0xff] %vm1341, %v3127
      %3150 = vst.msk [vmem:[#allocation2 + $0x10] sm:$0xff] %vm1341, %v3129
      %3151 = vst.msk [vmem:[#allocation2 + $0x18] sm:$0xff] %vm1341, %v3131
      %3152 = vst.msk [vmem:[#allocation2 + $0x20] sm:$0xff] %vm1341, %v3133
      %3153 = vst.msk [vmem:[#allocation2 + $0x28] sm:$0xff] %vm1341, %v3135
      %3154 = vst.msk [vmem:[#allocation2 + $0x30] sm:$0xff] %vm1341, %v3137
      %3155 = vst.msk [vmem:[#allocation2 + $0x38] sm:$0xff] %vm1341, %v3139
      %v3156 = vld [vmem:[%s3067] sm:$0xf]
      %v3157 = vld [vmem:[%s3067 + $0x4] sm:$0xf]
      %v3158 = vld [vmem:[%s3067 + $0x8] sm:$0x1]
      %v3159 = vld [vmem:[%s3067 + $0xc] sm:$0xf]
      %v3160 = vld [vmem:[%s3067 + $0x10] sm:$0xf]
      %v3161 = vld [vmem:[%s3067 + $0x14] sm:$0x1]
      %v3162 = vld [vmem:[%s3067 + $0x18] sm:$0xf]
      %v3163 = vld [vmem:[%s3067 + $0x1c] sm:$0xf]
      %v3164 = vld [vmem:[%s3067 + $0x20] sm:$0x1]
      %v3165 = vld [vmem:[%s3067 + $0x24] sm:$0xf]
      %v3166 = vld [vmem:[%s3067 + $0x28] sm:$0xf]
      %v3167 = vld [vmem:[%s3067 + $0x2c] sm:$0x1]
      %v3168 = vld [vmem:[%s3067 + $0x30] sm:$0xf]
      %v3169 = vld [vmem:[%s3067 + $0x34] sm:$0xf]
      %v3170 = vld [vmem:[%s3067 + $0x38] sm:$0x1]
      %v3171 = vld [vmem:[%s3067 + $0x3c] sm:$0xf]
      %v3172 = vld [vmem:[%s3067 + $0x40] sm:$0xf]
      %v3173 = vld [vmem:[%s3067 + $0x44] sm:$0x1]
      %v3174 = vld [vmem:[%s3067 + $0x48] sm:$0xf]
      %v3175 = vld [vmem:[%s3067 + $0x4c] sm:$0xf]
      %v3176 = vld [vmem:[%s3067 + $0x50] sm:$0x1]
      %v3177 = vld [vmem:[%s3067 + $0x54] sm:$0xf]
      %v3178 = vld [vmem:[%s3067 + $0x58] sm:$0xf]
      %v3179 = vld [vmem:[%s3067 + $0x5c] sm:$0x1]
      %v3181 = vshrl.u32 %v3156, 16
      %v3183 = vrot.slane %v3181, 4
      %v3184 = vshll.u32 %v3156, 16
      %v3186 = vrot.slane %v3184, 5
      %v3187 = vor.u32 %v3183, %v3186
      %v3188 = vrot.slane %v3187, 4
      %v3190 = vshll.u32 %v3157, 16
      %v3192 = vrot.slane %v3190, 5
      %v3193 = vsel %vm322, %v3188, %v3192
      %v3194 = vshrl.u32 %v3157, 16
      %v3196 = vrot.slane %v3194, 4
      %v3197 = vor.u32 %v3196, %v3192
      %v3198 = vrot.slane %v3197, 4
      %v3200 = vshll.u32 %v3158, 16
      %v3202 = vrot.slane %v3200, 5
      %v3203 = vsel %vm322, %v3198, %v3202
      %v3205 = vshrl.u32 %v3159, 16
      %v3207 = vrot.slane %v3205, 4
      %v3208 = vshll.u32 %v3159, 16
      %v3210 = vrot.slane %v3208, 5
      %v3211 = vor.u32 %v3207, %v3210
      %v3212 = vrot.slane %v3211, 4
      %v3214 = vshll.u32 %v3160, 16
      %v3216 = vrot.slane %v3214, 5
      %v3217 = vsel %vm322, %v3212, %v3216
      %v3218 = vshrl.u32 %v3160, 16
      %v3220 = vrot.slane %v3218, 4
      %v3221 = vor.u32 %v3220, %v3216
      %v3222 = vrot.slane %v3221, 4
      %v3224 = vshll.u32 %v3161, 16
      %v3226 = vrot.slane %v3224, 5
      %v3227 = vsel %vm322, %v3222, %v3226
      %v3229 = vshrl.u32 %v3162, 16
      %v3231 = vrot.slane %v3229, 4
      %v3232 = vshll.u32 %v3162, 16
      %v3234 = vrot.slane %v3232, 5
      %v3235 = vor.u32 %v3231, %v3234
      %v3236 = vrot.slane %v3235, 4
      %v3238 = vshll.u32 %v3163, 16
      %v3240 = vrot.slane %v3238, 5
      %v3241 = vsel %vm322, %v3236, %v3240
      %v3242 = vshrl.u32 %v3163, 16
      %v3244 = vrot.slane %v3242, 4
      %v3245 = vor.u32 %v3244, %v3240
      %v3246 = vrot.slane %v3245, 4
      %v3248 = vshll.u32 %v3164, 16
      %v3250 = vrot.slane %v3248, 5
      %v3251 = vsel %vm322, %v3246, %v3250
      %v3253 = vshrl.u32 %v3165, 16
      %v3255 = vrot.slane %v3253, 4
      %v3256 = vshll.u32 %v3165, 16
      %v3258 = vrot.slane %v3256, 5
      %v3259 = vor.u32 %v3255, %v3258
      %v3260 = vrot.slane %v3259, 4
      %v3262 = vshll.u32 %v3166, 16
      %v3264 = vrot.slane %v3262, 5
      %v3265 = vsel %vm322, %v3260, %v3264
      %v3266 = vshrl.u32 %v3166, 16
      %v3268 = vrot.slane %v3266, 4
      %v3269 = vor.u32 %v3268, %v3264
      %v3270 = vrot.slane %v3269, 4
      %v3272 = vshll.u32 %v3167, 16
      %v3274 = vrot.slane %v3272, 5
      %v3275 = vsel %vm322, %v3270, %v3274
      %v3277 = vshrl.u32 %v3168, 16
      %v3279 = vrot.slane %v3277, 4
      %v3280 = vshll.u32 %v3168, 16
      %v3282 = vrot.slane %v3280, 5
      %v3283 = vor.u32 %v3279, %v3282
      %v3284 = vrot.slane %v3283, 4
      %v3286 = vshll.u32 %v3169, 16
      %v3288 = vrot.slane %v3286, 5
      %v3289 = vsel %vm322, %v3284, %v3288
      %v3290 = vshrl.u32 %v3169, 16
      %v3292 = vrot.slane %v3290, 4
      %v3293 = vor.u32 %v3292, %v3288
      %v3294 = vrot.slane %v3293, 4
      %v3296 = vshll.u32 %v3170, 16
      %v3298 = vrot.slane %v3296, 5
      %v3299 = vsel %vm322, %v3294, %v3298
      %v3301 = vshrl.u32 %v3171, 16
      %v3303 = vrot.slane %v3301, 4
      %v3304 = vshll.u32 %v3171, 16
      %v3306 = vrot.slane %v3304, 5
      %v3307 = vor.u32 %v3303, %v3306
      %v3308 = vrot.slane %v3307, 4
      %v3310 = vshll.u32 %v3172, 16
      %v3312 = vrot.slane %v3310, 5
      %v3313 = vsel %vm322, %v3308, %v3312
      %v3314 = vshrl.u32 %v3172, 16
      %v3316 = vrot.slane %v3314, 4
      %v3317 = vor.u32 %v3316, %v3312
      %v3318 = vrot.slane %v3317, 4
      %v3320 = vshll.u32 %v3173, 16
      %v3322 = vrot.slane %v3320, 5
      %v3323 = vsel %vm322, %v3318, %v3322
      %v3325 = vshrl.u32 %v3174, 16
      %v3327 = vrot.slane %v3325, 4
      %v3328 = vshll.u32 %v3174, 16
      %v3330 = vrot.slane %v3328, 5
      %v3331 = vor.u32 %v3327, %v3330
      %v3332 = vrot.slane %v3331, 4
      %v3334 = vshll.u32 %v3175, 16
      %v3336 = vrot.slane %v3334, 5
      %v3337 = vsel %vm322, %v3332, %v3336
      %v3338 = vshrl.u32 %v3175, 16
      %v3340 = vrot.slane %v3338, 4
      %v3341 = vor.u32 %v3340, %v3336
      %v3342 = vrot.slane %v3341, 4
      %v3344 = vshll.u32 %v3176, 16
      %v3346 = vrot.slane %v3344, 5
      %v3347 = vsel %vm322, %v3342, %v3346
      %v3349 = vshrl.u32 %v3177, 16
      %v3351 = vrot.slane %v3349, 4
      %v3352 = vshll.u32 %v3177, 16
      %v3354 = vrot.slane %v3352, 5
      %v3355 = vor.u32 %v3351, %v3354
      %v3356 = vrot.slane %v3355, 4
      %v3358 = vshll.u32 %v3178, 16
      %v3360 = vrot.slane %v3358, 5
      %v3361 = vsel %vm322, %v3356, %v3360
      %v3362 = vshrl.u32 %v3178, 16
      %v3364 = vrot.slane %v3362, 4
      %v3365 = vor.u32 %v3364, %v3360
      %v3366 = vrot.slane %v3365, 4
      %v3368 = vshll.u32 %v3179, 16
      %v3370 = vrot.slane %v3368, 5
      %v3371 = vsel %vm322, %v3366, %v3370
      %v3372 = vunpack.c.l.b16 %v3193
      %v3373 = vunpack.c.l.b16 %v3203
      %v3374 = vunpack.c.l.b16 %v3217
      %v3375 = vunpack.c.l.b16 %v3227
      %v3376 = vunpack.c.l.b16 %v3241
      %v3377 = vunpack.c.l.b16 %v3251
      %v3378 = vunpack.c.l.b16 %v3265
      %v3379 = vunpack.c.l.b16 %v3275
      %v3380 = vunpack.c.l.b16 %v3289
      %v3381 = vunpack.c.l.b16 %v3299
      %v3382 = vunpack.c.l.b16 %v3313
      %v3383 = vunpack.c.l.b16 %v3323
      %v3384 = vunpack.c.l.b16 %v3337
      %v3385 = vunpack.c.l.b16 %v3347
      %v3386 = vunpack.c.l.b16 %v3361
      %v3387 = vunpack.c.l.b16 %v3371
      %v3388 = vpack.c.b16 %v3373, %v3372
      %v3389 = vpack.c.b16 %v3375, %v3374
      %v3390 = vpack.c.b16 %v3377, %v3376
      %v3391 = vpack.c.b16 %v3379, %v3378
      %v3392 = vpack.c.b16 %v3381, %v3380
      %v3393 = vpack.c.b16 %v3383, %v3382
      %v3394 = vpack.c.b16 %v3385, %v3384
      %v3395 = vpack.c.b16 %v3387, %v3386
      %3396 = vrot.lane.b32.xlu0 %v3388, 28
      %v3397 = vpop.permute.xlu0 %3396
      %3398 = vrot.lane.b32.xlu0 %v3389, 28
      %v3399 = vpop.permute.xlu0 %3398
      %3400 = vrot.lane.b32.xlu0 %v3390, 28
      %v3401 = vpop.permute.xlu0 %3400
      %3402 = vrot.lane.b32.xlu0 %v3391, 28
      %v3403 = vpop.permute.xlu0 %3402
      %3404 = vrot.lane.b32.xlu0 %v3392, 28
      %v3405 = vpop.permute.xlu0 %3404
      %3406 = vrot.lane.b32.xlu0 %v3393, 28
      %v3407 = vpop.permute.xlu0 %3406
      %3408 = vrot.lane.b32.xlu0 %v3394, 28
      %v3409 = vpop.permute.xlu0 %3408
      %3410 = vrot.lane.b32.xlu0 %v3395, 28
      %v3411 = vpop.permute.xlu0 %3410
      %3420 = vst.msk [vmem:[#allocation2] sm:$0xff] %vm1614, %v3397
      %3421 = vst.msk [vmem:[#allocation2 + $0x8] sm:$0xff] %vm1614, %v3399
      %3422 = vst.msk [vmem:[#allocation2 + $0x10] sm:$0xff] %vm1614, %v3401
      %3423 = vst.msk [vmem:[#allocation2 + $0x18] sm:$0xff] %vm1614, %v3403
      %3424 = vst.msk [vmem:[#allocation2 + $0x20] sm:$0xff] %vm1614, %v3405
      %3425 = vst.msk [vmem:[#allocation2 + $0x28] sm:$0xff] %vm1614, %v3407
      %3426 = vst.msk [vmem:[#allocation2 + $0x30] sm:$0xff] %vm1614, %v3409
      %3427 = vst.msk [vmem:[#allocation2 + $0x38] sm:$0xff] %vm1614, %v3411
      %v3428 = vld [vmem:[%s3067] sm:$0xe]
      %v3429 = vld [vmem:[%s3067 + $0x4] sm:$0xf]
      %v3430 = vld [vmem:[%s3067 + $0x8] sm:$0x1]
      %v3431 = vld [vmem:[%s3067 + $0xc] sm:$0xe]
      %v3432 = vld [vmem:[%s3067 + $0x10] sm:$0xf]
      %v3433 = vld [vmem:[%s3067 + $0x14] sm:$0x1]
      %v3434 = vld [vmem:[%s3067 + $0x18] sm:$0xe]
      %v3435 = vld [vmem:[%s3067 + $0x1c] sm:$0xf]
      %v3436 = vld [vmem:[%s3067 + $0x20] sm:$0x1]
      %v3437 = vld [vmem:[%s3067 + $0x24] sm:$0xe]
      %v3438 = vld [vmem:[%s3067 + $0x28] sm:$0xf]
      %v3439 = vld [vmem:[%s3067 + $0x2c] sm:$0x1]
      %v3440 = vld [vmem:[%s3067 + $0x30] sm:$0xe]
      %v3441 = vld [vmem:[%s3067 + $0x34] sm:$0xf]
      %v3442 = vld [vmem:[%s3067 + $0x38] sm:$0x1]
      %v3443 = vld [vmem:[%s3067 + $0x3c] sm:$0xe]
      %v3444 = vld [vmem:[%s3067 + $0x40] sm:$0xf]
      %v3445 = vld [vmem:[%s3067 + $0x44] sm:$0x1]
      %v3446 = vld [vmem:[%s3067 + $0x48] sm:$0xe]
      %v3447 = vld [vmem:[%s3067 + $0x4c] sm:$0xf]
      %v3448 = vld [vmem:[%s3067 + $0x50] sm:$0x1]
      %v3449 = vld [vmem:[%s3067 + $0x54] sm:$0xe]
      %v3450 = vld [vmem:[%s3067 + $0x58] sm:$0xf]
      %v3451 = vld [vmem:[%s3067 + $0x5c] sm:$0x1]
      %v3476 = vrot.slane %v3428, 5
      %v3477 = vrot.slane %v3476, 4
      %v3478 = vrot.slane %v3429, 5
      %v3479 = vsel %vm622, %v3477, %v3478
      %v3480 = vrot.slane %v3478, 4
      %v3481 = vrot.slane %v3430, 5
      %v3482 = vsel %vm622, %v3480, %v3481
      %v3483 = vrot.slane %v3431, 5
      %v3484 = vrot.slane %v3483, 4
      %v3485 = vrot.slane %v3432, 5
      %v3486 = vsel %vm622, %v3484, %v3485
      %v3487 = vrot.slane %v3485, 4
      %v3488 = vrot.slane %v3433, 5
      %v3489 = vsel %vm622, %v3487, %v3488
      %v3490 = vrot.slane %v3434, 5
      %v3491 = vrot.slane %v3490, 4
      %v3492 = vrot.slane %v3435, 5
      %v3493 = vsel %vm622, %v3491, %v3492
      %v3494 = vrot.slane %v3492, 4
      %v3495 = vrot.slane %v3436, 5
      %v3496 = vsel %vm622, %v3494, %v3495
      %v3497 = vrot.slane %v3437, 5
      %v3498 = vrot.slane %v3497, 4
      %v3499 = vrot.slane %v3438, 5
      %v3500 = vsel %vm622, %v3498, %v3499
      %v3501 = vrot.slane %v3499, 4
      %v3502 = vrot.slane %v3439, 5
      %v3503 = vsel %vm622, %v3501, %v3502
      %v3504 = vrot.slane %v3440, 5
      %v3505 = vrot.slane %v3504, 4
      %v3506 = vrot.slane %v3441, 5
      %v3507 = vsel %vm622, %v3505, %v3506
      %v3508 = vrot.slane %v3506, 4
      %v3509 = vrot.slane %v3442, 5
      %v3510 = vsel %vm622, %v3508, %v3509
      %v3511 = vrot.slane %v3443, 5
      %v3512 = vrot.slane %v3511, 4
      %v3513 = vrot.slane %v3444, 5
      %v3514 = vsel %vm622, %v3512, %v3513
      %v3515 = vrot.slane %v3513, 4
      %v3516 = vrot.slane %v3445, 5
      %v3517 = vsel %vm622, %v3515, %v3516
      %v3518 = vrot.slane %v3446, 5
      %v3519 = vrot.slane %v3518, 4
      %v3520 = vrot.slane %v3447, 5
      %v3521 = vsel %vm622, %v3519, %v3520
      %v3522 = vrot.slane %v3520, 4
      %v3523 = vrot.slane %v3448, 5
      %v3524 = vsel %vm622, %v3522, %v3523
      %v3525 = vrot.slane %v3449, 5
      %v3526 = vrot.slane %v3525, 4
      %v3527 = vrot.slane %v3450, 5
      %v3528 = vsel %vm622, %v3526, %v3527
      %v3529 = vrot.slane %v3527, 4
      %v3530 = vrot.slane %v3451, 5
      %v3531 = vsel %vm622, %v3529, %v3530
      %v3532 = vunpack.c.l.b16 %v3479
      %v3533 = vunpack.c.l.b16 %v3482
      %v3534 = vunpack.c.l.b16 %v3486
      %v3535 = vunpack.c.l.b16 %v3489
      %v3536 = vunpack.c.l.b16 %v3493
      %v3537 = vunpack.c.l.b16 %v3496
      %v3538 = vunpack.c.l.b16 %v3500
      %v3539 = vunpack.c.l.b16 %v3503
      %v3540 = vunpack.c.l.b16 %v3507
      %v3541 = vunpack.c.l.b16 %v3510
      %v3542 = vunpack.c.l.b16 %v3514
      %v3543 = vunpack.c.l.b16 %v3517
      %v3544 = vunpack.c.l.b16 %v3521
      %v3545 = vunpack.c.l.b16 %v3524
      %v3546 = vunpack.c.l.b16 %v3528
      %v3547 = vunpack.c.l.b16 %v3531
      %v3548 = vpack.c.b16 %v3533, %v3532
      %v3549 = vpack.c.b16 %v3535, %v3534
      %v3550 = vpack.c.b16 %v3537, %v3536
      %v3551 = vpack.c.b16 %v3539, %v3538
      %v3552 = vpack.c.b16 %v3541, %v3540
      %v3553 = vpack.c.b16 %v3543, %v3542
      %v3554 = vpack.c.b16 %v3545, %v3544
      %v3555 = vpack.c.b16 %v3547, %v3546
      %3556 = vrot.lane.b32.xlu0 %v3548, 32
      %v3557 = vpop.permute.xlu0 %3556
      %3558 = vrot.lane.b32.xlu0 %v3549, 32
      %v3559 = vpop.permute.xlu0 %3558
      %3560 = vrot.lane.b32.xlu0 %v3550, 32
      %v3561 = vpop.permute.xlu0 %3560
      %3562 = vrot.lane.b32.xlu0 %v3551, 32
      %v3563 = vpop.permute.xlu0 %3562
      %3564 = vrot.lane.b32.xlu0 %v3552, 32
      %v3565 = vpop.permute.xlu0 %3564
      %3566 = vrot.lane.b32.xlu0 %v3553, 32
      %v3567 = vpop.permute.xlu0 %3566
      %3568 = vrot.lane.b32.xlu0 %v3554, 32
      %v3569 = vpop.permute.xlu0 %3568
      %3570 = vrot.lane.b32.xlu0 %v3555, 32
      %v3571 = vpop.permute.xlu0 %3570
      %3580 = vst.msk [vmem:[#allocation2] sm:$0xff] %vm1775, %v3557
      %3581 = vst.msk [vmem:[#allocation2 + $0x8] sm:$0xff] %vm1775, %v3559
      %3582 = vst.msk [vmem:[#allocation2 + $0x10] sm:$0xff] %vm1775, %v3561
      %3583 = vst.msk [vmem:[#allocation2 + $0x18] sm:$0xff] %vm1775, %v3563
      %3584 = vst.msk [vmem:[#allocation2 + $0x20] sm:$0xff] %vm1775, %v3565
      %3585 = vst.msk [vmem:[#allocation2 + $0x28] sm:$0xff] %vm1775, %v3567
      %3586 = vst.msk [vmem:[#allocation2 + $0x30] sm:$0xff] %vm1775, %v3569
      %3587 = vst.msk [vmem:[#allocation2 + $0x38] sm:$0xff] %vm1775, %v3571
      %v3588 = vld [vmem:[#allocation2] sm:$0xff]
      %v3589 = vld [vmem:[#allocation2 + $0x8] sm:$0xff]
      %v3590 = vld [vmem:[#allocation2 + $0x10] sm:$0xff]
      %v3591 = vld [vmem:[#allocation2 + $0x18] sm:$0xff]
      %v3592 = vld [vmem:[#allocation2 + $0x20] sm:$0xff]
      %v3593 = vld [vmem:[#allocation2 + $0x28] sm:$0xff]
      %v3594 = vld [vmem:[#allocation2 + $0x30] sm:$0xff]
      %v3595 = vld [vmem:[#allocation2 + $0x38] sm:$0xff]
      %v3596 = vld [vmem:[%s210] sm:$0xf]
      %v3597 = vld [vmem:[%s210 + $0x4] sm:$0xf]
      %v3598 = vld [vmem:[%s210 + $0x8] sm:$0xf]
      %v3599 = vld [vmem:[%s210 + $0xc] sm:$0xf]
      %v3600 = vld [vmem:[%s210 + $0x10] sm:$0x3]
      %v3601 = vld [vmem:[%s213] sm:$0x1]
      %v3603 = vlaneseq
      %v3604 = vshrl.u32 %v3603, 7
      %v3605 = vsub.s32 0, %v3604
      %v3606 = vrot.slane %v3601, %v3605
      %v3613 = vunpack.c.l.b16 %v3596
      %v3614 = vunpack.c.l.b16 %v3597
      %v3615 = vunpack.c.l.b16 %v3598
      %v3616 = vunpack.c.l.b16 %v3599
      %v3617 = vunpack.c.l.b16 %v3600
      %v3618 = vpack.c.b16 %v3614, %v3613
      %v3619 = vpack.c.b16 %v3616, %v3615
      %v3620 = vpack.c.b16 %v3617, %v3617
      %v3624 = vsel %vm1819, %v3588, 0
      %v3627 = vsel %vm1819, %v3589, 0
      %v3630 = vsel %vm1819, %v3590, 0
      %v3633 = vsel %vm1819, %v3591, 0
      %v3636 = vsel %vm1819, %v3592, 0
      %v3639 = vsel %vm1819, %v3593, 0
      %v3642 = vsel %vm1819, %v3594, 0
      %v3645 = vsel %vm1819, %v3595, 0
      %v3648 = vsel %vm1844, %v3620, 0
      %3650 = vmatprep.subr.bf16.mxu0 0
      %3651 = vmatpush1.bf16.msra.mxu0 %v3618
      %3652 = vmatprep.subr.bf16.mxu0 0
      %3653 = vmatpush1.bf16.msra.mxu0 %v3619
      %3654 = vmatprep.subr.bf16.mxu0 0
      %3655 = vmatpush1.bf16.msra.mxu0 %v3648
      %3656 = vmatprep.subr.bf16.mxu0 0
      %3657 = vmatpush1.bf16.msra.mxu0 0
      %3658 = vmatprep.subr.bf16.mxu0 0
      %3659 = vmatpush1.bf16.msra.mxu0 0
      %3660 = vmatprep.subr.bf16.mxu0 0
      %3661 = vmatpush1.bf16.msra.mxu0 0
      %3662 = vmatprep.subr.bf16.mxu0 0
      %3663 = vmatpush1.bf16.msra.mxu0 0
      %3664 = vmatprep.subr.bf16.mxu0 0
      %3665 = vmatpush1.bf16.msra.mxu0 0
      %3666 = vmatprep.subr.bf16.mxu0 0
      %3667 = vmatpush1.bf16.msra.mxu0 0
      %3668 = vmatprep.subr.bf16.mxu0 0
      %3669 = vmatpush1.bf16.msra.mxu0 0
      %3670 = vmatprep.subr.bf16.mxu0 0
      %3671 = vmatpush1.bf16.msra.mxu0 0
      %3672 = vmatprep.subr.bf16.mxu0 0
      %3673 = vmatpush1.bf16.msra.mxu0 0
      %3674 = vmatprep.subr.bf16.mxu0 0
      %3675 = vmatpush1.bf16.msra.mxu0 0
      %3676 = vmatprep.subr.bf16.mxu0 0
      %3677 = vmatpush1.bf16.msra.mxu0 0
      %3678 = vmatprep.subr.bf16.mxu0 0
      %3679 = vmatpush1.bf16.msra.mxu0 0
      %3680 = vmatprep.subr.bf16.mxu0 0
      %3681 = vmatpush1.bf16.msra.mxu0 0
      %3682 = vmatprep.mubr.bf16.mxu0 0
      %3683 = vmatmul.mubr.bf16.gmra.mrb[0].mxu0 %v3624
      %v3684 = vpop.f32.mrb[0].mxu0
      %v3685 = vadd.f32 %v3606, %v3684
      %v3686 = vpop.f32.mrb[0].mxu0
      %v3687 = vpop.f32.mrb[0].mxu0
      %v3688 = vadd.f32 %v3606, %v3687
      %v3689 = vpop.f32.mrb[0].mxu0
      %3690 = vmatprep.mubr.bf16.mxu0 0
      %3691 = vmatmul.mubr.bf16.gmra.mrb[0].mxu0 %v3627
      %v3692 = vpop.f32.mrb[0].mxu0
      %v3693 = vadd.f32 %v3606, %v3692
      %v3694 = vpop.f32.mrb[0].mxu0
      %v3695 = vpop.f32.mrb[0].mxu0
      %v3696 = vadd.f32 %v3606, %v3695
      %v3697 = vpop.f32.mrb[0].mxu0
      %3698 = vmatprep.mubr.bf16.mxu0 0
      %3699 = vmatmul.mubr.bf16.gmra.mrb[0].mxu0 %v3630
      %v3700 = vpop.f32.mrb[0].mxu0
      %v3701 = vadd.f32 %v3606, %v3700
      %v3702 = vpop.f32.mrb[0].mxu0
      %v3703 = vpop.f32.mrb[0].mxu0
      %v3704 = vadd.f32 %v3606, %v3703
      %v3705 = vpop.f32.mrb[0].mxu0
      %3706 = vmatprep.mubr.bf16.mxu0 0
      %3707 = vmatmul.mubr.bf16.gmra.mrb[0].mxu0 %v3633
      %v3708 = vpop.f32.mrb[0].mxu0
      %v3709 = vadd.f32 %v3606, %v3708
      %v3710 = vpop.f32.mrb[0].mxu0
      %v3711 = vpop.f32.mrb[0].mxu0
      %v3712 = vadd.f32 %v3606, %v3711
      %v3713 = vpop.f32.mrb[0].mxu0
      %3714 = vmatprep.mubr.bf16.mxu0 0
      %3715 = vmatmul.mubr.bf16.gmra.mrb[0].mxu0 %v3636
      %v3716 = vpop.f32.mrb[0].mxu0
      %v3717 = vadd.f32 %v3606, %v3716
      %v3718 = vpop.f32.mrb[0].mxu0
      %v3719 = vpop.f32.mrb[0].mxu0
      %v3720 = vadd.f32 %v3606, %v3719
      %v3721 = vpop.f32.mrb[0].mxu0
      %3722 = vmatprep.mubr.bf16.mxu0 0
      %3723 = vmatmul.mubr.bf16.gmra.mrb[0].mxu0 %v3639
      %v3724 = vpop.f32.mrb[0].mxu0
      %v3725 = vadd.f32 %v3606, %v3724
      %v3726 = vpop.f32.mrb[0].mxu0
      %v3727 = vpop.f32.mrb[0].mxu0
      %v3728 = vadd.f32 %v3606, %v3727
      %v3729 = vpop.f32.mrb[0].mxu0
      %3730 = vmatprep.mubr.bf16.mxu0 0
      %3731 = vmatmul.mubr.bf16.gmra.mrb[0].mxu0 %v3642
      %v3732 = vpop.f32.mrb[0].mxu0
      %v3733 = vadd.f32 %v3606, %v3732
      %v3734 = vpop.f32.mrb[0].mxu0
      %v3735 = vpop.f32.mrb[0].mxu0
      %v3736 = vadd.f32 %v3606, %v3735
      %v3737 = vpop.f32.mrb[0].mxu0
      %3738 = vmatprep.mubr.bf16.mxu0 0
      %3739 = vmatmul.mubr.bf16.gmra.mrb[0].mxu0 %v3645
      %v3740 = vpop.f32.mrb[0].mxu0
      %v3741 = vadd.f32 %v3606, %v3740
      %v3742 = vpop.f32.mrb[0].mxu0
      %v3743 = vpop.f32.mrb[0].mxu0
      %v3744 = vadd.f32 %v3606, %v3743
      %v3745 = vpop.f32.mrb[0].mxu0
      %3746 = vdwg.mxu0
      %v3747 = vmax.f32 %v3685, 0.0
      %v3748 = vmax.f32 %v3688, 0.0
      %v3749 = vmax.f32 %v3693, 0.0
      %v3750 = vmax.f32 %v3696, 0.0
      %v3751 = vmax.f32 %v3701, 0.0
      %v3752 = vmax.f32 %v3704, 0.0
      %v3753 = vmax.f32 %v3709, 0.0
      %v3754 = vmax.f32 %v3712, 0.0
      %v3755 = vmax.f32 %v3717, 0.0
      %v3756 = vmax.f32 %v3720, 0.0
      %v3757 = vmax.f32 %v3725, 0.0
      %v3758 = vmax.f32 %v3728, 0.0
      %v3759 = vmax.f32 %v3733, 0.0
      %v3760 = vmax.f32 %v3736, 0.0
      %v3761 = vmax.f32 %v3741, 0.0
      %v3762 = vmax.f32 %v3744, 0.0
      %v3763 = vpack.c.bf16 %v3748, %v3747
      %v3764 = vpack.c.bf16 %v3750, %v3749
      %v3765 = vpack.c.bf16 %v3752, %v3751
      %v3766 = vpack.c.bf16 %v3754, %v3753
      %v3767 = vpack.c.bf16 %v3756, %v3755
      %v3768 = vpack.c.bf16 %v3758, %v3757
      %v3769 = vpack.c.bf16 %v3760, %v3759
      %v3770 = vpack.c.bf16 %v3762, %v3761
      %v3779 = vunpack.c.l.b16 %v3763
      %v3780 = vunpack.c.h.b16 %v3763
      %v3781 = vunpack.c.l.b16 %v3764
      %v3782 = vunpack.c.h.b16 %v3764
      %v3783 = vunpack.c.l.b16 %v3765
      %v3784 = vunpack.c.h.b16 %v3765
      %v3785 = vunpack.c.l.b16 %v3766
      %v3786 = vunpack.c.h.b16 %v3766
      %v3787 = vunpack.c.l.b16 %v3767
      %v3788 = vunpack.c.h.b16 %v3767
      %v3789 = vunpack.c.l.b16 %v3768
      %v3790 = vunpack.c.h.b16 %v3768
      %v3791 = vunpack.c.l.b16 %v3769
      %v3792 = vunpack.c.h.b16 %v3769
      %v3793 = vunpack.c.l.b16 %v3770
      %v3794 = vunpack.c.h.b16 %v3770
      %v3795 = vpack.c.b16 %v3779, %v3779
      %v3796 = vpack.c.b16 %v3780, %v3780
      %v3797 = vpack.c.b16 %v3781, %v3781
      %v3798 = vpack.c.b16 %v3782, %v3782
      %v3799 = vpack.c.b16 %v3783, %v3783
      %v3800 = vpack.c.b16 %v3784, %v3784
      %v3801 = vpack.c.b16 %v3785, %v3785
      %v3802 = vpack.c.b16 %v3786, %v3786
      %v3803 = vpack.c.b16 %v3787, %v3787
      %v3804 = vpack.c.b16 %v3788, %v3788
      %v3805 = vpack.c.b16 %v3789, %v3789
      %v3806 = vpack.c.b16 %v3790, %v3790
      %v3807 = vpack.c.b16 %v3791, %v3791
      %v3808 = vpack.c.b16 %v3792, %v3792
      %v3809 = vpack.c.b16 %v3793, %v3793
      %v3810 = vpack.c.b16 %v3794, %v3794
      %s3827 = scalar_lea.vmem %s221, 64
      %3828 = vst [vmem:[%s3827] sm:$0xf] %v3795
      %3829 = vst [vmem:[%s3827 + $0x4] sm:$0xf] %v3796
      %3830 = vst [vmem:[%s3827 + $0x8] sm:$0xf] %v3797
      %3831 = vst [vmem:[%s3827 + $0xc] sm:$0xf] %v3798
      %3832 = vst [vmem:[%s3827 + $0x10] sm:$0xf] %v3799
      %3833 = vst [vmem:[%s3827 + $0x14] sm:$0xf] %v3800
      %3834 = vst [vmem:[%s3827 + $0x18] sm:$0xf] %v3801
      %3835 = vst [vmem:[%s3827 + $0x1c] sm:$0xf] %v3802
      %3836 = vst [vmem:[%s3827 + $0x20] sm:$0xf] %v3803
      %3837 = vst [vmem:[%s3827 + $0x24] sm:$0xf] %v3804
      %3838 = vst [vmem:[%s3827 + $0x28] sm:$0xf] %v3805
      %3839 = vst [vmem:[%s3827 + $0x2c] sm:$0xf] %v3806
      %3840 = vst [vmem:[%s3827 + $0x30] sm:$0xf] %v3807
      %3841 = vst [vmem:[%s3827 + $0x34] sm:$0xf] %v3808
      %3842 = vst [vmem:[%s3827 + $0x38] sm:$0xf] %v3809
      %3843 = vst [vmem:[%s3827 + $0x3c] sm:$0xf] %v3810
      %p3844 = scmp.lt.s32.totalorder %s18, 1
      %s3845 = scalar_select %p3844, %s18, 1
      %p3846 = scmp.lt.s32.totalorder %s19, 0
      %s3847 = scalar_select %p3846, %s19, 0
      %s3848 = smul.addr %s3845, 32
      %s3849 = sadd.s32 %s3847, %s3848
      %s3850 = smul.addr %s3849, 4
      %s3851 = scalar_lea.vmem %s3, %s3850
      // Predicated region
      $region33: #{upsample_block_forward.1} parent=31 // pred_check
        %p3852 = pneg %p124
      $region34: #{upsample_block_forward.1} parent=31 // pred_check_branch
        %3854 = sbr.rel (%p3852) target = $region36
      $region35: #{upsample_block_forward.1} parent=31 // pred_region
        _
      $region36: #{upsample_block_forward.1} parent=31 // pred_fallthru
        _
    $region32: #{upsample_block_forward.1} parent=5 // pred_fallthru
      _
    %p3855 = scmp.le.s32.totalorder 2, %s9
    // Predicated region
    $region37: #{upsample_block_forward.1} parent=5 // pred_check
      %p3856 = pneg %p3855
    $region38: #{upsample_block_forward.1} parent=5 // pred_check_branch
      %3858 = sbr.rel (%p3856) target = $region40
    $region39: #{upsample_block_forward.1} parent=5 // pred_region
      %s3859 = ssub.s32 %s9, 2
      // Predicated region
      $region41: #{upsample_block_forward.1} parent=39 // pred_check
        %p3860 = pneg %p130
      $region42: #{upsample_block_forward.1} parent=39 // pred_check_branch
        %3862 = sbr.rel (%p3860) target = $region44
      $region43: #{upsample_block_forward.1} parent=39 // pred_region
        %p3863 = scmp.lt.s32.totalorder %s20, 1
        %s3864 = scalar_select %p3863, %s20, 1
        %p3865 = scmp.lt.s32.totalorder %s21, 0
        %s3866 = scalar_select %p3865, %s21, 0
        %s3867 = smul.addr %s3864, 32
        %s3868 = sadd.s32 %s3866, %s3867
        %s3869 = smul.addr %s3868, 4
        %s3870 = scalar_lea.vmem %s3, %s3869
      $region44: #{upsample_block_forward.1} parent=39 // pred_fallthru
        _
    $region40: #{upsample_block_forward.1} parent=5 // pred_fallthru
      _
  $region6: #{upsample_block_forward.1} parent=0 // loop_footer
    %s13 = sadd.s32 1, %s9
  $region7: #{upsample_block_forward.1} parent=0 // loop_footer_branch
    %8 = sbr.rel target = $region3
  $region8: #{upsample_block_forward.1} parent=0 // loop_exit
    _

</llo_original>
